<compile_context>
chip_gen: v6e
topology: v6e:2x2x1
jax: 0.10.0
libtpu: 0.0.40
codegen_flags: <defaults>
</compile_context>

<pallas_src>
import math
import jax
import jax.numpy as jnp
from jax.experimental import pallas as pl
from jax.experimental.pallas import tpu as pltpu

# ----------------------------- small config ---------------------------------
VOCAB = 100
HIDDEN = 32
NUM_HEADS = 2
HEAD_DIM = HIDDEN // NUM_HEADS
INTERMEDIATE = 64
NUM_LAYERS = 2
N_ATT_EXPERTS = 2       # ExpertAttention.n_experts
N_FFN_EXPERTS = 2       # SwitchFeedForward experts (FFN fusion below assumes 2)
LORA_RANK = 4
LORA_SCALE = 1.0
LN_EPS = 1e-12
MAX_POS = 64
SEQ = 8
BATCH = 2


# ============================ fused Pallas kernel ============================

def _layernorm(h, g, b):
    # biased variance, matches torch.nn.LayerNorm
    mu = jnp.mean(h, axis=-1, keepdims=True)
    var = jnp.mean(jnp.square(h - mu), axis=-1, keepdims=True)
    return (h - mu) * jax.lax.rsqrt(var + LN_EPS) * g + b


def _model_kernel(x_ref, m_ref, eg_ref, eb_ref,
                  wqkv_ref, bqkv_ref, wo_ref, bo_ref,
                  wr_ref, br_ref, w1_ref, b1_ref, w2_ref, b2_ref,
                  lng_ref, lnb_ref, o_ref):
    """Whole forward: embedding-LN + NUM_LAYERS MoMoShare layers.

    Shapes (all VMEM-resident, no grid):
      x      [T, H]          summed embeddings (T = B*S)
      m      [B, S]          additive attention mask
      wqkv   [L, H, 6H]      [q_e|q_c | k_e|k_c | v_e|v_c]  (LoRA already folded)
      wo     [L, 2H, H]      rows = [wo_expert ; wo_common]
      w1     [L, H, 2*I]     FFN experts concatenated along output dim
      w2     [L, 2*I, 2H]    block-diag(w2_expert0, w2_expert1)
    """
    T, H = x_ref.shape
    B, S = m_ref.shape
    L = wqkv_ref.shape[0]
    n_vh = wqkv_ref.shape[2] // (3 * HEAD_DIM)      # 2*NUM_HEADS "virtual heads"
    inv_sqrt_d = 1.0 / math.sqrt(HEAD_DIM)

    # ---- embeddings LayerNorm (no zero operand DMA) ----
    x = _layernorm(x_ref[...], eg_ref[...], eb_ref[...])
    mask3 = m_ref[...][:, None, :]                  # [B, 1, S]

    for l in range(L):                              # static unroll over layers
        # ---- fused QKV for (selected LoRA expert + common expert) ----
        qkv = jnp.dot(x, wqkv_ref[l], preferred_element_type=jnp.float32) + bqkv_ref[l]
        q_all = qkv[:, 0 * n_vh * HEAD_DIM:1 * n_vh * HEAD_DIM]   # [T, 4*DH]
        k_all = qkv[:, 1 * n_vh * HEAD_DIM:2 * n_vh * HEAD_DIM]
        v_all = qkv[:, 2 * n_vh * HEAD_DIM:3 * n_vh * HEAD_DIM]

        # ---- attention core, all (batch, virtual-head) tiles in one body ----
        ctx_cols = []
        for vh in range(n_vh):                      # static unroll (4)
            sl = slice(vh * HEAD_DIM, (vh + 1) * HEAD_DIM)
            qh = q_all[:, sl].reshape(B, S, HEAD_DIM)
            kh = k_all[:, sl].reshape(B, S, HEAD_DIM)
            vv = v_all[:, sl].reshape(B, S, HEAD_DIM)
            # contraction on head dim of both operands -> no materialized k.T
            s = jnp.einsum('bqd,bkd->bqk', qh, kh,
                           preferred_element_type=jnp.float32) * inv_sqrt_d
            s = s + mask3
            s = s - jnp.max(s, axis=-1, keepdims=True)
            p = jnp.exp(s)
            p = p / jnp.sum(p, axis=-1, keepdims=True)
            c = jnp.einsum('bqk,bkd->bqd', p, vv,
                           preferred_element_type=jnp.float32)
            ctx_cols.append(c.reshape(T, HEAD_DIM))
        ctx = jnp.concatenate(ctx_cols, axis=1)     # [T, 2H]: [ctx_expert | ctx_common]

        # att = ctx_e @ wo_e + ctx_c @ wo_c + bo_e + bo_c  (ExpertAttention sum)
        att = jnp.dot(ctx, wo_ref[l], preferred_element_type=jnp.float32) + bo_ref[l]

        # ---- Switch-Transformer FFN (2 experts fused) ----
        logits = jnp.dot(att, wr_ref[l], preferred_element_type=jnp.float32) + br_ref[l]
        logits = logits - jnp.max(logits, axis=-1, keepdims=True)
        e = jnp.exp(logits)
        probs = e / jnp.sum(e, axis=-1, keepdims=True)              # [T, 2]
        pmax = jnp.max(probs, axis=-1, keepdims=True)               # [T, 1]
        # first-argmax (matches torch.max tie behavior) for 2 experts
        route0 = probs[:, 0:1] >= probs[:, 1:2]                     # [T, 1] bool

        h = jnp.dot(att, w1_ref[l], preferred_element_type=jnp.float32) + b1_ref[l]
        h = jax.nn.gelu(h)                                          # [T, 128]
        y = jnp.dot(h, w2_ref[l], preferred_element_type=jnp.float32) + b2_ref[l]
        ffn = jnp.where(route0, y[:, :H], y[:, H:]) * pmax          # [T, H]

        # dropout == identity (eval mode); Post-Norm: LN(att + ffn)
        x = _layernorm(att + ffn, lng_ref[l], lnb_ref[l])

    o_ref[...] = x


# ============================ wrapper (plain JAX) ============================

def model_forward(emb_params, fused, input_ids, attention_mask):
    B, S = input_ids.shape
    # TODO(synk): embedding-table gather done with jnp.take in the wrapper (no
    # clean/profitable Pallas gather at this size); everything after the gather
    # runs inside the single fused Pallas kernel.
    we = jnp.take(emb_params["word"], input_ids, axis=0)            # [B, S, H]
    pe = emb_params["pos"][:S][None, :, :]                          # [1, S, H]
    tte = emb_params["tok_type"][0][None, None, :]                  # token_type_ids == 0
    x = (we + pe + tte).reshape(B * S, HIDDEN)
    # additive attention mask, broadcast over the query axis inside the kernel
    mask_add = (1.0 - attention_mask.astype(jnp.float32)) * -10000.0   # [B, S]

    out = pl.pallas_call(
        _model_kernel,
        out_shape=jax.ShapeDtypeStruct((B * S, HIDDEN), jnp.float32),
    )(x, mask_add, emb_params["ln_g"], emb_params["ln_b"],
      fused["w_qkv"], fused["b_qkv"], fused["w_o"], fused["b_o"],
      fused["wr"], fused["br"], fused["w1"], fused["b1"],
      fused["w2"], fused["b2"], fused["ln_g"], fused["ln_b"])
    return out.reshape(B, S, HIDDEN)


# ---------------- weight fusion (static expert_index => done once) -----------

def fuse_layer(lp, expert_index):
    ex = lp["experts"][expert_index]
    co = lp["common"]
    # fold the static LoRA adapters into the base weights (LoRA on q and v only)
    wq_e = ex["wq"] + LORA_SCALE * (ex["aq"] @ ex["bbq"])
    wv_e = ex["wv"] + LORA_SCALE * (ex["av"] @ ex["bbv"])
    # virtual-head layout: cols [vh*DH:(vh+1)*DH]; vh 0..1 = expert, 2..3 = common
    w_q = jnp.concatenate([wq_e, co["wq"]], axis=1)                  # [H, 2H]
    w_k = jnp.concatenate([ex["wk"], co["wk"]], axis=1)
    w_v = jnp.concatenate([wv_e, co["wv"]], axis=1)
    w_qkv = jnp.concatenate([w_q, w_k, w_v], axis=1)                 # [H, 6H] = [32, 192]
    b_qkv = jnp.concatenate([ex["bq"], co["bq"], ex["bk"], co["bk"],
                             ex["bv"], co["bv"]], axis=1)            # [1, 192]
    w_o = jnp.concatenate([ex["wo"], co["wo"]], axis=0)              # [2H, H]
    b_o = ex["bo"] + co["bo"]

    fp = lp["ffn"]
    assert N_FFN_EXPERTS == 2
    w1 = jnp.concatenate([fp["w1"][0], fp["w1"][1]], axis=1)         # [H, 2I] = [32, 128]
    b1 = jnp.concatenate([fp["b1"][0], fp["b1"][1]], axis=1)         # [1, 128]
    z = jnp.zeros((INTERMEDIATE, HIDDEN), jnp.float32)
    w2 = jnp.concatenate(
        [jnp.concatenate([fp["w2"][0], z], axis=1),
         jnp.concatenate([z, fp["w2"][1]], axis=1)], axis=0)         # [2I, 2H] block-diag
    b2 = jnp.concatenate([fp["b2"][0], fp["b2"][1]], axis=1)         # [1, 2H]

    return dict(w_qkv=w_qkv, b_qkv=b_qkv, w_o=w_o, b_o=b_o,
                wr=fp["wr"], br=fp["br"], w1=w1, b1=b1, w2=w2, b2=b2,
                ln_g=lp["ln_g"], ln_b=lp["ln_b"])


def fuse_params(params, expert_index):
    per = [fuse_layer(lp, expert_index) for lp in params["layers"]]
    return {k: jnp.stack([p[k] for p in per], axis=0) for k in per[0]}


# ============================ parameter init =================================

class KeyIter:
    def __init__(self, key):
        self.key = key

    def __call__(self):
        self.key, sub = jax.random.split(self.key)
        return sub


def nrm(kit, shape, scale=0.02):
    return scale * jax.random.normal(kit(), shape, dtype=jnp.float32)


def init_attention_params(kit, lora):
    p = {
        "wq": nrm(kit, (HIDDEN, HIDDEN)), "bq": jnp.zeros((1, HIDDEN), jnp.float32),
        "wk": nrm(kit, (HIDDEN, HIDDEN)), "bk": jnp.zeros((1, HIDDEN), jnp.float32),
        "wv": nrm(kit, (HIDDEN, HIDDEN)), "bv": jnp.zeros((1, HIDDEN), jnp.float32),
        "wo": nrm(kit, (HIDDEN, HIDDEN)), "bo": jnp.zeros((1, HIDDEN), jnp.float32),
    }
    if lora:
        # NOTE: real LoRA inits B to zero; random here so the adapter path is exercised.
        p.update({
            "aq": nrm(kit, (HIDDEN, LORA_RANK)), "bbq": nrm(kit, (LORA_RANK, HIDDEN)),
            "av": nrm(kit, (HIDDEN, LORA_RANK)), "bbv": nrm(kit, (LORA_RANK, HIDDEN)),
        })
    return p


def init_params(key):
    kit = KeyIter(key)
    emb = {
        "word": nrm(kit, (VOCAB, HIDDEN)),
        "pos": nrm(kit, (MAX_POS, HIDDEN)),
        "tok_type": nrm(kit, (2, HIDDEN)),
        "ln_g": jnp.ones((1, HIDDEN), jnp.float32),
        "ln_b": jnp.zeros((1, HIDDEN), jnp.float32),
    }
    layers = []
    for _ in range(NUM_LAYERS):
        layers.append({
            "experts": [init_attention_params(kit, lora=True) for _ in range(N_ATT_EXPERTS)],
            "common": init_attention_params(kit, lora=False),
            "ffn": {
                "wr": nrm(kit, (HIDDEN, N_FFN_EXPERTS)),
                "br": jnp.zeros((1, N_FFN_EXPERTS), jnp.float32),
                "w1": nrm(kit, (N_FFN_EXPERTS, HIDDEN, INTERMEDIATE)),
                "b1": jnp.zeros((N_FFN_EXPERTS, 1, INTERMEDIATE), jnp.float32),
                "w2": nrm(kit, (N_FFN_EXPERTS, INTERMEDIATE, HIDDEN)),
                "b2": jnp.zeros((N_FFN_EXPERTS, 1, HIDDEN), jnp.float32),
            },
            "ln_g": jnp.ones((1, HIDDEN), jnp.float32),
            "ln_b": jnp.zeros((1, HIDDEN), jnp.float32),
        })
    # `centers` are only used by ExpertAttention.routing(), which the forward pass
    # never calls (expert_index is supplied directly) -> created for fidelity only.
    centers = nrm(kit, (NUM_LAYERS, N_ATT_EXPERTS, HIDDEN))
    return {"emb": emb, "layers": layers, "centers": centers}


# ================================== main =====================================

if __name__ == "__main__":
    key = jax.random.PRNGKey(0)
    params = init_params(key)

    expert_index = 0   # static expert selection, as in the PyTorch forward
    fused = fuse_params(params, expert_index)   # one-time wrapper-side weight fusion

    ids_key, _ = jax.random.split(jax.random.PRNGKey(0))
    input_ids = jax.random.randint(ids_key, (BATCH, SEQ), 0, VOCAB, dtype=jnp.int32)
    attention_mask = jnp.ones((BATCH, SEQ), dtype=jnp.float32)

    fwd = jax.jit(model_forward)
    out = fwd(params["emb"], fused, input_ids, attention_mask)
    out = jax.block_until_ready(out)
    assert out.shape == (BATCH, SEQ, HIDDEN)
    assert bool(jnp.all(jnp.isfinite(out)))
    print("KERNEL_OK")
</pallas_src>

<mosaic_0001>
module attributes {stable_mosaic.version = 11 : i64} {
  func.func @_model_kernel(%arg0: memref<16x32xf32, #tpu.memory_space<vmem>>, %arg1: memref<2x8xf32, #tpu.memory_space<vmem>>, %arg2: memref<1x32xf32, #tpu.memory_space<vmem>>, %arg3: memref<1x32xf32, #tpu.memory_space<vmem>>, %arg4: memref<2x32x192xf32, #tpu.memory_space<vmem>>, %arg5: memref<2x1x192xf32, #tpu.memory_space<vmem>>, %arg6: memref<2x64x32xf32, #tpu.memory_space<vmem>>, %arg7: memref<2x1x32xf32, #tpu.memory_space<vmem>>, %arg8: memref<2x32x2xf32, #tpu.memory_space<vmem>>, %arg9: memref<2x1x2xf32, #tpu.memory_space<vmem>>, %arg10: memref<2x32x128xf32, #tpu.memory_space<vmem>>, %arg11: memref<2x1x128xf32, #tpu.memory_space<vmem>>, %arg12: memref<2x128x64xf32, #tpu.memory_space<vmem>>, %arg13: memref<2x1x64xf32, #tpu.memory_space<vmem>>, %arg14: memref<2x1x32xf32, #tpu.memory_space<vmem>>, %arg15: memref<2x1x32xf32, #tpu.memory_space<vmem>>, %arg16: memref<16x32xf32, #tpu.memory_space<vmem>>) attributes {dimension_semantics = [], scalar_prefetch = 0 : i64, scratch_operands = 0 : i64, tpu.core_type = #tpu.core_type<tc>} {
    %c0 = arith.constant 0 : index
    %c0_0 = arith.constant 0 : index
    %0 = vector.load %arg0[%c0, %c0_0] : memref<16x32xf32, #tpu.memory_space<vmem>>, vector<16x32xf32>
    %c0_1 = arith.constant 0 : index
    %c0_2 = arith.constant 0 : index
    %1 = vector.load %arg2[%c0_1, %c0_2] : memref<1x32xf32, #tpu.memory_space<vmem>>, vector<1x32xf32>
    %c0_3 = arith.constant 0 : index
    %c0_4 = arith.constant 0 : index
    %2 = vector.load %arg3[%c0_3, %c0_4] : memref<1x32xf32, #tpu.memory_space<vmem>>, vector<1x32xf32>
    %cst = arith.constant dense<0.000000e+00> : vector<16xf32>
    %3 = vector.multi_reduction <add>, %0, %cst [1] : vector<16x32xf32> to vector<16xf32>
    %4 = vector.shape_cast %3 : vector<16xf32> to vector<16x1xf32>
    %cst_5 = arith.constant 3.200000e+01 : f32
    %5 = vector.broadcast %cst_5 : f32 to vector<16x1xf32>
    %6 = arith.divf %4, %5 : vector<16x1xf32>
    %7 = vector.broadcast %6 : vector<16x1xf32> to vector<16x32xf32>
    %8 = arith.subf %0, %7 : vector<16x32xf32>
    %9 = arith.mulf %8, %8 : vector<16x32xf32>
    %cst_6 = arith.constant dense<0.000000e+00> : vector<16xf32>
    %10 = vector.multi_reduction <add>, %9, %cst_6 [1] : vector<16x32xf32> to vector<16xf32>
    %11 = vector.shape_cast %10 : vector<16xf32> to vector<16x1xf32>
    %cst_7 = arith.constant 3.200000e+01 : f32
    %12 = vector.broadcast %cst_7 : f32 to vector<16x1xf32>
    %13 = arith.divf %11, %12 : vector<16x1xf32>
    %14 = vector.broadcast %6 : vector<16x1xf32> to vector<16x32xf32>
    %15 = arith.subf %0, %14 : vector<16x32xf32>
    %cst_8 = arith.constant 9.99999996E-13 : f32
    %16 = vector.broadcast %cst_8 : f32 to vector<16x1xf32>
    %17 = arith.addf %13, %16 : vector<16x1xf32>
    %18 = math.rsqrt %17 : vector<16x1xf32>
    %19 = vector.broadcast %18 : vector<16x1xf32> to vector<16x32xf32>
    %20 = arith.mulf %15, %19 : vector<16x32xf32>
    %21 = vector.broadcast %1 : vector<1x32xf32> to vector<16x32xf32>
    %22 = arith.mulf %20, %21 : vector<16x32xf32>
    %23 = vector.broadcast %2 : vector<1x32xf32> to vector<16x32xf32>
    %24 = arith.addf %22, %23 : vector<16x32xf32>
    %c0_9 = arith.constant 0 : index
    %c0_10 = arith.constant 0 : index
    %25 = vector.load %arg1[%c0_9, %c0_10] : memref<2x8xf32, #tpu.memory_space<vmem>>, vector<2x8xf32>
    %26 = vector.shape_cast %25 : vector<2x8xf32> to vector<2x1x8xf32>
    %c0_11 = arith.constant 0 : index
    %c0_12 = arith.constant 0 : index
    %c0_13 = arith.constant 0 : index
    %27 = vector.load %arg4[%c0_11, %c0_12, %c0_13] : memref<2x32x192xf32, #tpu.memory_space<vmem>>, vector<1x32x192xf32>
    %28 = vector.shape_cast %27 : vector<1x32x192xf32> to vector<32x192xf32>
    %cst_14 = arith.constant dense<0.000000e+00> : vector<16x192xf32>
    %29 = tpu.matmul %24, %28, %cst_14 {dimension_numbers = #tpu.dot_dimension_numbers<[1], [0], [0], [1], [0, 0, 1, 1], [], []>} : vector<16x32xf32>, vector<32x192xf32>, vector<16x192xf32> -> vector<16x192xf32>
    %c0_15 = arith.constant 0 : index
    %c0_16 = arith.constant 0 : index
    %c0_17 = arith.constant 0 : index
    %30 = vector.load %arg5[%c0_15, %c0_16, %c0_17] : memref<2x1x192xf32, #tpu.memory_space<vmem>>, vector<1x1x192xf32>
    %31 = vector.shape_cast %30 : vector<1x1x192xf32> to vector<1x192xf32>
    %32 = vector.broadcast %31 : vector<1x192xf32> to vector<16x192xf32>
    %33 = arith.addf %29, %32 : vector<16x192xf32>
    %34 = vector.extract_strided_slice %33 {offsets = [0, 0], sizes = [16, 64], strides = [1, 1]} : vector<16x192xf32> to vector<16x64xf32>
    %35 = vector.extract_strided_slice %33 {offsets = [0, 64], sizes = [16, 64], strides = [1, 1]} : vector<16x192xf32> to vector<16x64xf32>
    %36 = vector.extract_strided_slice %33 {offsets = [0, 128], sizes = [16, 64], strides = [1, 1]} : vector<16x192xf32> to vector<16x64xf32>
    %37 = vector.extract_strided_slice %34 {offsets = [0, 0], sizes = [16, 16], strides = [1, 1]} : vector<16x64xf32> to vector<16x16xf32>
    %38 = vector.shape_cast %37 : vector<16x16xf32> to vector<2x8x16xf32>
    %39 = vector.extract_strided_slice %35 {offsets = [0, 0], sizes = [16, 16], strides = [1, 1]} : vector<16x64xf32> to vector<16x16xf32>
    %40 = vector.shape_cast %39 : vector<16x16xf32> to vector<2x8x16xf32>
    %41 = vector.extract_strided_slice %36 {offsets = [0, 0], sizes = [16, 16], strides = [1, 1]} : vector<16x64xf32> to vector<16x16xf32>
    %42 = vector.shape_cast %41 : vector<16x16xf32> to vector<2x8x16xf32>
    "tpu.trace_start"() <{level = 10 : i32, message = "bqd,bkd->bqk"}> : () -> ()
    %cst_18 = arith.constant dense<0.000000e+00> : vector<2x8x8xf32>
    %43 = tpu.matmul %38, %40, %cst_18 {dimension_numbers = #tpu.dot_dimension_numbers<[2], [2], [1], [1], [0, 0, 0, 1, 1, 1], [0], [0]>} : vector<2x8x16xf32>, vector<2x8x16xf32>, vector<2x8x8xf32> -> vector<2x8x8xf32>
    "tpu.trace_stop"() : () -> ()
    %cst_19 = arith.constant 2.500000e-01 : f32
    %44 = vector.broadcast %cst_19 : f32 to vector<2x8x8xf32>
    %45 = arith.mulf %43, %44 : vector<2x8x8xf32>
    %46 = vector.broadcast %26 : vector<2x1x8xf32> to vector<2x8x8xf32>
    %47 = arith.addf %45, %46 : vector<2x8x8xf32>
    %cst_20 = arith.constant dense<0xFF800000> : vector<2x8xf32>
    %48 = vector.multi_reduction <maximumf>, %47, %cst_20 [2] : vector<2x8x8xf32> to vector<2x8xf32>
    %49 = vector.shape_cast %48 : vector<2x8xf32> to vector<2x8x1xf32>
    %50 = vector.broadcast %49 : vector<2x8x1xf32> to vector<2x8x8xf32>
    %51 = arith.subf %47, %50 : vector<2x8x8xf32>
    %52 = math.exp %51 : vector<2x8x8xf32>
    %cst_21 = arith.constant dense<0.000000e+00> : vector<2x8xf32>
    %53 = vector.multi_reduction <add>, %52, %cst_21 [2] : vector<2x8x8xf32> to vector<2x8xf32>
    %54 = vector.shape_cast %53 : vector<2x8xf32> to vector<2x8x1xf32>
    %55 = vector.broadcast %54 : vector<2x8x1xf32> to vector<2x8x8xf32>
    %56 = arith.divf %52, %55 : vector<2x8x8xf32>
    "tpu.trace_start"() <{level = 10 : i32, message = "bqk,bkd->bqd"}> : () -> ()
    %cst_22 = arith.constant dense<0.000000e+00> : vector<2x8x16xf32>
    %57 = tpu.matmul %56, %42, %cst_22 {dimension_numbers = #tpu.dot_dimension_numbers<[2], [1], [1], [2], [0, 0, 0, 1, 1, 2], [0], [0]>} : vector<2x8x8xf32>, vector<2x8x16xf32>, vector<2x8x16xf32> -> vector<2x8x16xf32>
    "tpu.trace_stop"() : () -> ()
    %58 = vector.shape_cast %57 : vector<2x8x16xf32> to vector<16x16xf32>
    %59 = vector.extract_strided_slice %34 {offsets = [0, 16], sizes = [16, 16], strides = [1, 1]} : vector<16x64xf32> to vector<16x16xf32>
    %60 = vector.shape_cast %59 : vector<16x16xf32> to vector<2x8x16xf32>
    %61 = vector.extract_strided_slice %35 {offsets = [0, 16], sizes = [16, 16], strides = [1, 1]} : vector<16x64xf32> to vector<16x16xf32>
    %62 = vector.shape_cast %61 : vector<16x16xf32> to vector<2x8x16xf32>
    %63 = vector.extract_strided_slice %36 {offsets = [0, 16], sizes = [16, 16], strides = [1, 1]} : vector<16x64xf32> to vector<16x16xf32>
    %64 = vector.shape_cast %63 : vector<16x16xf32> to vector<2x8x16xf32>
    "tpu.trace_start"() <{level = 10 : i32, message = "bqd,bkd->bqk"}> : () -> ()
    %cst_23 = arith.constant dense<0.000000e+00> : vector<2x8x8xf32>
    %65 = tpu.matmul %60, %62, %cst_23 {dimension_numbers = #tpu.dot_dimension_numbers<[2], [2], [1], [1], [0, 0, 0, 1, 1, 1], [0], [0]>} : vector<2x8x16xf32>, vector<2x8x16xf32>, vector<2x8x8xf32> -> vector<2x8x8xf32>
    "tpu.trace_stop"() : () -> ()
    %cst_24 = arith.constant 2.500000e-01 : f32
    %66 = vector.broadcast %cst_24 : f32 to vector<2x8x8xf32>
    %67 = arith.mulf %65, %66 : vector<2x8x8xf32>
    %68 = vector.broadcast %26 : vector<2x1x8xf32> to vector<2x8x8xf32>
    %69 = arith.addf %67, %68 : vector<2x8x8xf32>
    %cst_25 = arith.constant dense<0xFF800000> : vector<2x8xf32>
    %70 = vector.multi_reduction <maximumf>, %69, %cst_25 [2] : vector<2x8x8xf32> to vector<2x8xf32>
    %71 = vector.shape_cast %70 : vector<2x8xf32> to vector<2x8x1xf32>
    %72 = vector.broadcast %71 : vector<2x8x1xf32> to vector<2x8x8xf32>
    %73 = arith.subf %69, %72 : vector<2x8x8xf32>
    %74 = math.exp %73 : vector<2x8x8xf32>
    %cst_26 = arith.constant dense<0.000000e+00> : vector<2x8xf32>
    %75 = vector.multi_reduction <add>, %74, %cst_26 [2] : vector<2x8x8xf32> to vector<2x8xf32>
    %76 = vector.shape_cast %75 : vector<2x8xf32> to vector<2x8x1xf32>
    %77 = vector.broadcast %76 : vector<2x8x1xf32> to vector<2x8x8xf32>
    %78 = arith.divf %74, %77 : vector<2x8x8xf32>
    "tpu.trace_start"() <{level = 10 : i32, message = "bqk,bkd->bqd"}> : () -> ()
    %cst_27 = arith.constant dense<0.000000e+00> : vector<2x8x16xf32>
    %79 = tpu.matmul %78, %64, %cst_27 {dimension_numbers = #tpu.dot_dimension_numbers<[2], [1], [1], [2], [0, 0, 0, 1, 1, 2], [0], [0]>} : vector<2x8x8xf32>, vector<2x8x16xf32>, vector<2x8x16xf32> -> vector<2x8x16xf32>
    "tpu.trace_stop"() : () -> ()
    %80 = vector.shape_cast %79 : vector<2x8x16xf32> to vector<16x16xf32>
    %81 = vector.extract_strided_slice %34 {offsets = [0, 32], sizes = [16, 16], strides = [1, 1]} : vector<16x64xf32> to vector<16x16xf32>
    %82 = vector.shape_cast %81 : vector<16x16xf32> to vector<2x8x16xf32>
    %83 = vector.extract_strided_slice %35 {offsets = [0, 32], sizes = [16, 16], strides = [1, 1]} : vector<16x64xf32> to vector<16x16xf32>
    %84 = vector.shape_cast %83 : vector<16x16xf32> to vector<2x8x16xf32>
    %85 = vector.extract_strided_slice %36 {offsets = [0, 32], sizes = [16, 16], strides = [1, 1]} : vector<16x64xf32> to vector<16x16xf32>
    %86 = vector.shape_cast %85 : vector<16x16xf32> to vector<2x8x16xf32>
    "tpu.trace_start"() <{level = 10 : i32, message = "bqd,bkd->bqk"}> : () -> ()
    %cst_28 = arith.constant dense<0.000000e+00> : vector<2x8x8xf32>
    %87 = tpu.matmul %82, %84, %cst_28 {dimension_numbers = #tpu.dot_dimension_numbers<[2], [2], [1], [1], [0, 0, 0, 1, 1, 1], [0], [0]>} : vector<2x8x16xf32>, vector<2x8x16xf32>, vector<2x8x8xf32> -> vector<2x8x8xf32>
    "tpu.trace_stop"() : () -> ()
    %cst_29 = arith.constant 2.500000e-01 : f32
    %88 = vector.broadcast %cst_29 : f32 to vector<2x8x8xf32>
    %89 = arith.mulf %87, %88 : vector<2x8x8xf32>
    %90 = vector.broadcast %26 : vector<2x1x8xf32> to vector<2x8x8xf32>
    %91 = arith.addf %89, %90 : vector<2x8x8xf32>
    %cst_30 = arith.constant dense<0xFF800000> : vector<2x8xf32>
    %92 = vector.multi_reduction <maximumf>, %91, %cst_30 [2] : vector<2x8x8xf32> to vector<2x8xf32>
    %93 = vector.shape_cast %92 : vector<2x8xf32> to vector<2x8x1xf32>
    %94 = vector.broadcast %93 : vector<2x8x1xf32> to vector<2x8x8xf32>
    %95 = arith.subf %91, %94 : vector<2x8x8xf32>
    %96 = math.exp %95 : vector<2x8x8xf32>
    %cst_31 = arith.constant dense<0.000000e+00> : vector<2x8xf32>
    %97 = vector.multi_reduction <add>, %96, %cst_31 [2] : vector<2x8x8xf32> to vector<2x8xf32>
    %98 = vector.shape_cast %97 : vector<2x8xf32> to vector<2x8x1xf32>
    %99 = vector.broadcast %98 : vector<2x8x1xf32> to vector<2x8x8xf32>
    %100 = arith.divf %96, %99 : vector<2x8x8xf32>
    "tpu.trace_start"() <{level = 10 : i32, message = "bqk,bkd->bqd"}> : () -> ()
    %cst_32 = arith.constant dense<0.000000e+00> : vector<2x8x16xf32>
    %101 = tpu.matmul %100, %86, %cst_32 {dimension_numbers = #tpu.dot_dimension_numbers<[2], [1], [1], [2], [0, 0, 0, 1, 1, 2], [0], [0]>} : vector<2x8x8xf32>, vector<2x8x16xf32>, vector<2x8x16xf32> -> vector<2x8x16xf32>
    "tpu.trace_stop"() : () -> ()
    %102 = vector.shape_cast %101 : vector<2x8x16xf32> to vector<16x16xf32>
    %103 = vector.extract_strided_slice %34 {offsets = [0, 48], sizes = [16, 16], strides = [1, 1]} : vector<16x64xf32> to vector<16x16xf32>
    %104 = vector.shape_cast %103 : vector<16x16xf32> to vector<2x8x16xf32>
    %105 = vector.extract_strided_slice %35 {offsets = [0, 48], sizes = [16, 16], strides = [1, 1]} : vector<16x64xf32> to vector<16x16xf32>
    %106 = vector.shape_cast %105 : vector<16x16xf32> to vector<2x8x16xf32>
    %107 = vector.extract_strided_slice %36 {offsets = [0, 48], sizes = [16, 16], strides = [1, 1]} : vector<16x64xf32> to vector<16x16xf32>
    %108 = vector.shape_cast %107 : vector<16x16xf32> to vector<2x8x16xf32>
    "tpu.trace_start"() <{level = 10 : i32, message = "bqd,bkd->bqk"}> : () -> ()
    %cst_33 = arith.constant dense<0.000000e+00> : vector<2x8x8xf32>
    %109 = tpu.matmul %104, %106, %cst_33 {dimension_numbers = #tpu.dot_dimension_numbers<[2], [2], [1], [1], [0, 0, 0, 1, 1, 1], [0], [0]>} : vector<2x8x16xf32>, vector<2x8x16xf32>, vector<2x8x8xf32> -> vector<2x8x8xf32>
    "tpu.trace_stop"() : () -> ()
    %cst_34 = arith.constant 2.500000e-01 : f32
    %110 = vector.broadcast %cst_34 : f32 to vector<2x8x8xf32>
    %111 = arith.mulf %109, %110 : vector<2x8x8xf32>
    %112 = vector.broadcast %26 : vector<2x1x8xf32> to vector<2x8x8xf32>
    %113 = arith.addf %111, %112 : vector<2x8x8xf32>
    %cst_35 = arith.constant dense<0xFF800000> : vector<2x8xf32>
    %114 = vector.multi_reduction <maximumf>, %113, %cst_35 [2] : vector<2x8x8xf32> to vector<2x8xf32>
    %115 = vector.shape_cast %114 : vector<2x8xf32> to vector<2x8x1xf32>
    %116 = vector.broadcast %115 : vector<2x8x1xf32> to vector<2x8x8xf32>
    %117 = arith.subf %113, %116 : vector<2x8x8xf32>
    %118 = math.exp %117 : vector<2x8x8xf32>
    %cst_36 = arith.constant dense<0.000000e+00> : vector<2x8xf32>
    %119 = vector.multi_reduction <add>, %118, %cst_36 [2] : vector<2x8x8xf32> to vector<2x8xf32>
    %120 = vector.shape_cast %119 : vector<2x8xf32> to vector<2x8x1xf32>
    %121 = vector.broadcast %120 : vector<2x8x1xf32> to vector<2x8x8xf32>
    %122 = arith.divf %118, %121 : vector<2x8x8xf32>
    "tpu.trace_start"() <{level = 10 : i32, message = "bqk,bkd->bqd"}> : () -> ()
    %cst_37 = arith.constant dense<0.000000e+00> : vector<2x8x16xf32>
    %123 = tpu.matmul %122, %108, %cst_37 {dimension_numbers = #tpu.dot_dimension_numbers<[2], [1], [1], [2], [0, 0, 0, 1, 1, 2], [0], [0]>} : vector<2x8x8xf32>, vector<2x8x16xf32>, vector<2x8x16xf32> -> vector<2x8x16xf32>
    "tpu.trace_stop"() : () -> ()
    %124 = vector.shape_cast %123 : vector<2x8x16xf32> to vector<16x16xf32>
    %125 = tpu.concatenate %58, %80, %102, %124 in 1 : vector<16x16xf32>, vector<16x16xf32>, vector<16x16xf32>, vector<16x16xf32> -> vector<16x64xf32>
    %c0_38 = arith.constant 0 : index
    %c0_39 = arith.constant 0 : index
    %c0_40 = arith.constant 0 : index
    %126 = vector.load %arg6[%c0_38, %c0_39, %c0_40] : memref<2x64x32xf32, #tpu.memory_space<vmem>>, vector<1x64x32xf32>
    %127 = vector.shape_cast %126 : vector<1x64x32xf32> to vector<64x32xf32>
    %cst_41 = arith.constant dense<0.000000e+00> : vector<16x32xf32>
    %128 = tpu.matmul %125, %127, %cst_41 {dimension_numbers = #tpu.dot_dimension_numbers<[1], [0], [0], [1], [0, 0, 1, 1], [], []>} : vector<16x64xf32>, vector<64x32xf32>, vector<16x32xf32> -> vector<16x32xf32>
    %c0_42 = arith.constant 0 : index
    %c0_43 = arith.constant 0 : index
    %c0_44 = arith.constant 0 : index
    %129 = vector.load %arg7[%c0_42, %c0_43, %c0_44] : memref<2x1x32xf32, #tpu.memory_space<vmem>>, vector<1x1x32xf32>
    %130 = vector.shape_cast %129 : vector<1x1x32xf32> to vector<1x32xf32>
    %131 = vector.broadcast %130 : vector<1x32xf32> to vector<16x32xf32>
    %132 = arith.addf %128, %131 : vector<16x32xf32>
    %c0_45 = arith.constant 0 : index
    %c0_46 = arith.constant 0 : index
    %c0_47 = arith.constant 0 : index
    %133 = vector.load %arg8[%c0_45, %c0_46, %c0_47] : memref<2x32x2xf32, #tpu.memory_space<vmem>>, vector<1x32x2xf32>
    %134 = vector.shape_cast %133 : vector<1x32x2xf32> to vector<32x2xf32>
    %cst_48 = arith.constant dense<0.000000e+00> : vector<16x2xf32>
    %135 = tpu.matmul %132, %134, %cst_48 {dimension_numbers = #tpu.dot_dimension_numbers<[1], [0], [0], [1], [0, 0, 1, 1], [], []>} : vector<16x32xf32>, vector<32x2xf32>, vector<16x2xf32> -> vector<16x2xf32>
    %c0_49 = arith.constant 0 : index
    %c0_50 = arith.constant 0 : index
    %c0_51 = arith.constant 0 : index
    %136 = vector.load %arg9[%c0_49, %c0_50, %c0_51] : memref<2x1x2xf32, #tpu.memory_space<vmem>>, vector<1x1x2xf32>
    %137 = vector.shape_cast %136 : vector<1x1x2xf32> to vector<1x2xf32>
    %138 = vector.broadcast %137 : vector<1x2xf32> to vector<16x2xf32>
    %139 = arith.addf %135, %138 : vector<16x2xf32>
    %cst_52 = arith.constant dense<0xFF800000> : vector<16xf32>
    %140 = vector.multi_reduction <maximumf>, %139, %cst_52 [1] : vector<16x2xf32> to vector<16xf32>
    %141 = vector.shape_cast %140 : vector<16xf32> to vector<16x1xf32>
    %142 = vector.broadcast %141 : vector<16x1xf32> to vector<16x2xf32>
    %143 = arith.subf %139, %142 : vector<16x2xf32>
    %144 = math.exp %143 : vector<16x2xf32>
    %cst_53 = arith.constant dense<0.000000e+00> : vector<16xf32>
    %145 = vector.multi_reduction <add>, %144, %cst_53 [1] : vector<16x2xf32> to vector<16xf32>
    %146 = vector.shape_cast %145 : vector<16xf32> to vector<16x1xf32>
    %147 = vector.broadcast %146 : vector<16x1xf32> to vector<16x2xf32>
    %148 = arith.divf %144, %147 : vector<16x2xf32>
    %cst_54 = arith.constant dense<0xFF800000> : vector<16xf32>
    %149 = vector.multi_reduction <maximumf>, %148, %cst_54 [1] : vector<16x2xf32> to vector<16xf32>
    %150 = vector.shape_cast %149 : vector<16xf32> to vector<16x1xf32>
    %151 = vector.extract_strided_slice %148 {offsets = [0, 0], sizes = [16, 1], strides = [1, 1]} : vector<16x2xf32> to vector<16x1xf32>
    %152 = vector.extract_strided_slice %148 {offsets = [0, 1], sizes = [16, 1], strides = [1, 1]} : vector<16x2xf32> to vector<16x1xf32>
    %153 = arith.cmpf oge, %151, %152 : vector<16x1xf32>
    %c0_55 = arith.constant 0 : index
    %c0_56 = arith.constant 0 : index
    %c0_57 = arith.constant 0 : index
    %154 = vector.load %arg10[%c0_55, %c0_56, %c0_57] : memref<2x32x128xf32, #tpu.memory_space<vmem>>, vector<1x32x128xf32>
    %155 = vector.shape_cast %154 : vector<1x32x128xf32> to vector<32x128xf32>
    %cst_58 = arith.constant dense<0.000000e+00> : vector<16x128xf32>
    %156 = tpu.matmul %132, %155, %cst_58 {dimension_numbers = #tpu.dot_dimension_numbers<[1], [0], [0], [1], [0, 0, 1, 1], [], []>} : vector<16x32xf32>, vector<32x128xf32>, vector<16x128xf32> -> vector<16x128xf32>
    %c0_59 = arith.constant 0 : index
    %c0_60 = arith.constant 0 : index
    %c0_61 = arith.constant 0 : index
    %157 = vector.load %arg11[%c0_59, %c0_60, %c0_61] : memref<2x1x128xf32, #tpu.memory_space<vmem>>, vector<1x1x128xf32>
    %158 = vector.shape_cast %157 : vector<1x1x128xf32> to vector<1x128xf32>
    %159 = vector.broadcast %158 : vector<1x128xf32> to vector<16x128xf32>
    %160 = arith.addf %156, %159 : vector<16x128xf32>
    %161 = arith.mulf %160, %160 : vector<16x128xf32>
    %162 = arith.mulf %160, %161 : vector<16x128xf32>
    %cst_62 = arith.constant 4.471500e-02 : f32
    %163 = vector.broadcast %cst_62 : f32 to vector<16x128xf32>
    %164 = arith.mulf %163, %162 : vector<16x128xf32>
    %165 = arith.addf %160, %164 : vector<16x128xf32>
    %cst_63 = arith.constant 0.797884583 : f32
    %166 = vector.broadcast %cst_63 : f32 to vector<16x128xf32>
    %167 = arith.mulf %166, %165 : vector<16x128xf32>
    %168 = math.tanh %167 : vector<16x128xf32>
    %cst_64 = arith.constant 1.000000e+00 : f32
    %169 = vector.broadcast %cst_64 : f32 to vector<16x128xf32>
    %170 = arith.addf %169, %168 : vector<16x128xf32>
    %cst_65 = arith.constant 5.000000e-01 : f32
    %171 = vector.broadcast %cst_65 : f32 to vector<16x128xf32>
    %172 = arith.mulf %171, %170 : vector<16x128xf32>
    %173 = arith.mulf %160, %172 : vector<16x128xf32>
    %c0_66 = arith.constant 0 : index
    %c0_67 = arith.constant 0 : index
    %c0_68 = arith.constant 0 : index
    %174 = vector.load %arg12[%c0_66, %c0_67, %c0_68] : memref<2x128x64xf32, #tpu.memory_space<vmem>>, vector<1x128x64xf32>
    %175 = vector.shape_cast %174 : vector<1x128x64xf32> to vector<128x64xf32>
    %cst_69 = arith.constant dense<0.000000e+00> : vector<16x64xf32>
    %176 = tpu.matmul %173, %175, %cst_69 {dimension_numbers = #tpu.dot_dimension_numbers<[1], [0], [0], [1], [0, 0, 1, 1], [], []>} : vector<16x128xf32>, vector<128x64xf32>, vector<16x64xf32> -> vector<16x64xf32>
    %c0_70 = arith.constant 0 : index
    %c0_71 = arith.constant 0 : index
    %c0_72 = arith.constant 0 : index
    %177 = vector.load %arg13[%c0_70, %c0_71, %c0_72] : memref<2x1x64xf32, #tpu.memory_space<vmem>>, vector<1x1x64xf32>
    %178 = vector.shape_cast %177 : vector<1x1x64xf32> to vector<1x64xf32>
    %179 = vector.broadcast %178 : vector<1x64xf32> to vector<16x64xf32>
    %180 = arith.addf %176, %179 : vector<16x64xf32>
    %181 = vector.extract_strided_slice %180 {offsets = [0, 0], sizes = [16, 32], strides = [1, 1]} : vector<16x64xf32> to vector<16x32xf32>
    %182 = vector.extract_strided_slice %180 {offsets = [0, 32], sizes = [16, 32], strides = [1, 1]} : vector<16x64xf32> to vector<16x32xf32>
    %183 = vector.shape_cast %153 : vector<16x1xi1> to vector<16x1xi1>
    %184 = vector.broadcast %183 : vector<16x1xi1> to vector<16x32xi1>
    %185 = arith.select %184, %181, %182 : vector<16x32xi1>, vector<16x32xf32>
    %186 = vector.broadcast %150 : vector<16x1xf32> to vector<16x32xf32>
    %187 = arith.mulf %185, %186 : vector<16x32xf32>
    %188 = arith.addf %132, %187 : vector<16x32xf32>
    %c0_73 = arith.constant 0 : index
    %c0_74 = arith.constant 0 : index
    %c0_75 = arith.constant 0 : index
    %189 = vector.load %arg14[%c0_73, %c0_74, %c0_75] : memref<2x1x32xf32, #tpu.memory_space<vmem>>, vector<1x1x32xf32>
    %190 = vector.shape_cast %189 : vector<1x1x32xf32> to vector<1x32xf32>
    %c0_76 = arith.constant 0 : index
    %c0_77 = arith.constant 0 : index
    %c0_78 = arith.constant 0 : index
    %191 = vector.load %arg15[%c0_76, %c0_77, %c0_78] : memref<2x1x32xf32, #tpu.memory_space<vmem>>, vector<1x1x32xf32>
    %192 = vector.shape_cast %191 : vector<1x1x32xf32> to vector<1x32xf32>
    %cst_79 = arith.constant dense<0.000000e+00> : vector<16xf32>
    %193 = vector.multi_reduction <add>, %188, %cst_79 [1] : vector<16x32xf32> to vector<16xf32>
    %194 = vector.shape_cast %193 : vector<16xf32> to vector<16x1xf32>
    %cst_80 = arith.constant 3.200000e+01 : f32
    %195 = vector.broadcast %cst_80 : f32 to vector<16x1xf32>
    %196 = arith.divf %194, %195 : vector<16x1xf32>
    %197 = vector.broadcast %196 : vector<16x1xf32> to vector<16x32xf32>
    %198 = arith.subf %188, %197 : vector<16x32xf32>
    %199 = arith.mulf %198, %198 : vector<16x32xf32>
    %cst_81 = arith.constant dense<0.000000e+00> : vector<16xf32>
    %200 = vector.multi_reduction <add>, %199, %cst_81 [1] : vector<16x32xf32> to vector<16xf32>
    %201 = vector.shape_cast %200 : vector<16xf32> to vector<16x1xf32>
    %cst_82 = arith.constant 3.200000e+01 : f32
    %202 = vector.broadcast %cst_82 : f32 to vector<16x1xf32>
    %203 = arith.divf %201, %202 : vector<16x1xf32>
    %204 = vector.broadcast %196 : vector<16x1xf32> to vector<16x32xf32>
    %205 = arith.subf %188, %204 : vector<16x32xf32>
    %cst_83 = arith.constant 9.99999996E-13 : f32
    %206 = vector.broadcast %cst_83 : f32 to vector<16x1xf32>
    %207 = arith.addf %203, %206 : vector<16x1xf32>
    %208 = math.rsqrt %207 : vector<16x1xf32>
    %209 = vector.broadcast %208 : vector<16x1xf32> to vector<16x32xf32>
    %210 = arith.mulf %205, %209 : vector<16x32xf32>
    %211 = vector.broadcast %190 : vector<1x32xf32> to vector<16x32xf32>
    %212 = arith.mulf %210, %211 : vector<16x32xf32>
    %213 = vector.broadcast %192 : vector<1x32xf32> to vector<16x32xf32>
    %214 = arith.addf %212, %213 : vector<16x32xf32>
    %c1 = arith.constant 1 : index
    %c0_84 = arith.constant 0 : index
    %c0_85 = arith.constant 0 : index
    %215 = vector.load %arg4[%c1, %c0_84, %c0_85] : memref<2x32x192xf32, #tpu.memory_space<vmem>>, vector<1x32x192xf32>
    %216 = vector.shape_cast %215 : vector<1x32x192xf32> to vector<32x192xf32>
    %cst_86 = arith.constant dense<0.000000e+00> : vector<16x192xf32>
    %217 = tpu.matmul %214, %216, %cst_86 {dimension_numbers = #tpu.dot_dimension_numbers<[1], [0], [0], [1], [0, 0, 1, 1], [], []>} : vector<16x32xf32>, vector<32x192xf32>, vector<16x192xf32> -> vector<16x192xf32>
    %c1_87 = arith.constant 1 : index
    %c0_88 = arith.constant 0 : index
    %c0_89 = arith.constant 0 : index
    %218 = vector.load %arg5[%c1_87, %c0_88, %c0_89] : memref<2x1x192xf32, #tpu.memory_space<vmem>>, vector<1x1x192xf32>
    %219 = vector.shape_cast %218 : vector<1x1x192xf32> to vector<1x192xf32>
    %220 = vector.broadcast %219 : vector<1x192xf32> to vector<16x192xf32>
    %221 = arith.addf %217, %220 : vector<16x192xf32>
    %222 = vector.extract_strided_slice %221 {offsets = [0, 0], sizes = [16, 64], strides = [1, 1]} : vector<16x192xf32> to vector<16x64xf32>
    %223 = vector.extract_strided_slice %221 {offsets = [0, 64], sizes = [16, 64], strides = [1, 1]} : vector<16x192xf32> to vector<16x64xf32>
    %224 = vector.extract_strided_slice %221 {offsets = [0, 128], sizes = [16, 64], strides = [1, 1]} : vector<16x192xf32> to vector<16x64xf32>
    %225 = vector.extract_strided_slice %222 {offsets = [0, 0], sizes = [16, 16], strides = [1, 1]} : vector<16x64xf32> to vector<16x16xf32>
    %226 = vector.shape_cast %225 : vector<16x16xf32> to vector<2x8x16xf32>
    %227 = vector.extract_strided_slice %223 {offsets = [0, 0], sizes = [16, 16], strides = [1, 1]} : vector<16x64xf32> to vector<16x16xf32>
    %228 = vector.shape_cast %227 : vector<16x16xf32> to vector<2x8x16xf32>
    %229 = vector.extract_strided_slice %224 {offsets = [0, 0], sizes = [16, 16], strides = [1, 1]} : vector<16x64xf32> to vector<16x16xf32>
    %230 = vector.shape_cast %229 : vector<16x16xf32> to vector<2x8x16xf32>
    "tpu.trace_start"() <{level = 10 : i32, message = "bqd,bkd->bqk"}> : () -> ()
    %cst_90 = arith.constant dense<0.000000e+00> : vector<2x8x8xf32>
    %231 = tpu.matmul %226, %228, %cst_90 {dimension_numbers = #tpu.dot_dimension_numbers<[2], [2], [1], [1], [0, 0, 0, 1, 1, 1], [0], [0]>} : vector<2x8x16xf32>, vector<2x8x16xf32>, vector<2x8x8xf32> -> vector<2x8x8xf32>
    "tpu.trace_stop"() : () -> ()
    %cst_91 = arith.constant 2.500000e-01 : f32
    %232 = vector.broadcast %cst_91 : f32 to vector<2x8x8xf32>
    %233 = arith.mulf %231, %232 : vector<2x8x8xf32>
    %234 = vector.broadcast %26 : vector<2x1x8xf32> to vector<2x8x8xf32>
    %235 = arith.addf %233, %234 : vector<2x8x8xf32>
    %cst_92 = arith.constant dense<0xFF800000> : vector<2x8xf32>
    %236 = vector.multi_reduction <maximumf>, %235, %cst_92 [2] : vector<2x8x8xf32> to vector<2x8xf32>
    %237 = vector.shape_cast %236 : vector<2x8xf32> to vector<2x8x1xf32>
    %238 = vector.broadcast %237 : vector<2x8x1xf32> to vector<2x8x8xf32>
    %239 = arith.subf %235, %238 : vector<2x8x8xf32>
    %240 = math.exp %239 : vector<2x8x8xf32>
    %cst_93 = arith.constant dense<0.000000e+00> : vector<2x8xf32>
    %241 = vector.multi_reduction <add>, %240, %cst_93 [2] : vector<2x8x8xf32> to vector<2x8xf32>
    %242 = vector.shape_cast %241 : vector<2x8xf32> to vector<2x8x1xf32>
    %243 = vector.broadcast %242 : vector<2x8x1xf32> to vector<2x8x8xf32>
    %244 = arith.divf %240, %243 : vector<2x8x8xf32>
    "tpu.trace_start"() <{level = 10 : i32, message = "bqk,bkd->bqd"}> : () -> ()
    %cst_94 = arith.constant dense<0.000000e+00> : vector<2x8x16xf32>
    %245 = tpu.matmul %244, %230, %cst_94 {dimension_numbers = #tpu.dot_dimension_numbers<[2], [1], [1], [2], [0, 0, 0, 1, 1, 2], [0], [0]>} : vector<2x8x8xf32>, vector<2x8x16xf32>, vector<2x8x16xf32> -> vector<2x8x16xf32>
    "tpu.trace_stop"() : () -> ()
    %246 = vector.shape_cast %245 : vector<2x8x16xf32> to vector<16x16xf32>
    %247 = vector.extract_strided_slice %222 {offsets = [0, 16], sizes = [16, 16], strides = [1, 1]} : vector<16x64xf32> to vector<16x16xf32>
    %248 = vector.shape_cast %247 : vector<16x16xf32> to vector<2x8x16xf32>
    %249 = vector.extract_strided_slice %223 {offsets = [0, 16], sizes = [16, 16], strides = [1, 1]} : vector<16x64xf32> to vector<16x16xf32>
    %250 = vector.shape_cast %249 : vector<16x16xf32> to vector<2x8x16xf32>
    %251 = vector.extract_strided_slice %224 {offsets = [0, 16], sizes = [16, 16], strides = [1, 1]} : vector<16x64xf32> to vector<16x16xf32>
    %252 = vector.shape_cast %251 : vector<16x16xf32> to vector<2x8x16xf32>
    "tpu.trace_start"() <{level = 10 : i32, message = "bqd,bkd->bqk"}> : () -> ()
    %cst_95 = arith.constant dense<0.000000e+00> : vector<2x8x8xf32>
    %253 = tpu.matmul %248, %250, %cst_95 {dimension_numbers = #tpu.dot_dimension_numbers<[2], [2], [1], [1], [0, 0, 0, 1, 1, 1], [0], [0]>} : vector<2x8x16xf32>, vector<2x8x16xf32>, vector<2x8x8xf32> -> vector<2x8x8xf32>
    "tpu.trace_stop"() : () -> ()
    %cst_96 = arith.constant 2.500000e-01 : f32
    %254 = vector.broadcast %cst_96 : f32 to vector<2x8x8xf32>
    %255 = arith.mulf %253, %254 : vector<2x8x8xf32>
    %256 = vector.broadcast %26 : vector<2x1x8xf32> to vector<2x8x8xf32>
    %257 = arith.addf %255, %256 : vector<2x8x8xf32>
    %cst_97 = arith.constant dense<0xFF800000> : vector<2x8xf32>
    %258 = vector.multi_reduction <maximumf>, %257, %cst_97 [2] : vector<2x8x8xf32> to vector<2x8xf32>
    %259 = vector.shape_cast %258 : vector<2x8xf32> to vector<2x8x1xf32>
    %260 = vector.broadcast %259 : vector<2x8x1xf32> to vector<2x8x8xf32>
    %261 = arith.subf %257, %260 : vector<2x8x8xf32>
    %262 = math.exp %261 : vector<2x8x8xf32>
    %cst_98 = arith.constant dense<0.000000e+00> : vector<2x8xf32>
    %263 = vector.multi_reduction <add>, %262, %cst_98 [2] : vector<2x8x8xf32> to vector<2x8xf32>
    %264 = vector.shape_cast %263 : vector<2x8xf32> to vector<2x8x1xf32>
    %265 = vector.broadcast %264 : vector<2x8x1xf32> to vector<2x8x8xf32>
    %266 = arith.divf %262, %265 : vector<2x8x8xf32>
    "tpu.trace_start"() <{level = 10 : i32, message = "bqk,bkd->bqd"}> : () -> ()
    %cst_99 = arith.constant dense<0.000000e+00> : vector<2x8x16xf32>
    %267 = tpu.matmul %266, %252, %cst_99 {dimension_numbers = #tpu.dot_dimension_numbers<[2], [1], [1], [2], [0, 0, 0, 1, 1, 2], [0], [0]>} : vector<2x8x8xf32>, vector<2x8x16xf32>, vector<2x8x16xf32> -> vector<2x8x16xf32>
    "tpu.trace_stop"() : () -> ()
    %268 = vector.shape_cast %267 : vector<2x8x16xf32> to vector<16x16xf32>
    %269 = vector.extract_strided_slice %222 {offsets = [0, 32], sizes = [16, 16], strides = [1, 1]} : vector<16x64xf32> to vector<16x16xf32>
    %270 = vector.shape_cast %269 : vector<16x16xf32> to vector<2x8x16xf32>
    %271 = vector.extract_strided_slice %223 {offsets = [0, 32], sizes = [16, 16], strides = [1, 1]} : vector<16x64xf32> to vector<16x16xf32>
    %272 = vector.shape_cast %271 : vector<16x16xf32> to vector<2x8x16xf32>
    %273 = vector.extract_strided_slice %224 {offsets = [0, 32], sizes = [16, 16], strides = [1, 1]} : vector<16x64xf32> to vector<16x16xf32>
    %274 = vector.shape_cast %273 : vector<16x16xf32> to vector<2x8x16xf32>
    "tpu.trace_start"() <{level = 10 : i32, message = "bqd,bkd->bqk"}> : () -> ()
    %cst_100 = arith.constant dense<0.000000e+00> : vector<2x8x8xf32>
    %275 = tpu.matmul %270, %272, %cst_100 {dimension_numbers = #tpu.dot_dimension_numbers<[2], [2], [1], [1], [0, 0, 0, 1, 1, 1], [0], [0]>} : vector<2x8x16xf32>, vector<2x8x16xf32>, vector<2x8x8xf32> -> vector<2x8x8xf32>
    "tpu.trace_stop"() : () -> ()
    %cst_101 = arith.constant 2.500000e-01 : f32
    %276 = vector.broadcast %cst_101 : f32 to vector<2x8x8xf32>
    %277 = arith.mulf %275, %276 : vector<2x8x8xf32>
    %278 = vector.broadcast %26 : vector<2x1x8xf32> to vector<2x8x8xf32>
    %279 = arith.addf %277, %278 : vector<2x8x8xf32>
    %cst_102 = arith.constant dense<0xFF800000> : vector<2x8xf32>
    %280 = vector.multi_reduction <maximumf>, %279, %cst_102 [2] : vector<2x8x8xf32> to vector<2x8xf32>
    %281 = vector.shape_cast %280 : vector<2x8xf32> to vector<2x8x1xf32>
    %282 = vector.broadcast %281 : vector<2x8x1xf32> to vector<2x8x8xf32>
    %283 = arith.subf %279, %282 : vector<2x8x8xf32>
    %284 = math.exp %283 : vector<2x8x8xf32>
    %cst_103 = arith.constant dense<0.000000e+00> : vector<2x8xf32>
    %285 = vector.multi_reduction <add>, %284, %cst_103 [2] : vector<2x8x8xf32> to vector<2x8xf32>
    %286 = vector.shape_cast %285 : vector<2x8xf32> to vector<2x8x1xf32>
    %287 = vector.broadcast %286 : vector<2x8x1xf32> to vector<2x8x8xf32>
    %288 = arith.divf %284, %287 : vector<2x8x8xf32>
    "tpu.trace_start"() <{level = 10 : i32, message = "bqk,bkd->bqd"}> : () -> ()
    %cst_104 = arith.constant dense<0.000000e+00> : vector<2x8x16xf32>
    %289 = tpu.matmul %288, %274, %cst_104 {dimension_numbers = #tpu.dot_dimension_numbers<[2], [1], [1], [2], [0, 0, 0, 1, 1, 2], [0], [0]>} : vector<2x8x8xf32>, vector<2x8x16xf32>, vector<2x8x16xf32> -> vector<2x8x16xf32>
    "tpu.trace_stop"() : () -> ()
    %290 = vector.shape_cast %289 : vector<2x8x16xf32> to vector<16x16xf32>
    %291 = vector.extract_strided_slice %222 {offsets = [0, 48], sizes = [16, 16], strides = [1, 1]} : vector<16x64xf32> to vector<16x16xf32>
    %292 = vector.shape_cast %291 : vector<16x16xf32> to vector<2x8x16xf32>
    %293 = vector.extract_strided_slice %223 {offsets = [0, 48], sizes = [16, 16], strides = [1, 1]} : vector<16x64xf32> to vector<16x16xf32>
    %294 = vector.shape_cast %293 : vector<16x16xf32> to vector<2x8x16xf32>
    %295 = vector.extract_strided_slice %224 {offsets = [0, 48], sizes = [16, 16], strides = [1, 1]} : vector<16x64xf32> to vector<16x16xf32>
    %296 = vector.shape_cast %295 : vector<16x16xf32> to vector<2x8x16xf32>
    "tpu.trace_start"() <{level = 10 : i32, message = "bqd,bkd->bqk"}> : () -> ()
    %cst_105 = arith.constant dense<0.000000e+00> : vector<2x8x8xf32>
    %297 = tpu.matmul %292, %294, %cst_105 {dimension_numbers = #tpu.dot_dimension_numbers<[2], [2], [1], [1], [0, 0, 0, 1, 1, 1], [0], [0]>} : vector<2x8x16xf32>, vector<2x8x16xf32>, vector<2x8x8xf32> -> vector<2x8x8xf32>
    "tpu.trace_stop"() : () -> ()
    %cst_106 = arith.constant 2.500000e-01 : f32
    %298 = vector.broadcast %cst_106 : f32 to vector<2x8x8xf32>
    %299 = arith.mulf %297, %298 : vector<2x8x8xf32>
    %300 = vector.broadcast %26 : vector<2x1x8xf32> to vector<2x8x8xf32>
    %301 = arith.addf %299, %300 : vector<2x8x8xf32>
    %cst_107 = arith.constant dense<0xFF800000> : vector<2x8xf32>
    %302 = vector.multi_reduction <maximumf>, %301, %cst_107 [2] : vector<2x8x8xf32> to vector<2x8xf32>
    %303 = vector.shape_cast %302 : vector<2x8xf32> to vector<2x8x1xf32>
    %304 = vector.broadcast %303 : vector<2x8x1xf32> to vector<2x8x8xf32>
    %305 = arith.subf %301, %304 : vector<2x8x8xf32>
    %306 = math.exp %305 : vector<2x8x8xf32>
    %cst_108 = arith.constant dense<0.000000e+00> : vector<2x8xf32>
    %307 = vector.multi_reduction <add>, %306, %cst_108 [2] : vector<2x8x8xf32> to vector<2x8xf32>
    %308 = vector.shape_cast %307 : vector<2x8xf32> to vector<2x8x1xf32>
    %309 = vector.broadcast %308 : vector<2x8x1xf32> to vector<2x8x8xf32>
    %310 = arith.divf %306, %309 : vector<2x8x8xf32>
    "tpu.trace_start"() <{level = 10 : i32, message = "bqk,bkd->bqd"}> : () -> ()
    %cst_109 = arith.constant dense<0.000000e+00> : vector<2x8x16xf32>
    %311 = tpu.matmul %310, %296, %cst_109 {dimension_numbers = #tpu.dot_dimension_numbers<[2], [1], [1], [2], [0, 0, 0, 1, 1, 2], [0], [0]>} : vector<2x8x8xf32>, vector<2x8x16xf32>, vector<2x8x16xf32> -> vector<2x8x16xf32>
    "tpu.trace_stop"() : () -> ()
    %312 = vector.shape_cast %311 : vector<2x8x16xf32> to vector<16x16xf32>
    %313 = tpu.concatenate %246, %268, %290, %312 in 1 : vector<16x16xf32>, vector<16x16xf32>, vector<16x16xf32>, vector<16x16xf32> -> vector<16x64xf32>
    %c1_110 = arith.constant 1 : index
    %c0_111 = arith.constant 0 : index
    %c0_112 = arith.constant 0 : index
    %314 = vector.load %arg6[%c1_110, %c0_111, %c0_112] : memref<2x64x32xf32, #tpu.memory_space<vmem>>, vector<1x64x32xf32>
    %315 = vector.shape_cast %314 : vector<1x64x32xf32> to vector<64x32xf32>
    %cst_113 = arith.constant dense<0.000000e+00> : vector<16x32xf32>
    %316 = tpu.matmul %313, %315, %cst_113 {dimension_numbers = #tpu.dot_dimension_numbers<[1], [0], [0], [1], [0, 0, 1, 1], [], []>} : vector<16x64xf32>, vector<64x32xf32>, vector<16x32xf32> -> vector<16x32xf32>
    %c1_114 = arith.constant 1 : index
    %c0_115 = arith.constant 0 : index
    %c0_116 = arith.constant 0 : index
    %317 = vector.load %arg7[%c1_114, %c0_115, %c0_116] : memref<2x1x32xf32, #tpu.memory_space<vmem>>, vector<1x1x32xf32>
    %318 = vector.shape_cast %317 : vector<1x1x32xf32> to vector<1x32xf32>
    %319 = vector.broadcast %318 : vector<1x32xf32> to vector<16x32xf32>
    %320 = arith.addf %316, %319 : vector<16x32xf32>
    %c1_117 = arith.constant 1 : index
    %c0_118 = arith.constant 0 : index
    %c0_119 = arith.constant 0 : index
    %321 = vector.load %arg8[%c1_117, %c0_118, %c0_119] : memref<2x32x2xf32, #tpu.memory_space<vmem>>, vector<1x32x2xf32>
    %322 = vector.shape_cast %321 : vector<1x32x2xf32> to vector<32x2xf32>
    %cst_120 = arith.constant dense<0.000000e+00> : vector<16x2xf32>
    %323 = tpu.matmul %320, %322, %cst_120 {dimension_numbers = #tpu.dot_dimension_numbers<[1], [0], [0], [1], [0, 0, 1, 1], [], []>} : vector<16x32xf32>, vector<32x2xf32>, vector<16x2xf32> -> vector<16x2xf32>
    %c1_121 = arith.constant 1 : index
    %c0_122 = arith.constant 0 : index
    %c0_123 = arith.constant 0 : index
    %324 = vector.load %arg9[%c1_121, %c0_122, %c0_123] : memref<2x1x2xf32, #tpu.memory_space<vmem>>, vector<1x1x2xf32>
    %325 = vector.shape_cast %324 : vector<1x1x2xf32> to vector<1x2xf32>
    %326 = vector.broadcast %325 : vector<1x2xf32> to vector<16x2xf32>
    %327 = arith.addf %323, %326 : vector<16x2xf32>
    %cst_124 = arith.constant dense<0xFF800000> : vector<16xf32>
    %328 = vector.multi_reduction <maximumf>, %327, %cst_124 [1] : vector<16x2xf32> to vector<16xf32>
    %329 = vector.shape_cast %328 : vector<16xf32> to vector<16x1xf32>
    %330 = vector.broadcast %329 : vector<16x1xf32> to vector<16x2xf32>
    %331 = arith.subf %327, %330 : vector<16x2xf32>
    %332 = math.exp %331 : vector<16x2xf32>
    %cst_125 = arith.constant dense<0.000000e+00> : vector<16xf32>
    %333 = vector.multi_reduction <add>, %332, %cst_125 [1] : vector<16x2xf32> to vector<16xf32>
    %334 = vector.shape_cast %333 : vector<16xf32> to vector<16x1xf32>
    %335 = vector.broadcast %334 : vector<16x1xf32> to vector<16x2xf32>
    %336 = arith.divf %332, %335 : vector<16x2xf32>
    %cst_126 = arith.constant dense<0xFF800000> : vector<16xf32>
    %337 = vector.multi_reduction <maximumf>, %336, %cst_126 [1] : vector<16x2xf32> to vector<16xf32>
    %338 = vector.shape_cast %337 : vector<16xf32> to vector<16x1xf32>
    %339 = vector.extract_strided_slice %336 {offsets = [0, 0], sizes = [16, 1], strides = [1, 1]} : vector<16x2xf32> to vector<16x1xf32>
    %340 = vector.extract_strided_slice %336 {offsets = [0, 1], sizes = [16, 1], strides = [1, 1]} : vector<16x2xf32> to vector<16x1xf32>
    %341 = arith.cmpf oge, %339, %340 : vector<16x1xf32>
    %c1_127 = arith.constant 1 : index
    %c0_128 = arith.constant 0 : index
    %c0_129 = arith.constant 0 : index
    %342 = vector.load %arg10[%c1_127, %c0_128, %c0_129] : memref<2x32x128xf32, #tpu.memory_space<vmem>>, vector<1x32x128xf32>
    %343 = vector.shape_cast %342 : vector<1x32x128xf32> to vector<32x128xf32>
    %cst_130 = arith.constant dense<0.000000e+00> : vector<16x128xf32>
    %344 = tpu.matmul %320, %343, %cst_130 {dimension_numbers = #tpu.dot_dimension_numbers<[1], [0], [0], [1], [0, 0, 1, 1], [], []>} : vector<16x32xf32>, vector<32x128xf32>, vector<16x128xf32> -> vector<16x128xf32>
    %c1_131 = arith.constant 1 : index
    %c0_132 = arith.constant 0 : index
    %c0_133 = arith.constant 0 : index
    %345 = vector.load %arg11[%c1_131, %c0_132, %c0_133] : memref<2x1x128xf32, #tpu.memory_space<vmem>>, vector<1x1x128xf32>
    %346 = vector.shape_cast %345 : vector<1x1x128xf32> to vector<1x128xf32>
    %347 = vector.broadcast %346 : vector<1x128xf32> to vector<16x128xf32>
    %348 = arith.addf %344, %347 : vector<16x128xf32>
    %349 = arith.mulf %348, %348 : vector<16x128xf32>
    %350 = arith.mulf %348, %349 : vector<16x128xf32>
    %cst_134 = arith.constant 4.471500e-02 : f32
    %351 = vector.broadcast %cst_134 : f32 to vector<16x128xf32>
    %352 = arith.mulf %351, %350 : vector<16x128xf32>
    %353 = arith.addf %348, %352 : vector<16x128xf32>
    %cst_135 = arith.constant 0.797884583 : f32
    %354 = vector.broadcast %cst_135 : f32 to vector<16x128xf32>
    %355 = arith.mulf %354, %353 : vector<16x128xf32>
    %356 = math.tanh %355 : vector<16x128xf32>
    %cst_136 = arith.constant 1.000000e+00 : f32
    %357 = vector.broadcast %cst_136 : f32 to vector<16x128xf32>
    %358 = arith.addf %357, %356 : vector<16x128xf32>
    %cst_137 = arith.constant 5.000000e-01 : f32
    %359 = vector.broadcast %cst_137 : f32 to vector<16x128xf32>
    %360 = arith.mulf %359, %358 : vector<16x128xf32>
    %361 = arith.mulf %348, %360 : vector<16x128xf32>
    %c1_138 = arith.constant 1 : index
    %c0_139 = arith.constant 0 : index
    %c0_140 = arith.constant 0 : index
    %362 = vector.load %arg12[%c1_138, %c0_139, %c0_140] : memref<2x128x64xf32, #tpu.memory_space<vmem>>, vector<1x128x64xf32>
    %363 = vector.shape_cast %362 : vector<1x128x64xf32> to vector<128x64xf32>
    %cst_141 = arith.constant dense<0.000000e+00> : vector<16x64xf32>
    %364 = tpu.matmul %361, %363, %cst_141 {dimension_numbers = #tpu.dot_dimension_numbers<[1], [0], [0], [1], [0, 0, 1, 1], [], []>} : vector<16x128xf32>, vector<128x64xf32>, vector<16x64xf32> -> vector<16x64xf32>
    %c1_142 = arith.constant 1 : index
    %c0_143 = arith.constant 0 : index
    %c0_144 = arith.constant 0 : index
    %365 = vector.load %arg13[%c1_142, %c0_143, %c0_144] : memref<2x1x64xf32, #tpu.memory_space<vmem>>, vector<1x1x64xf32>
    %366 = vector.shape_cast %365 : vector<1x1x64xf32> to vector<1x64xf32>
    %367 = vector.broadcast %366 : vector<1x64xf32> to vector<16x64xf32>
    %368 = arith.addf %364, %367 : vector<16x64xf32>
    %369 = vector.extract_strided_slice %368 {offsets = [0, 0], sizes = [16, 32], strides = [1, 1]} : vector<16x64xf32> to vector<16x32xf32>
    %370 = vector.extract_strided_slice %368 {offsets = [0, 32], sizes = [16, 32], strides = [1, 1]} : vector<16x64xf32> to vector<16x32xf32>
    %371 = vector.shape_cast %341 : vector<16x1xi1> to vector<16x1xi1>
    %372 = vector.broadcast %371 : vector<16x1xi1> to vector<16x32xi1>
    %373 = arith.select %372, %369, %370 : vector<16x32xi1>, vector<16x32xf32>
    %374 = vector.broadcast %338 : vector<16x1xf32> to vector<16x32xf32>
    %375 = arith.mulf %373, %374 : vector<16x32xf32>
    %376 = arith.addf %320, %375 : vector<16x32xf32>
    %c1_145 = arith.constant 1 : index
    %c0_146 = arith.constant 0 : index
    %c0_147 = arith.constant 0 : index
    %377 = vector.load %arg14[%c1_145, %c0_146, %c0_147] : memref<2x1x32xf32, #tpu.memory_space<vmem>>, vector<1x1x32xf32>
    %378 = vector.shape_cast %377 : vector<1x1x32xf32> to vector<1x32xf32>
    %c1_148 = arith.constant 1 : index
    %c0_149 = arith.constant 0 : index
    %c0_150 = arith.constant 0 : index
    %379 = vector.load %arg15[%c1_148, %c0_149, %c0_150] : memref<2x1x32xf32, #tpu.memory_space<vmem>>, vector<1x1x32xf32>
    %380 = vector.shape_cast %379 : vector<1x1x32xf32> to vector<1x32xf32>
    %cst_151 = arith.constant dense<0.000000e+00> : vector<16xf32>
    %381 = vector.multi_reduction <add>, %376, %cst_151 [1] : vector<16x32xf32> to vector<16xf32>
    %382 = vector.shape_cast %381 : vector<16xf32> to vector<16x1xf32>
    %cst_152 = arith.constant 3.200000e+01 : f32
    %383 = vector.broadcast %cst_152 : f32 to vector<16x1xf32>
    %384 = arith.divf %382, %383 : vector<16x1xf32>
    %385 = vector.broadcast %384 : vector<16x1xf32> to vector<16x32xf32>
    %386 = arith.subf %376, %385 : vector<16x32xf32>
    %387 = arith.mulf %386, %386 : vector<16x32xf32>
    %cst_153 = arith.constant dense<0.000000e+00> : vector<16xf32>
    %388 = vector.multi_reduction <add>, %387, %cst_153 [1] : vector<16x32xf32> to vector<16xf32>
    %389 = vector.shape_cast %388 : vector<16xf32> to vector<16x1xf32>
    %cst_154 = arith.constant 3.200000e+01 : f32
    %390 = vector.broadcast %cst_154 : f32 to vector<16x1xf32>
    %391 = arith.divf %389, %390 : vector<16x1xf32>
    %392 = vector.broadcast %384 : vector<16x1xf32> to vector<16x32xf32>
    %393 = arith.subf %376, %392 : vector<16x32xf32>
    %cst_155 = arith.constant 9.99999996E-13 : f32
    %394 = vector.broadcast %cst_155 : f32 to vector<16x1xf32>
    %395 = arith.addf %391, %394 : vector<16x1xf32>
    %396 = math.rsqrt %395 : vector<16x1xf32>
    %397 = vector.broadcast %396 : vector<16x1xf32> to vector<16x32xf32>
    %398 = arith.mulf %393, %397 : vector<16x32xf32>
    %399 = vector.broadcast %378 : vector<1x32xf32> to vector<16x32xf32>
    %400 = arith.mulf %398, %399 : vector<16x32xf32>
    %401 = vector.broadcast %380 : vector<1x32xf32> to vector<16x32xf32>
    %402 = arith.addf %400, %401 : vector<16x32xf32>
    %c0_156 = arith.constant 0 : index
    %c0_157 = arith.constant 0 : index
    %403 = vector.load %arg16[%c0_156, %c0_157] : memref<16x32xf32, #tpu.memory_space<vmem>>, vector<16x32xf32>
    tpu.vector_store %arg16[%c0_156, %c0_157], %402 {strides = array<i32>} : memref<16x32xf32, #tpu.memory_space<vmem>>, vector<16x32xf32>,
    return
  }
}

</mosaic_0001>

<llo_original>
// kernel: model_forward.1
$region0: #{model_forward.1}
  #allocation0 [shape = 'u32[]', space=smem, size = 0x4, offset = 0x4, fixed_abs, tag = 'smem constant byte address 0x4 - core index']
  #allocation1 [shape = 'u32[144,128]{1,0:T(1,128)}', space=vmem, size = 0x12000, scoped, tag = 'internal scratch']
  %s0 = inlined_call_operand.vmem [shape: f32[16,32], index: 0, kind: input, shape index: {}]
  %s1 = inlined_call_operand.vmem [shape: f32[2,8], index: 1, kind: input, shape index: {}]
  %s2 = inlined_call_operand.vmem [shape: f32[1,32], index: 2, kind: input, shape index: {}]
  %s3 = inlined_call_operand.vmem [shape: f32[1,32], index: 3, kind: input, shape index: {}]
  %s4 = inlined_call_operand.vmem [shape: f32[2,32,192], index: 4, kind: input, shape index: {}]
  %s5 = inlined_call_operand.vmem [shape: f32[2,1,192], index: 5, kind: input, shape index: {}]
  %s6 = inlined_call_operand.vmem [shape: f32[2,64,32], index: 6, kind: input, shape index: {}]
  %s7 = inlined_call_operand.vmem [shape: f32[2,1,32], index: 7, kind: input, shape index: {}]
  %s8 = inlined_call_operand.vmem [shape: f32[2,32,2], index: 8, kind: input, shape index: {}]
  %s9 = inlined_call_operand.vmem [shape: f32[2,1,2], index: 9, kind: input, shape index: {}]
  %s10 = inlined_call_operand.vmem [shape: f32[2,32,128], index: 10, kind: input, shape index: {}]
  %s11 = inlined_call_operand.vmem [shape: f32[2,1,128], index: 11, kind: input, shape index: {}]
  %s12 = inlined_call_operand.vmem [shape: f32[2,128,64], index: 12, kind: input, shape index: {}]
  %s13 = inlined_call_operand.vmem [shape: f32[2,1,64], index: 13, kind: input, shape index: {}]
  %s14 = inlined_call_operand.vmem [shape: f32[2,1,32], index: 14, kind: input, shape index: {}]
  %s15 = inlined_call_operand.vmem [shape: f32[2,1,32], index: 15, kind: input, shape index: {}]
  %s16 = inlined_call_operand.hbm [shape: f32[16,32], index: 16, kind: output, shape index: {}]
  %s17 = sld [smem:[#allocation0]]
  $region74: #{model_forward.1} parent=0
    _
  %s19 = ssub.s32 1, %s17
  %s20 = scalar_select 0, %s19, %s17
  $region1: #{model_forward.1} parent=0
    #allocation2 [shape = 'u8[8192]{0}', space=vmem, size = 0x2000, scoped, tag = 'output window, operand 0, single buffered']
    #allocation3 [shape = 's32[1]{0}', space=sflag, size = 0x4, scoped, tag = 'scoped memory for model_forward.1']
    %21 = vsyncpa [#allocation3], 0
    // Predicated region
    $region2: #{model_forward.1} parent=1 // pred_check
      _
    $region3: #{model_forward.1} parent=1 // pred_check_branch
      %23 = sbr.rel (0) target = $region5
    $region4: #{model_forward.1} parent=1 // pred_region
      _
    $region5: #{model_forward.1} parent=1 // pred_fallthru
      _
    // Predicated region
    $region6: #{model_forward.1} parent=1 // pred_check
      _
    $region7: #{model_forward.1} parent=1 // pred_check_branch
      %25 = sbr.rel (0) target = $region9
    $region8: #{model_forward.1} parent=1 // pred_region
      _
    $region9: #{model_forward.1} parent=1 // pred_fallthru
      _
    // Predicated region
    $region10: #{model_forward.1} parent=1 // pred_check
      _
    $region11: #{model_forward.1} parent=1 // pred_check_branch
      %27 = sbr.rel (0) target = $region13
    $region12: #{model_forward.1} parent=1 // pred_region
      _
    $region13: #{model_forward.1} parent=1 // pred_fallthru
      _
    // Predicated region
    $region14: #{model_forward.1} parent=1 // pred_check
      _
    $region15: #{model_forward.1} parent=1 // pred_check_branch
      %29 = sbr.rel (0) target = $region17
    $region16: #{model_forward.1} parent=1 // pred_region
      _
    $region17: #{model_forward.1} parent=1 // pred_fallthru
      _
    // Predicated region
    $region18: #{model_forward.1} parent=1 // pred_check
      _
    $region19: #{model_forward.1} parent=1 // pred_check_branch
      %31 = sbr.rel (0) target = $region21
    $region20: #{model_forward.1} parent=1 // pred_region
      _
    $region21: #{model_forward.1} parent=1 // pred_fallthru
      _
    // Predicated region
    $region22: #{model_forward.1} parent=1 // pred_check
      _
    $region23: #{model_forward.1} parent=1 // pred_check_branch
      %33 = sbr.rel (0) target = $region25
    $region24: #{model_forward.1} parent=1 // pred_region
      _
    $region25: #{model_forward.1} parent=1 // pred_fallthru
      _
    // Predicated region
    $region26: #{model_forward.1} parent=1 // pred_check
      _
    $region27: #{model_forward.1} parent=1 // pred_check_branch
      %35 = sbr.rel (0) target = $region29
    $region28: #{model_forward.1} parent=1 // pred_region
      _
    $region29: #{model_forward.1} parent=1 // pred_fallthru
      _
    // Predicated region
    $region30: #{model_forward.1} parent=1 // pred_check
      _
    $region31: #{model_forward.1} parent=1 // pred_check_branch
      %37 = sbr.rel (0) target = $region33
    $region32: #{model_forward.1} parent=1 // pred_region
      _
    $region33: #{model_forward.1} parent=1 // pred_fallthru
      _
    // Predicated region
    $region34: #{model_forward.1} parent=1 // pred_check
      _
    $region35: #{model_forward.1} parent=1 // pred_check_branch
      %39 = sbr.rel (0) target = $region37
    $region36: #{model_forward.1} parent=1 // pred_region
      _
    $region37: #{model_forward.1} parent=1 // pred_fallthru
      _
    // Predicated region
    $region38: #{model_forward.1} parent=1 // pred_check
      _
    $region39: #{model_forward.1} parent=1 // pred_check_branch
      %41 = sbr.rel (0) target = $region41
    $region40: #{model_forward.1} parent=1 // pred_region
      _
    $region41: #{model_forward.1} parent=1 // pred_fallthru
      _
    // Predicated region
    $region42: #{model_forward.1} parent=1 // pred_check
      _
    $region43: #{model_forward.1} parent=1 // pred_check_branch
      %43 = sbr.rel (0) target = $region45
    $region44: #{model_forward.1} parent=1 // pred_region
      _
    $region45: #{model_forward.1} parent=1 // pred_fallthru
      _
    // Predicated region
    $region46: #{model_forward.1} parent=1 // pred_check
      _
    $region47: #{model_forward.1} parent=1 // pred_check_branch
      %45 = sbr.rel (0) target = $region49
    $region48: #{model_forward.1} parent=1 // pred_region
      _
    $region49: #{model_forward.1} parent=1 // pred_fallthru
      _
    // Predicated region
    $region50: #{model_forward.1} parent=1 // pred_check
      _
    $region51: #{model_forward.1} parent=1 // pred_check_branch
      %47 = sbr.rel (0) target = $region53
    $region52: #{model_forward.1} parent=1 // pred_region
      _
    $region53: #{model_forward.1} parent=1 // pred_fallthru
      _
    // Predicated region
    $region54: #{model_forward.1} parent=1 // pred_check
      _
    $region55: #{model_forward.1} parent=1 // pred_check_branch
      %49 = sbr.rel (0) target = $region57
    $region56: #{model_forward.1} parent=1 // pred_region
      _
    $region57: #{model_forward.1} parent=1 // pred_fallthru
      _
    // Predicated region
    $region58: #{model_forward.1} parent=1 // pred_check
      _
    $region59: #{model_forward.1} parent=1 // pred_check_branch
      %51 = sbr.rel (0) target = $region61
    $region60: #{model_forward.1} parent=1 // pred_region
      _
    $region61: #{model_forward.1} parent=1 // pred_fallthru
      _
    // Predicated region
    $region62: #{model_forward.1} parent=1 // pred_check
      _
    $region63: #{model_forward.1} parent=1 // pred_check_branch
      %53 = sbr.rel (0) target = $region65
    $region64: #{model_forward.1} parent=1 // pred_region
      _
    $region65: #{model_forward.1} parent=1 // pred_fallthru
      _
    %v54 = vld [vmem:[%s0] sm:$0xff]
    %v55 = vld [vmem:[%s0 + $0x8] sm:$0xff]
    %v56 = vld [vmem:[%s2] sm:$0x1]
    %v57 = vld [vmem:[%s3] sm:$0x1]
    %vm58 = vcmask 261120
    %v59 = vsel %vm58, %v54, 0.0
    %60 = vadd.xlane.f32.xlu0 %v59
    %v61 = vpop.xlane.xlu0 %60
    %v62 = vsel %vm58, %v55, 0.0
    %63 = vadd.xlane.f32.xlu0 %v62
    %v64 = vpop.xlane.xlu0 %63
    %v65 = vrcp.pop 32.0
    %v66 = vmul.f32 %v61, %v65
    %v67 = vmul.f32 %v64, %v65
    %v68 = vsub.f32 %v54, %v66
    %v69 = vsub.f32 %v55, %v67
    %v70 = vmul.f32 %v68, %v68
    %v71 = vmul.f32 %v69, %v69
    %v72 = vsel %vm58, %v70, 0.0
    %73 = vadd.xlane.f32.xlu0 %v72
    %v74 = vpop.xlane.xlu0 %73
    %v75 = vsel %vm58, %v71, 0.0
    %76 = vadd.xlane.f32.xlu0 %v75
    %v77 = vpop.xlane.xlu0 %76
    %v78 = vmul.f32 %v74, %v65
    %v79 = vmul.f32 %v77, %v65
    %v80 = vadd.f32 %v78, 1e-12
    %v81 = vadd.f32 %v79, 1e-12
    %v82 = vrsqrt.pop %v80
    %v83 = vrsqrt.pop %v81
    %v84 = vmul.f32 %v68, %v82
    %v85 = vmul.f32 %v69, %v83
    %v87 = vlaneseq
    %v88 = vshrl.u32 %v87, 7
    %v89 = vsub.s32 0, %v88
    %v90 = vrot.slane %v56, %v89
    %v92 = vmul.f32 %v84, %v90
    %v93 = vmul.f32 %v85, %v90
    %v95 = vlaneseq
    %v96 = vshrl.u32 %v95, 7
    %v97 = vsub.s32 0, %v96
    %v98 = vrot.slane %v57, %v97
    %v100 = vadd.f32 %v92, %v98
    %v101 = vadd.f32 %v93, %v98
    %v102 = vld [vmem:[%s1] sm:$0x3]
    %v105 = vunpack.c.l.s4 1966171168
    %v106 = vunpack.c.0.s8 %v105
    %v107 = vlaneseq
    %v108 = vshrl.u32 %v107, 7
    %v109 = vsub.s32 %v106, %v108
    %v110 = vrot.slane %v102, %v109
    %v111 = vcombine.high %v110, %v110
    %v113 = vunpack.c.l.s4 1966171168
    %v114 = vunpack.c.0.s8 %v113
    %v115 = vlaneseq
    %v116 = vshrl.u32 %v115, 7
    %v117 = vsub.s32 %v114, %v116
    %v118 = vrot.slane %v110, %v117
    %v120 = vunpack.c.l.s4 1966171168
    %v121 = vunpack.c.0.s8 %v120
    %v122 = vlaneseq
    %v123 = vshrl.u32 %v122, 7
    %v124 = vsub.s32 %v121, %v123
    %v125 = vrot.slane %v111, %v124
    %v126 = vld [vmem:[%s4] sm:$0xff]
    %v127 = vld [vmem:[%s4 + $0x8] sm:$0xff]
    %v128 = vld [vmem:[%s4 + $0x10] sm:$0xff]
    %v129 = vld [vmem:[%s4 + $0x18] sm:$0xff]
    %v130 = vld [vmem:[%s4 + $0x20] sm:$0xff]
    %v131 = vld [vmem:[%s4 + $0x28] sm:$0xff]
    %v132 = vld [vmem:[%s4 + $0x30] sm:$0xff]
    %v133 = vld [vmem:[%s4 + $0x38] sm:$0xff]
    %v134 = vld [vmem:[%s5] sm:$0x3]
    %v136 = vlaneseq
    %v137 = vshrl.u32 %v136, 7
    %v138 = vsub.s32 0, %v137
    %v139 = vrot.slane %v134, %v138
    %v140 = vlaneseq
    %v141 = vshrl.u32 %v140, 7
    %v142 = vsub.s32 1, %v141
    %v143 = vrot.slane %v134, %v142
    %v147 = vsel %vm58, %v100, 0
    %v150 = vsel %vm58, %v101, 0
    %152 = vmatprep.subr.mxu0 0.0
    %153 = vmatpush1.msra.mxu0 0.0
    %154 = vmatprep.subr.mxu0 0.0
    %155 = vmatpush1.msra.mxu0 0.0
    %156 = vmatprep.subr.mxu0 0.0
    %157 = vmatpush1.msra.mxu0 0.0
    %158 = vmatprep.subr.mxu0 0.0
    %159 = vmatpush1.msra.mxu0 0.0
    %160 = vmatprep.subr.mxu0 0.0
    %161 = vmatpush1.msra.mxu0 0.0
    %162 = vmatprep.subr.mxu0 0.0
    %163 = vmatpush1.msra.mxu0 0.0
    %164 = vmatprep.subr.mxu0 0.0
    %165 = vmatpush1.msra.mxu0 0.0
    %166 = vmatprep.subr.mxu0 0.0
    %167 = vmatpush1.msra.mxu0 0.0
    %168 = vmatprep.subr.mxu0 0.0
    %169 = vmatpush1.msra.mxu0 0.0
    %170 = vmatprep.subr.mxu0 0.0
    %171 = vmatpush1.msra.mxu0 0.0
    %172 = vmatprep.subr.mxu0 0.0
    %173 = vmatpush1.msra.mxu0 0.0
    %174 = vmatprep.subr.mxu0 0.0
    %175 = vmatpush1.msra.mxu0 0.0
    %176 = vmatprep.subr.mxu0 %v133
    %177 = vmatpush1.msra.mxu0 %v132
    %178 = vmatprep.subr.mxu0 %v131
    %179 = vmatpush1.msra.mxu0 %v130
    %180 = vmatprep.subr.mxu0 %v129
    %181 = vmatpush1.msra.mxu0 %v128
    %182 = vmatprep.subr.mxu0 %v127
    %183 = vmatpush1.msra.mxu0 %v126
    %184 = vmatprep.subr.mxu0 0.0
    %185 = vmatpush2.msra.mxu0 0.0
    %186 = vmatprep.subr.mxu0 0.0
    %187 = vmatpush2.msra.mxu0 0.0
    %188 = vmatprep.subr.mxu0 0.0
    %189 = vmatpush2.msra.mxu0 0.0
    %190 = vmatprep.subr.mxu0 0.0
    %191 = vmatpush2.msra.mxu0 0.0
    %192 = vmatprep.subr.mxu0 0.0
    %193 = vmatpush2.msra.mxu0 0.0
    %194 = vmatprep.subr.mxu0 0.0
    %195 = vmatpush2.msra.mxu0 0.0
    %196 = vmatprep.subr.mxu0 0.0
    %197 = vmatpush2.msra.mxu0 0.0
    %198 = vmatprep.subr.mxu0 0.0
    %199 = vmatpush2.msra.mxu0 0.0
    %200 = vmatprep.subr.mxu0 0.0
    %201 = vmatpush2.msra.mxu0 0.0
    %202 = vmatprep.subr.mxu0 0.0
    %203 = vmatpush2.msra.mxu0 0.0
    %204 = vmatprep.subr.mxu0 0.0
    %205 = vmatpush2.msra.mxu0 0.0
    %206 = vmatprep.subr.mxu0 0.0
    %207 = vmatpush2.msra.mxu0 0.0
    %208 = vmatprep.subr.mxu0 0.0
    %209 = vmatpush2.msra.mxu0 0.0
    %210 = vmatprep.subr.mxu0 0.0
    %211 = vmatpush2.msra.mxu0 0.0
    %212 = vmatprep.subr.mxu0 0.0
    %213 = vmatpush2.msra.mxu0 0.0
    %214 = vmatprep.subr.mxu0 0.0
    %215 = vmatpush2.msra.mxu0 0.0
    %216 = vmatprep.mubr.f32.mxu0 0.0
    %217 = vmatmul.mubr.f32.gmra.mxu0 %v147
    %v218 = vpop.f32.mrf.mxu0
    %v219 = vadd.f32 %v139, %v218
    %v220 = vpop.f32.mrf.mxu0
    %v221 = vadd.f32 %v143, %v220
    %222 = vmatprep.mubr.f32.mxu0 0.0
    %223 = vmatmul.mubr.f32.gmra.mxu0 %v150
    %v224 = vpop.f32.mrf.mxu0
    %v225 = vadd.f32 %v139, %v224
    %v226 = vpop.f32.mrf.mxu0
    %v227 = vadd.f32 %v143, %v226
    %228 = vdwg.mxu0
    %230 = vrot.lane.b32.xlu0 %v219, 64
    %v231 = vpop.permute.xlu0 %230
    %vm232 = vcmask 130048
    %v233 = vsel %vm232, %v219, 0
    %v235 = vsel %vm232, %v231, 0
    %237 = vmatprep.subr.mxu0 0.0
    %238 = vmatpush1.xpose.msra.mxu0 0.0
    %239 = vmatprep.subr.mxu0 0.0
    %240 = vmatpush1.xpose.msra.mxu0 0.0
    %241 = vmatprep.subr.mxu0 0.0
    %242 = vmatpush1.xpose.msra.mxu0 0.0
    %243 = vmatprep.subr.mxu0 0.0
    %244 = vmatpush1.xpose.msra.mxu0 0.0
    %245 = vmatprep.subr.mxu0 0.0
    %246 = vmatpush1.xpose.msra.mxu0 0.0
    %247 = vmatprep.subr.mxu0 0.0
    %248 = vmatpush1.xpose.msra.mxu0 0.0
    %249 = vmatprep.subr.mxu0 0.0
    %250 = vmatpush1.xpose.msra.mxu0 0.0
    %251 = vmatprep.subr.mxu0 0.0
    %252 = vmatpush1.xpose.msra.mxu0 0.0
    %253 = vmatprep.subr.mxu0 0.0
    %254 = vmatpush1.xpose.msra.mxu0 0.0
    %255 = vmatprep.subr.mxu0 0.0
    %256 = vmatpush1.xpose.msra.mxu0 0.0
    %257 = vmatprep.subr.mxu0 0.0
    %258 = vmatpush1.xpose.msra.mxu0 0.0
    %259 = vmatprep.subr.mxu0 0.0
    %260 = vmatpush1.xpose.msra.mxu0 0.0
    %261 = vmatprep.subr.mxu0 0.0
    %262 = vmatpush1.xpose.msra.mxu0 0.0
    %263 = vmatprep.subr.mxu0 0.0
    %264 = vmatpush1.xpose.msra.mxu0 0.0
    %265 = vmatprep.subr.mxu0 0.0
    %266 = vmatpush1.xpose.msra.mxu0 0.0
    %267 = vmatprep.subr.mxu0 0.0
    %268 = vmatpush1.xpose.msra.mxu0 %v235
    %269 = vmatprep.subr.mxu0 0.0
    %270 = vmatpush2.xpose.msra.mxu0 0.0
    %271 = vmatprep.subr.mxu0 0.0
    %272 = vmatpush2.xpose.msra.mxu0 0.0
    %273 = vmatprep.subr.mxu0 0.0
    %274 = vmatpush2.xpose.msra.mxu0 0.0
    %275 = vmatprep.subr.mxu0 0.0
    %276 = vmatpush2.xpose.msra.mxu0 0.0
    %277 = vmatprep.subr.mxu0 0.0
    %278 = vmatpush2.xpose.msra.mxu0 0.0
    %279 = vmatprep.subr.mxu0 0.0
    %280 = vmatpush2.xpose.msra.mxu0 0.0
    %281 = vmatprep.subr.mxu0 0.0
    %282 = vmatpush2.xpose.msra.mxu0 0.0
    %283 = vmatprep.subr.mxu0 0.0
    %284 = vmatpush2.xpose.msra.mxu0 0.0
    %285 = vmatprep.subr.mxu0 0.0
    %286 = vmatpush2.xpose.msra.mxu0 0.0
    %287 = vmatprep.subr.mxu0 0.0
    %288 = vmatpush2.xpose.msra.mxu0 0.0
    %289 = vmatprep.subr.mxu0 0.0
    %290 = vmatpush2.xpose.msra.mxu0 0.0
    %291 = vmatprep.subr.mxu0 0.0
    %292 = vmatpush2.xpose.msra.mxu0 0.0
    %293 = vmatprep.subr.mxu0 0.0
    %294 = vmatpush2.xpose.msra.mxu0 0.0
    %295 = vmatprep.subr.mxu0 0.0
    %296 = vmatpush2.xpose.msra.mxu0 0.0
    %297 = vmatprep.subr.mxu0 0.0
    %298 = vmatpush2.xpose.msra.mxu0 0.0
    %299 = vmatprep.subr.mxu0 0.0
    %300 = vmatpush2.xpose.msra.mxu0 0.0
    %301 = vmatprep.mubr.f32.mxu0 0.0
    %302 = vmatmul.mubr.f32.gmra.mxu0 %v233
    %v303 = vpop.f32.mrf.mxu0
    %v304 = vadd.f32 0.0, %v303
    %v305 = vpop.f32.mrf.mxu0
    %306 = vdwg.mxu0
    %308 = vrot.lane.b32.xlu0 %v225, 64
    %v309 = vpop.permute.xlu0 %308
    %v310 = vsel %vm232, %v225, 0
    %v312 = vsel %vm232, %v309, 0
    %314 = vmatprep.subr.mxu0 0.0
    %315 = vmatpush1.xpose.msra.mxu0 0.0
    %316 = vmatprep.subr.mxu0 0.0
    %317 = vmatpush1.xpose.msra.mxu0 0.0
    %318 = vmatprep.subr.mxu0 0.0
    %319 = vmatpush1.xpose.msra.mxu0 0.0
    %320 = vmatprep.subr.mxu0 0.0
    %321 = vmatpush1.xpose.msra.mxu0 0.0
    %322 = vmatprep.subr.mxu0 0.0
    %323 = vmatpush1.xpose.msra.mxu0 0.0
    %324 = vmatprep.subr.mxu0 0.0
    %325 = vmatpush1.xpose.msra.mxu0 0.0
    %326 = vmatprep.subr.mxu0 0.0
    %327 = vmatpush1.xpose.msra.mxu0 0.0
    %328 = vmatprep.subr.mxu0 0.0
    %329 = vmatpush1.xpose.msra.mxu0 0.0
    %330 = vmatprep.subr.mxu0 0.0
    %331 = vmatpush1.xpose.msra.mxu0 0.0
    %332 = vmatprep.subr.mxu0 0.0
    %333 = vmatpush1.xpose.msra.mxu0 0.0
    %334 = vmatprep.subr.mxu0 0.0
    %335 = vmatpush1.xpose.msra.mxu0 0.0
    %336 = vmatprep.subr.mxu0 0.0
    %337 = vmatpush1.xpose.msra.mxu0 0.0
    %338 = vmatprep.subr.mxu0 0.0
    %339 = vmatpush1.xpose.msra.mxu0 0.0
    %340 = vmatprep.subr.mxu0 0.0
    %341 = vmatpush1.xpose.msra.mxu0 0.0
    %342 = vmatprep.subr.mxu0 0.0
    %343 = vmatpush1.xpose.msra.mxu0 0.0
    %344 = vmatprep.subr.mxu0 0.0
    %345 = vmatpush1.xpose.msra.mxu0 %v312
    %346 = vmatprep.subr.mxu0 0.0
    %347 = vmatpush2.xpose.msra.mxu0 0.0
    %348 = vmatprep.subr.mxu0 0.0
    %349 = vmatpush2.xpose.msra.mxu0 0.0
    %350 = vmatprep.subr.mxu0 0.0
    %351 = vmatpush2.xpose.msra.mxu0 0.0
    %352 = vmatprep.subr.mxu0 0.0
    %353 = vmatpush2.xpose.msra.mxu0 0.0
    %354 = vmatprep.subr.mxu0 0.0
    %355 = vmatpush2.xpose.msra.mxu0 0.0
    %356 = vmatprep.subr.mxu0 0.0
    %357 = vmatpush2.xpose.msra.mxu0 0.0
    %358 = vmatprep.subr.mxu0 0.0
    %359 = vmatpush2.xpose.msra.mxu0 0.0
    %360 = vmatprep.subr.mxu0 0.0
    %361 = vmatpush2.xpose.msra.mxu0 0.0
    %362 = vmatprep.subr.mxu0 0.0
    %363 = vmatpush2.xpose.msra.mxu0 0.0
    %364 = vmatprep.subr.mxu0 0.0
    %365 = vmatpush2.xpose.msra.mxu0 0.0
    %366 = vmatprep.subr.mxu0 0.0
    %367 = vmatpush2.xpose.msra.mxu0 0.0
    %368 = vmatprep.subr.mxu0 0.0
    %369 = vmatpush2.xpose.msra.mxu0 0.0
    %370 = vmatprep.subr.mxu0 0.0
    %371 = vmatpush2.xpose.msra.mxu0 0.0
    %372 = vmatprep.subr.mxu0 0.0
    %373 = vmatpush2.xpose.msra.mxu0 0.0
    %374 = vmatprep.subr.mxu0 0.0
    %375 = vmatpush2.xpose.msra.mxu0 0.0
    %376 = vmatprep.subr.mxu0 0.0
    %377 = vmatpush2.xpose.msra.mxu0 0.0
    %378 = vmatprep.mubr.f32.mxu0 0.0
    %379 = vmatmul.mubr.f32.gmra.mxu0 %v310
    %v380 = vpop.f32.mrf.mxu0
    %v381 = vadd.f32 0.0, %v380
    %v382 = vpop.f32.mrf.mxu0
    %383 = vdwg.mxu0
    %v384 = vmul.f32 %v304, 0.25
    %v385 = vmul.f32 %v381, 0.25
    %v386 = vlaneseq
    %v387 = vshrl.u32 %v386, 7
    %v388 = vsub.s32 0, %v387
    %v389 = vrot.slane %v118, %v388
    %v390 = vlaneseq
    %v391 = vshrl.u32 %v390, 7
    %v392 = vsub.s32 0, %v391
    %v393 = vrot.slane %v125, %v392
    %v396 = vadd.f32 %v384, %v389
    %v397 = vadd.f32 %v385, %v393
    %vm398 = vcmask 64512
    %v399 = vsel %vm398, %v396, -inf
    %400 = vmax.xlane.f32.xlu0 %v399
    %v401 = vpop.xlane.xlu0 %400
    %v402 = vsel %vm398, %v397, -inf
    %403 = vmax.xlane.f32.xlu0 %v402
    %v404 = vpop.xlane.xlu0 %403
    %v405 = vsub.f32 %v396, %v401
    %v406 = vsub.f32 %v397, %v404
    %v407 = vmul.f32 %v405, 1.442695
    %v408 = vpow.pop %v407
    %v409 = vmul.f32 %v406, 1.442695
    %v410 = vpow.pop %v409
    %v411 = vsel %vm398, %v408, 0.0
    %412 = vadd.xlane.f32.xlu0 %v411
    %v413 = vpop.xlane.xlu0 %412
    %v414 = vsel %vm398, %v410, 0.0
    %415 = vadd.xlane.f32.xlu0 %v414
    %v416 = vpop.xlane.xlu0 %415
    %v417 = vrcp.pop %v413
    %v418 = vmul.f32 %v408, %v417
    %v419 = vrcp.pop %v416
    %v420 = vmul.f32 %v410, %v419
    %v422 = vsel %vm398, %v418, 0
    %424 = vmatprep.subr.mxu0 0.0
    %425 = vmatpush1.msra.mxu0 0.0
    %426 = vmatprep.subr.mxu0 0.0
    %427 = vmatpush1.msra.mxu0 0.0
    %428 = vmatprep.subr.mxu0 0.0
    %429 = vmatpush1.msra.mxu0 0.0
    %430 = vmatprep.subr.mxu0 0.0
    %431 = vmatpush1.msra.mxu0 0.0
    %432 = vmatprep.subr.mxu0 0.0
    %433 = vmatpush1.msra.mxu0 0.0
    %434 = vmatprep.subr.mxu0 0.0
    %435 = vmatpush1.msra.mxu0 0.0
    %436 = vmatprep.subr.mxu0 0.0
    %437 = vmatpush1.msra.mxu0 0.0
    %438 = vmatprep.subr.mxu0 0.0
    %439 = vmatpush1.msra.mxu0 0.0
    %440 = vmatprep.subr.mxu0 0.0
    %441 = vmatpush1.msra.mxu0 0.0
    %442 = vmatprep.subr.mxu0 0.0
    %443 = vmatpush1.msra.mxu0 0.0
    %444 = vmatprep.subr.mxu0 0.0
    %445 = vmatpush1.msra.mxu0 0.0
    %446 = vmatprep.subr.mxu0 0.0
    %447 = vmatpush1.msra.mxu0 0.0
    %448 = vmatprep.subr.mxu0 0.0
    %449 = vmatpush1.msra.mxu0 0.0
    %450 = vmatprep.subr.mxu0 0.0
    %451 = vmatpush1.msra.mxu0 0.0
    %452 = vmatprep.subr.mxu0 0.0
    %453 = vmatpush1.msra.mxu0 0.0
    %454 = vmatprep.subr.mxu0 0.0
    %455 = vmatpush1.msra.mxu0 %v221
    %456 = vmatprep.subr.mxu0 0.0
    %457 = vmatpush2.msra.mxu0 0.0
    %458 = vmatprep.subr.mxu0 0.0
    %459 = vmatpush2.msra.mxu0 0.0
    %460 = vmatprep.subr.mxu0 0.0
    %461 = vmatpush2.msra.mxu0 0.0
    %462 = vmatprep.subr.mxu0 0.0
    %463 = vmatpush2.msra.mxu0 0.0
    %464 = vmatprep.subr.mxu0 0.0
    %465 = vmatpush2.msra.mxu0 0.0
    %466 = vmatprep.subr.mxu0 0.0
    %467 = vmatpush2.msra.mxu0 0.0
    %468 = vmatprep.subr.mxu0 0.0
    %469 = vmatpush2.msra.mxu0 0.0
    %470 = vmatprep.subr.mxu0 0.0
    %471 = vmatpush2.msra.mxu0 0.0
    %472 = vmatprep.subr.mxu0 0.0
    %473 = vmatpush2.msra.mxu0 0.0
    %474 = vmatprep.subr.mxu0 0.0
    %475 = vmatpush2.msra.mxu0 0.0
    %476 = vmatprep.subr.mxu0 0.0
    %477 = vmatpush2.msra.mxu0 0.0
    %478 = vmatprep.subr.mxu0 0.0
    %479 = vmatpush2.msra.mxu0 0.0
    %480 = vmatprep.subr.mxu0 0.0
    %481 = vmatpush2.msra.mxu0 0.0
    %482 = vmatprep.subr.mxu0 0.0
    %483 = vmatpush2.msra.mxu0 0.0
    %484 = vmatprep.subr.mxu0 0.0
    %485 = vmatpush2.msra.mxu0 0.0
    %486 = vmatprep.subr.mxu0 0.0
    %487 = vmatpush2.msra.mxu0 0.0
    %488 = vmatprep.mubr.f32.mxu0 0.0
    %489 = vmatmul.mubr.f32.gmra.mxu0 %v422
    %v490 = vpop.f32.mrf.mxu0
    %v491 = vadd.f32 0.0, %v490
    %v492 = vpop.f32.mrf.mxu0
    %493 = vdwg.mxu0
    %v495 = vsel %vm398, %v420, 0
    %497 = vmatprep.subr.mxu0 0.0
    %498 = vmatpush1.msra.mxu0 0.0
    %499 = vmatprep.subr.mxu0 0.0
    %500 = vmatpush1.msra.mxu0 0.0
    %501 = vmatprep.subr.mxu0 0.0
    %502 = vmatpush1.msra.mxu0 0.0
    %503 = vmatprep.subr.mxu0 0.0
    %504 = vmatpush1.msra.mxu0 0.0
    %505 = vmatprep.subr.mxu0 0.0
    %506 = vmatpush1.msra.mxu0 0.0
    %507 = vmatprep.subr.mxu0 0.0
    %508 = vmatpush1.msra.mxu0 0.0
    %509 = vmatprep.subr.mxu0 0.0
    %510 = vmatpush1.msra.mxu0 0.0
    %511 = vmatprep.subr.mxu0 0.0
    %512 = vmatpush1.msra.mxu0 0.0
    %513 = vmatprep.subr.mxu0 0.0
    %514 = vmatpush1.msra.mxu0 0.0
    %515 = vmatprep.subr.mxu0 0.0
    %516 = vmatpush1.msra.mxu0 0.0
    %517 = vmatprep.subr.mxu0 0.0
    %518 = vmatpush1.msra.mxu0 0.0
    %519 = vmatprep.subr.mxu0 0.0
    %520 = vmatpush1.msra.mxu0 0.0
    %521 = vmatprep.subr.mxu0 0.0
    %522 = vmatpush1.msra.mxu0 0.0
    %523 = vmatprep.subr.mxu0 0.0
    %524 = vmatpush1.msra.mxu0 0.0
    %525 = vmatprep.subr.mxu0 0.0
    %526 = vmatpush1.msra.mxu0 0.0
    %527 = vmatprep.subr.mxu0 0.0
    %528 = vmatpush1.msra.mxu0 %v227
    %529 = vmatprep.subr.mxu0 0.0
    %530 = vmatpush2.msra.mxu0 0.0
    %531 = vmatprep.subr.mxu0 0.0
    %532 = vmatpush2.msra.mxu0 0.0
    %533 = vmatprep.subr.mxu0 0.0
    %534 = vmatpush2.msra.mxu0 0.0
    %535 = vmatprep.subr.mxu0 0.0
    %536 = vmatpush2.msra.mxu0 0.0
    %537 = vmatprep.subr.mxu0 0.0
    %538 = vmatpush2.msra.mxu0 0.0
    %539 = vmatprep.subr.mxu0 0.0
    %540 = vmatpush2.msra.mxu0 0.0
    %541 = vmatprep.subr.mxu0 0.0
    %542 = vmatpush2.msra.mxu0 0.0
    %543 = vmatprep.subr.mxu0 0.0
    %544 = vmatpush2.msra.mxu0 0.0
    %545 = vmatprep.subr.mxu0 0.0
    %546 = vmatpush2.msra.mxu0 0.0
    %547 = vmatprep.subr.mxu0 0.0
    %548 = vmatpush2.msra.mxu0 0.0
    %549 = vmatprep.subr.mxu0 0.0
    %550 = vmatpush2.msra.mxu0 0.0
    %551 = vmatprep.subr.mxu0 0.0
    %552 = vmatpush2.msra.mxu0 0.0
    %553 = vmatprep.subr.mxu0 0.0
    %554 = vmatpush2.msra.mxu0 0.0
    %555 = vmatprep.subr.mxu0 0.0
    %556 = vmatpush2.msra.mxu0 0.0
    %557 = vmatprep.subr.mxu0 0.0
    %558 = vmatpush2.msra.mxu0 0.0
    %559 = vmatprep.subr.mxu0 0.0
    %560 = vmatpush2.msra.mxu0 0.0
    %561 = vmatprep.mubr.f32.mxu0 0.0
    %562 = vmatmul.mubr.f32.gmra.mxu0 %v495
    %v563 = vpop.f32.mrf.mxu0
    %v564 = vadd.f32 0.0, %v563
    %v565 = vpop.f32.mrf.mxu0
    %566 = vdwg.mxu0
    %567 = vrot.lane.b32.xlu0 %v219, 112
    %v568 = vpop.permute.xlu0 %567
    %569 = vrot.lane.b32.xlu0 %v219, 48
    %v570 = vpop.permute.xlu0 %569
    %v571 = vsel %vm232, %v568, 0
    %v573 = vsel %vm232, %v570, 0
    %575 = vmatprep.subr.mxu0 0.0
    %576 = vmatpush1.xpose.msra.mxu0 0.0
    %577 = vmatprep.subr.mxu0 0.0
    %578 = vmatpush1.xpose.msra.mxu0 0.0
    %579 = vmatprep.subr.mxu0 0.0
    %580 = vmatpush1.xpose.msra.mxu0 0.0
    %581 = vmatprep.subr.mxu0 0.0
    %582 = vmatpush1.xpose.msra.mxu0 0.0
    %583 = vmatprep.subr.mxu0 0.0
    %584 = vmatpush1.xpose.msra.mxu0 0.0
    %585 = vmatprep.subr.mxu0 0.0
    %586 = vmatpush1.xpose.msra.mxu0 0.0
    %587 = vmatprep.subr.mxu0 0.0
    %588 = vmatpush1.xpose.msra.mxu0 0.0
    %589 = vmatprep.subr.mxu0 0.0
    %590 = vmatpush1.xpose.msra.mxu0 0.0
    %591 = vmatprep.subr.mxu0 0.0
    %592 = vmatpush1.xpose.msra.mxu0 0.0
    %593 = vmatprep.subr.mxu0 0.0
    %594 = vmatpush1.xpose.msra.mxu0 0.0
    %595 = vmatprep.subr.mxu0 0.0
    %596 = vmatpush1.xpose.msra.mxu0 0.0
    %597 = vmatprep.subr.mxu0 0.0
    %598 = vmatpush1.xpose.msra.mxu0 0.0
    %599 = vmatprep.subr.mxu0 0.0
    %600 = vmatpush1.xpose.msra.mxu0 0.0
    %601 = vmatprep.subr.mxu0 0.0
    %602 = vmatpush1.xpose.msra.mxu0 0.0
    %603 = vmatprep.subr.mxu0 0.0
    %604 = vmatpush1.xpose.msra.mxu0 0.0
    %605 = vmatprep.subr.mxu0 0.0
    %606 = vmatpush1.xpose.msra.mxu0 %v573
    %607 = vmatprep.subr.mxu0 0.0
    %608 = vmatpush2.xpose.msra.mxu0 0.0
    %609 = vmatprep.subr.mxu0 0.0
    %610 = vmatpush2.xpose.msra.mxu0 0.0
    %611 = vmatprep.subr.mxu0 0.0
    %612 = vmatpush2.xpose.msra.mxu0 0.0
    %613 = vmatprep.subr.mxu0 0.0
    %614 = vmatpush2.xpose.msra.mxu0 0.0
    %615 = vmatprep.subr.mxu0 0.0
    %616 = vmatpush2.xpose.msra.mxu0 0.0
    %617 = vmatprep.subr.mxu0 0.0
    %618 = vmatpush2.xpose.msra.mxu0 0.0
    %619 = vmatprep.subr.mxu0 0.0
    %620 = vmatpush2.xpose.msra.mxu0 0.0
    %621 = vmatprep.subr.mxu0 0.0
    %622 = vmatpush2.xpose.msra.mxu0 0.0
    %623 = vmatprep.subr.mxu0 0.0
    %624 = vmatpush2.xpose.msra.mxu0 0.0
    %625 = vmatprep.subr.mxu0 0.0
    %626 = vmatpush2.xpose.msra.mxu0 0.0
    %627 = vmatprep.subr.mxu0 0.0
    %628 = vmatpush2.xpose.msra.mxu0 0.0
    %629 = vmatprep.subr.mxu0 0.0
    %630 = vmatpush2.xpose.msra.mxu0 0.0
    %631 = vmatprep.subr.mxu0 0.0
    %632 = vmatpush2.xpose.msra.mxu0 0.0
    %633 = vmatprep.subr.mxu0 0.0
    %634 = vmatpush2.xpose.msra.mxu0 0.0
    %635 = vmatprep.subr.mxu0 0.0
    %636 = vmatpush2.xpose.msra.mxu0 0.0
    %637 = vmatprep.subr.mxu0 0.0
    %638 = vmatpush2.xpose.msra.mxu0 0.0
    %639 = vmatprep.mubr.f32.mxu0 0.0
    %640 = vmatmul.mubr.f32.gmra.mxu0 %v571
    %v641 = vpop.f32.mrf.mxu0
    %v642 = vadd.f32 0.0, %v641
    %v643 = vpop.f32.mrf.mxu0
    %644 = vdwg.mxu0
    %645 = vrot.lane.b32.xlu0 %v225, 112
    %v646 = vpop.permute.xlu0 %645
    %647 = vrot.lane.b32.xlu0 %v225, 48
    %v648 = vpop.permute.xlu0 %647
    %v649 = vsel %vm232, %v646, 0
    %v651 = vsel %vm232, %v648, 0
    %653 = vmatprep.subr.mxu0 0.0
    %654 = vmatpush1.xpose.msra.mxu0 0.0
    %655 = vmatprep.subr.mxu0 0.0
    %656 = vmatpush1.xpose.msra.mxu0 0.0
    %657 = vmatprep.subr.mxu0 0.0
    %658 = vmatpush1.xpose.msra.mxu0 0.0
    %659 = vmatprep.subr.mxu0 0.0
    %660 = vmatpush1.xpose.msra.mxu0 0.0
    %661 = vmatprep.subr.mxu0 0.0
    %662 = vmatpush1.xpose.msra.mxu0 0.0
    %663 = vmatprep.subr.mxu0 0.0
    %664 = vmatpush1.xpose.msra.mxu0 0.0
    %665 = vmatprep.subr.mxu0 0.0
    %666 = vmatpush1.xpose.msra.mxu0 0.0
    %667 = vmatprep.subr.mxu0 0.0
    %668 = vmatpush1.xpose.msra.mxu0 0.0
    %669 = vmatprep.subr.mxu0 0.0
    %670 = vmatpush1.xpose.msra.mxu0 0.0
    %671 = vmatprep.subr.mxu0 0.0
    %672 = vmatpush1.xpose.msra.mxu0 0.0
    %673 = vmatprep.subr.mxu0 0.0
    %674 = vmatpush1.xpose.msra.mxu0 0.0
    %675 = vmatprep.subr.mxu0 0.0
    %676 = vmatpush1.xpose.msra.mxu0 0.0
    %677 = vmatprep.subr.mxu0 0.0
    %678 = vmatpush1.xpose.msra.mxu0 0.0
    %679 = vmatprep.subr.mxu0 0.0
    %680 = vmatpush1.xpose.msra.mxu0 0.0
    %681 = vmatprep.subr.mxu0 0.0
    %682 = vmatpush1.xpose.msra.mxu0 0.0
    %683 = vmatprep.subr.mxu0 0.0
    %684 = vmatpush1.xpose.msra.mxu0 %v651
    %685 = vmatprep.subr.mxu0 0.0
    %686 = vmatpush2.xpose.msra.mxu0 0.0
    %687 = vmatprep.subr.mxu0 0.0
    %688 = vmatpush2.xpose.msra.mxu0 0.0
    %689 = vmatprep.subr.mxu0 0.0
    %690 = vmatpush2.xpose.msra.mxu0 0.0
    %691 = vmatprep.subr.mxu0 0.0
    %692 = vmatpush2.xpose.msra.mxu0 0.0
    %693 = vmatprep.subr.mxu0 0.0
    %694 = vmatpush2.xpose.msra.mxu0 0.0
    %695 = vmatprep.subr.mxu0 0.0
    %696 = vmatpush2.xpose.msra.mxu0 0.0
    %697 = vmatprep.subr.mxu0 0.0
    %698 = vmatpush2.xpose.msra.mxu0 0.0
    %699 = vmatprep.subr.mxu0 0.0
    %700 = vmatpush2.xpose.msra.mxu0 0.0
    %701 = vmatprep.subr.mxu0 0.0
    %702 = vmatpush2.xpose.msra.mxu0 0.0
    %703 = vmatprep.subr.mxu0 0.0
    %704 = vmatpush2.xpose.msra.mxu0 0.0
    %705 = vmatprep.subr.mxu0 0.0
    %706 = vmatpush2.xpose.msra.mxu0 0.0
    %707 = vmatprep.subr.mxu0 0.0
    %708 = vmatpush2.xpose.msra.mxu0 0.0
    %709 = vmatprep.subr.mxu0 0.0
    %710 = vmatpush2.xpose.msra.mxu0 0.0
    %711 = vmatprep.subr.mxu0 0.0
    %712 = vmatpush2.xpose.msra.mxu0 0.0
    %713 = vmatprep.subr.mxu0 0.0
    %714 = vmatpush2.xpose.msra.mxu0 0.0
    %715 = vmatprep.subr.mxu0 0.0
    %716 = vmatpush2.xpose.msra.mxu0 0.0
    %717 = vmatprep.mubr.f32.mxu0 0.0
    %718 = vmatmul.mubr.f32.gmra.mxu0 %v649
    %v719 = vpop.f32.mrf.mxu0
    %v720 = vadd.f32 0.0, %v719
    %v721 = vpop.f32.mrf.mxu0
    %722 = vdwg.mxu0
    %v723 = vmul.f32 %v642, 0.25
    %v724 = vmul.f32 %v720, 0.25
    %v725 = vadd.f32 %v723, %v389
    %v726 = vadd.f32 %v724, %v393
    %v727 = vsel %vm398, %v725, -inf
    %728 = vmax.xlane.f32.xlu0 %v727
    %v729 = vpop.xlane.xlu0 %728
    %v730 = vsel %vm398, %v726, -inf
    %731 = vmax.xlane.f32.xlu0 %v730
    %v732 = vpop.xlane.xlu0 %731
    %v733 = vsub.f32 %v725, %v729
    %v734 = vsub.f32 %v726, %v732
    %v735 = vmul.f32 %v733, 1.442695
    %v736 = vpow.pop %v735
    %v737 = vmul.f32 %v734, 1.442695
    %v738 = vpow.pop %v737
    %v739 = vsel %vm398, %v736, 0.0
    %740 = vadd.xlane.f32.xlu0 %v739
    %v741 = vpop.xlane.xlu0 %740
    %v742 = vsel %vm398, %v738, 0.0
    %743 = vadd.xlane.f32.xlu0 %v742
    %v744 = vpop.xlane.xlu0 %743
    %v745 = vrcp.pop %v741
    %v746 = vmul.f32 %v736, %v745
    %v747 = vrcp.pop %v744
    %v748 = vmul.f32 %v738, %v747
    %750 = vrot.lane.b32.xlu0 %v221, 112
    %v751 = vpop.permute.xlu0 %750
    %v754 = vsel %vm398, %v746, 0
    %756 = vmatprep.subr.mxu0 0.0
    %757 = vmatpush1.msra.mxu0 0.0
    %758 = vmatprep.subr.mxu0 0.0
    %759 = vmatpush1.msra.mxu0 0.0
    %760 = vmatprep.subr.mxu0 0.0
    %761 = vmatpush1.msra.mxu0 0.0
    %762 = vmatprep.subr.mxu0 0.0
    %763 = vmatpush1.msra.mxu0 0.0
    %764 = vmatprep.subr.mxu0 0.0
    %765 = vmatpush1.msra.mxu0 0.0
    %766 = vmatprep.subr.mxu0 0.0
    %767 = vmatpush1.msra.mxu0 0.0
    %768 = vmatprep.subr.mxu0 0.0
    %769 = vmatpush1.msra.mxu0 0.0
    %770 = vmatprep.subr.mxu0 0.0
    %771 = vmatpush1.msra.mxu0 0.0
    %772 = vmatprep.subr.mxu0 0.0
    %773 = vmatpush1.msra.mxu0 0.0
    %774 = vmatprep.subr.mxu0 0.0
    %775 = vmatpush1.msra.mxu0 0.0
    %776 = vmatprep.subr.mxu0 0.0
    %777 = vmatpush1.msra.mxu0 0.0
    %778 = vmatprep.subr.mxu0 0.0
    %779 = vmatpush1.msra.mxu0 0.0
    %780 = vmatprep.subr.mxu0 0.0
    %781 = vmatpush1.msra.mxu0 0.0
    %782 = vmatprep.subr.mxu0 0.0
    %783 = vmatpush1.msra.mxu0 0.0
    %784 = vmatprep.subr.mxu0 0.0
    %785 = vmatpush1.msra.mxu0 0.0
    %786 = vmatprep.subr.mxu0 0.0
    %787 = vmatpush1.msra.mxu0 %v751
    %788 = vmatprep.subr.mxu0 0.0
    %789 = vmatpush2.msra.mxu0 0.0
    %790 = vmatprep.subr.mxu0 0.0
    %791 = vmatpush2.msra.mxu0 0.0
    %792 = vmatprep.subr.mxu0 0.0
    %793 = vmatpush2.msra.mxu0 0.0
    %794 = vmatprep.subr.mxu0 0.0
    %795 = vmatpush2.msra.mxu0 0.0
    %796 = vmatprep.subr.mxu0 0.0
    %797 = vmatpush2.msra.mxu0 0.0
    %798 = vmatprep.subr.mxu0 0.0
    %799 = vmatpush2.msra.mxu0 0.0
    %800 = vmatprep.subr.mxu0 0.0
    %801 = vmatpush2.msra.mxu0 0.0
    %802 = vmatprep.subr.mxu0 0.0
    %803 = vmatpush2.msra.mxu0 0.0
    %804 = vmatprep.subr.mxu0 0.0
    %805 = vmatpush2.msra.mxu0 0.0
    %806 = vmatprep.subr.mxu0 0.0
    %807 = vmatpush2.msra.mxu0 0.0
    %808 = vmatprep.subr.mxu0 0.0
    %809 = vmatpush2.msra.mxu0 0.0
    %810 = vmatprep.subr.mxu0 0.0
    %811 = vmatpush2.msra.mxu0 0.0
    %812 = vmatprep.subr.mxu0 0.0
    %813 = vmatpush2.msra.mxu0 0.0
    %814 = vmatprep.subr.mxu0 0.0
    %815 = vmatpush2.msra.mxu0 0.0
    %816 = vmatprep.subr.mxu0 0.0
    %817 = vmatpush2.msra.mxu0 0.0
    %818 = vmatprep.subr.mxu0 0.0
    %819 = vmatpush2.msra.mxu0 0.0
    %820 = vmatprep.mubr.f32.mxu0 0.0
    %821 = vmatmul.mubr.f32.gmra.mxu0 %v754
    %v822 = vpop.f32.mrf.mxu0
    %v823 = vadd.f32 0.0, %v822
    %v824 = vpop.f32.mrf.mxu0
    %825 = vdwg.mxu0
    %827 = vrot.lane.b32.xlu0 %v227, 112
    %v828 = vpop.permute.xlu0 %827
    %v831 = vsel %vm398, %v748, 0
    %833 = vmatprep.subr.mxu0 0.0
    %834 = vmatpush1.msra.mxu0 0.0
    %835 = vmatprep.subr.mxu0 0.0
    %836 = vmatpush1.msra.mxu0 0.0
    %837 = vmatprep.subr.mxu0 0.0
    %838 = vmatpush1.msra.mxu0 0.0
    %839 = vmatprep.subr.mxu0 0.0
    %840 = vmatpush1.msra.mxu0 0.0
    %841 = vmatprep.subr.mxu0 0.0
    %842 = vmatpush1.msra.mxu0 0.0
    %843 = vmatprep.subr.mxu0 0.0
    %844 = vmatpush1.msra.mxu0 0.0
    %845 = vmatprep.subr.mxu0 0.0
    %846 = vmatpush1.msra.mxu0 0.0
    %847 = vmatprep.subr.mxu0 0.0
    %848 = vmatpush1.msra.mxu0 0.0
    %849 = vmatprep.subr.mxu0 0.0
    %850 = vmatpush1.msra.mxu0 0.0
    %851 = vmatprep.subr.mxu0 0.0
    %852 = vmatpush1.msra.mxu0 0.0
    %853 = vmatprep.subr.mxu0 0.0
    %854 = vmatpush1.msra.mxu0 0.0
    %855 = vmatprep.subr.mxu0 0.0
    %856 = vmatpush1.msra.mxu0 0.0
    %857 = vmatprep.subr.mxu0 0.0
    %858 = vmatpush1.msra.mxu0 0.0
    %859 = vmatprep.subr.mxu0 0.0
    %860 = vmatpush1.msra.mxu0 0.0
    %861 = vmatprep.subr.mxu0 0.0
    %862 = vmatpush1.msra.mxu0 0.0
    %863 = vmatprep.subr.mxu0 0.0
    %864 = vmatpush1.msra.mxu0 %v828
    %865 = vmatprep.subr.mxu0 0.0
    %866 = vmatpush2.msra.mxu0 0.0
    %867 = vmatprep.subr.mxu0 0.0
    %868 = vmatpush2.msra.mxu0 0.0
    %869 = vmatprep.subr.mxu0 0.0
    %870 = vmatpush2.msra.mxu0 0.0
    %871 = vmatprep.subr.mxu0 0.0
    %872 = vmatpush2.msra.mxu0 0.0
    %873 = vmatprep.subr.mxu0 0.0
    %874 = vmatpush2.msra.mxu0 0.0
    %875 = vmatprep.subr.mxu0 0.0
    %876 = vmatpush2.msra.mxu0 0.0
    %877 = vmatprep.subr.mxu0 0.0
    %878 = vmatpush2.msra.mxu0 0.0
    %879 = vmatprep.subr.mxu0 0.0
    %880 = vmatpush2.msra.mxu0 0.0
    %881 = vmatprep.subr.mxu0 0.0
    %882 = vmatpush2.msra.mxu0 0.0
    %883 = vmatprep.subr.mxu0 0.0
    %884 = vmatpush2.msra.mxu0 0.0
    %885 = vmatprep.subr.mxu0 0.0
    %886 = vmatpush2.msra.mxu0 0.0
    %887 = vmatprep.subr.mxu0 0.0
    %888 = vmatpush2.msra.mxu0 0.0
    %889 = vmatprep.subr.mxu0 0.0
    %890 = vmatpush2.msra.mxu0 0.0
    %891 = vmatprep.subr.mxu0 0.0
    %892 = vmatpush2.msra.mxu0 0.0
    %893 = vmatprep.subr.mxu0 0.0
    %894 = vmatpush2.msra.mxu0 0.0
    %895 = vmatprep.subr.mxu0 0.0
    %896 = vmatpush2.msra.mxu0 0.0
    %897 = vmatprep.mubr.f32.mxu0 0.0
    %898 = vmatmul.mubr.f32.gmra.mxu0 %v831
    %v899 = vpop.f32.mrf.mxu0
    %v900 = vadd.f32 0.0, %v899
    %v901 = vpop.f32.mrf.mxu0
    %902 = vdwg.mxu0
    %903 = vrot.lane.b32.xlu0 %v219, 96
    %v904 = vpop.permute.xlu0 %903
    %905 = vrot.lane.b32.xlu0 %v219, 32
    %v906 = vpop.permute.xlu0 %905
    %v907 = vsel %vm232, %v904, 0
    %v909 = vsel %vm232, %v906, 0
    %911 = vmatprep.subr.mxu0 0.0
    %912 = vmatpush1.xpose.msra.mxu0 0.0
    %913 = vmatprep.subr.mxu0 0.0
    %914 = vmatpush1.xpose.msra.mxu0 0.0
    %915 = vmatprep.subr.mxu0 0.0
    %916 = vmatpush1.xpose.msra.mxu0 0.0
    %917 = vmatprep.subr.mxu0 0.0
    %918 = vmatpush1.xpose.msra.mxu0 0.0
    %919 = vmatprep.subr.mxu0 0.0
    %920 = vmatpush1.xpose.msra.mxu0 0.0
    %921 = vmatprep.subr.mxu0 0.0
    %922 = vmatpush1.xpose.msra.mxu0 0.0
    %923 = vmatprep.subr.mxu0 0.0
    %924 = vmatpush1.xpose.msra.mxu0 0.0
    %925 = vmatprep.subr.mxu0 0.0
    %926 = vmatpush1.xpose.msra.mxu0 0.0
    %927 = vmatprep.subr.mxu0 0.0
    %928 = vmatpush1.xpose.msra.mxu0 0.0
    %929 = vmatprep.subr.mxu0 0.0
    %930 = vmatpush1.xpose.msra.mxu0 0.0
    %931 = vmatprep.subr.mxu0 0.0
    %932 = vmatpush1.xpose.msra.mxu0 0.0
    %933 = vmatprep.subr.mxu0 0.0
    %934 = vmatpush1.xpose.msra.mxu0 0.0
    %935 = vmatprep.subr.mxu0 0.0
    %936 = vmatpush1.xpose.msra.mxu0 0.0
    %937 = vmatprep.subr.mxu0 0.0
    %938 = vmatpush1.xpose.msra.mxu0 0.0
    %939 = vmatprep.subr.mxu0 0.0
    %940 = vmatpush1.xpose.msra.mxu0 0.0
    %941 = vmatprep.subr.mxu0 0.0
    %942 = vmatpush1.xpose.msra.mxu0 %v909
    %943 = vmatprep.subr.mxu0 0.0
    %944 = vmatpush2.xpose.msra.mxu0 0.0
    %945 = vmatprep.subr.mxu0 0.0
    %946 = vmatpush2.xpose.msra.mxu0 0.0
    %947 = vmatprep.subr.mxu0 0.0
    %948 = vmatpush2.xpose.msra.mxu0 0.0
    %949 = vmatprep.subr.mxu0 0.0
    %950 = vmatpush2.xpose.msra.mxu0 0.0
    %951 = vmatprep.subr.mxu0 0.0
    %952 = vmatpush2.xpose.msra.mxu0 0.0
    %953 = vmatprep.subr.mxu0 0.0
    %954 = vmatpush2.xpose.msra.mxu0 0.0
    %955 = vmatprep.subr.mxu0 0.0
    %956 = vmatpush2.xpose.msra.mxu0 0.0
    %957 = vmatprep.subr.mxu0 0.0
    %958 = vmatpush2.xpose.msra.mxu0 0.0
    %959 = vmatprep.subr.mxu0 0.0
    %960 = vmatpush2.xpose.msra.mxu0 0.0
    %961 = vmatprep.subr.mxu0 0.0
    %962 = vmatpush2.xpose.msra.mxu0 0.0
    %963 = vmatprep.subr.mxu0 0.0
    %964 = vmatpush2.xpose.msra.mxu0 0.0
    %965 = vmatprep.subr.mxu0 0.0
    %966 = vmatpush2.xpose.msra.mxu0 0.0
    %967 = vmatprep.subr.mxu0 0.0
    %968 = vmatpush2.xpose.msra.mxu0 0.0
    %969 = vmatprep.subr.mxu0 0.0
    %970 = vmatpush2.xpose.msra.mxu0 0.0
    %971 = vmatprep.subr.mxu0 0.0
    %972 = vmatpush2.xpose.msra.mxu0 0.0
    %973 = vmatprep.subr.mxu0 0.0
    %974 = vmatpush2.xpose.msra.mxu0 0.0
    %975 = vmatprep.mubr.f32.mxu0 0.0
    %976 = vmatmul.mubr.f32.gmra.mxu0 %v907
    %v977 = vpop.f32.mrf.mxu0
    %v978 = vadd.f32 0.0, %v977
    %v979 = vpop.f32.mrf.mxu0
    %980 = vdwg.mxu0
    %981 = vrot.lane.b32.xlu0 %v225, 96
    %v982 = vpop.permute.xlu0 %981
    %983 = vrot.lane.b32.xlu0 %v225, 32
    %v984 = vpop.permute.xlu0 %983
    %v985 = vsel %vm232, %v982, 0
    %v987 = vsel %vm232, %v984, 0
    %989 = vmatprep.subr.mxu0 0.0
    %990 = vmatpush1.xpose.msra.mxu0 0.0
    %991 = vmatprep.subr.mxu0 0.0
    %992 = vmatpush1.xpose.msra.mxu0 0.0
    %993 = vmatprep.subr.mxu0 0.0
    %994 = vmatpush1.xpose.msra.mxu0 0.0
    %995 = vmatprep.subr.mxu0 0.0
    %996 = vmatpush1.xpose.msra.mxu0 0.0
    %997 = vmatprep.subr.mxu0 0.0
    %998 = vmatpush1.xpose.msra.mxu0 0.0
    %999 = vmatprep.subr.mxu0 0.0
    %1000 = vmatpush1.xpose.msra.mxu0 0.0
    %1001 = vmatprep.subr.mxu0 0.0
    %1002 = vmatpush1.xpose.msra.mxu0 0.0
    %1003 = vmatprep.subr.mxu0 0.0
    %1004 = vmatpush1.xpose.msra.mxu0 0.0
    %1005 = vmatprep.subr.mxu0 0.0
    %1006 = vmatpush1.xpose.msra.mxu0 0.0
    %1007 = vmatprep.subr.mxu0 0.0
    %1008 = vmatpush1.xpose.msra.mxu0 0.0
    %1009 = vmatprep.subr.mxu0 0.0
    %1010 = vmatpush1.xpose.msra.mxu0 0.0
    %1011 = vmatprep.subr.mxu0 0.0
    %1012 = vmatpush1.xpose.msra.mxu0 0.0
    %1013 = vmatprep.subr.mxu0 0.0
    %1014 = vmatpush1.xpose.msra.mxu0 0.0
    %1015 = vmatprep.subr.mxu0 0.0
    %1016 = vmatpush1.xpose.msra.mxu0 0.0
    %1017 = vmatprep.subr.mxu0 0.0
    %1018 = vmatpush1.xpose.msra.mxu0 0.0
    %1019 = vmatprep.subr.mxu0 0.0
    %1020 = vmatpush1.xpose.msra.mxu0 %v987
    %1021 = vmatprep.subr.mxu0 0.0
    %1022 = vmatpush2.xpose.msra.mxu0 0.0
    %1023 = vmatprep.subr.mxu0 0.0
    %1024 = vmatpush2.xpose.msra.mxu0 0.0
    %1025 = vmatprep.subr.mxu0 0.0
    %1026 = vmatpush2.xpose.msra.mxu0 0.0
    %1027 = vmatprep.subr.mxu0 0.0
    %1028 = vmatpush2.xpose.msra.mxu0 0.0
    %1029 = vmatprep.subr.mxu0 0.0
    %1030 = vmatpush2.xpose.msra.mxu0 0.0
    %1031 = vmatprep.subr.mxu0 0.0
    %1032 = vmatpush2.xpose.msra.mxu0 0.0
    %1033 = vmatprep.subr.mxu0 0.0
    %1034 = vmatpush2.xpose.msra.mxu0 0.0
    %1035 = vmatprep.subr.mxu0 0.0
    %1036 = vmatpush2.xpose.msra.mxu0 0.0
    %1037 = vmatprep.subr.mxu0 0.0
    %1038 = vmatpush2.xpose.msra.mxu0 0.0
    %1039 = vmatprep.subr.mxu0 0.0
    %1040 = vmatpush2.xpose.msra.mxu0 0.0
    %1041 = vmatprep.subr.mxu0 0.0
    %1042 = vmatpush2.xpose.msra.mxu0 0.0
    %1043 = vmatprep.subr.mxu0 0.0
    %1044 = vmatpush2.xpose.msra.mxu0 0.0
    %1045 = vmatprep.subr.mxu0 0.0
    %1046 = vmatpush2.xpose.msra.mxu0 0.0
    %1047 = vmatprep.subr.mxu0 0.0
    %1048 = vmatpush2.xpose.msra.mxu0 0.0
    %1049 = vmatprep.subr.mxu0 0.0
    %1050 = vmatpush2.xpose.msra.mxu0 0.0
    %1051 = vmatprep.subr.mxu0 0.0
    %1052 = vmatpush2.xpose.msra.mxu0 0.0
    %1053 = vmatprep.mubr.f32.mxu0 0.0
    %1054 = vmatmul.mubr.f32.gmra.mxu0 %v985
    %v1055 = vpop.f32.mrf.mxu0
    %v1056 = vadd.f32 0.0, %v1055
    %v1057 = vpop.f32.mrf.mxu0
    %1058 = vdwg.mxu0
    %v1059 = vmul.f32 %v978, 0.25
    %v1060 = vmul.f32 %v1056, 0.25
    %v1061 = vadd.f32 %v1059, %v389
    %v1062 = vadd.f32 %v1060, %v393
    %v1063 = vsel %vm398, %v1061, -inf
    %1064 = vmax.xlane.f32.xlu0 %v1063
    %v1065 = vpop.xlane.xlu0 %1064
    %v1066 = vsel %vm398, %v1062, -inf
    %1067 = vmax.xlane.f32.xlu0 %v1066
    %v1068 = vpop.xlane.xlu0 %1067
    %v1069 = vsub.f32 %v1061, %v1065
    %v1070 = vsub.f32 %v1062, %v1068
    %v1071 = vmul.f32 %v1069, 1.442695
    %v1072 = vpow.pop %v1071
    %v1073 = vmul.f32 %v1070, 1.442695
    %v1074 = vpow.pop %v1073
    %v1075 = vsel %vm398, %v1072, 0.0
    %1076 = vadd.xlane.f32.xlu0 %v1075
    %v1077 = vpop.xlane.xlu0 %1076
    %v1078 = vsel %vm398, %v1074, 0.0
    %1079 = vadd.xlane.f32.xlu0 %v1078
    %v1080 = vpop.xlane.xlu0 %1079
    %v1081 = vrcp.pop %v1077
    %v1082 = vmul.f32 %v1072, %v1081
    %v1083 = vrcp.pop %v1080
    %v1084 = vmul.f32 %v1074, %v1083
    %1085 = vrot.lane.b32.xlu0 %v221, 96
    %v1086 = vpop.permute.xlu0 %1085
    %v1089 = vsel %vm398, %v1082, 0
    %1091 = vmatprep.subr.mxu0 0.0
    %1092 = vmatpush1.msra.mxu0 0.0
    %1093 = vmatprep.subr.mxu0 0.0
    %1094 = vmatpush1.msra.mxu0 0.0
    %1095 = vmatprep.subr.mxu0 0.0
    %1096 = vmatpush1.msra.mxu0 0.0
    %1097 = vmatprep.subr.mxu0 0.0
    %1098 = vmatpush1.msra.mxu0 0.0
    %1099 = vmatprep.subr.mxu0 0.0
    %1100 = vmatpush1.msra.mxu0 0.0
    %1101 = vmatprep.subr.mxu0 0.0
    %1102 = vmatpush1.msra.mxu0 0.0
    %1103 = vmatprep.subr.mxu0 0.0
    %1104 = vmatpush1.msra.mxu0 0.0
    %1105 = vmatprep.subr.mxu0 0.0
    %1106 = vmatpush1.msra.mxu0 0.0
    %1107 = vmatprep.subr.mxu0 0.0
    %1108 = vmatpush1.msra.mxu0 0.0
    %1109 = vmatprep.subr.mxu0 0.0
    %1110 = vmatpush1.msra.mxu0 0.0
    %1111 = vmatprep.subr.mxu0 0.0
    %1112 = vmatpush1.msra.mxu0 0.0
    %1113 = vmatprep.subr.mxu0 0.0
    %1114 = vmatpush1.msra.mxu0 0.0
    %1115 = vmatprep.subr.mxu0 0.0
    %1116 = vmatpush1.msra.mxu0 0.0
    %1117 = vmatprep.subr.mxu0 0.0
    %1118 = vmatpush1.msra.mxu0 0.0
    %1119 = vmatprep.subr.mxu0 0.0
    %1120 = vmatpush1.msra.mxu0 0.0
    %1121 = vmatprep.subr.mxu0 0.0
    %1122 = vmatpush1.msra.mxu0 %v1086
    %1123 = vmatprep.subr.mxu0 0.0
    %1124 = vmatpush2.msra.mxu0 0.0
    %1125 = vmatprep.subr.mxu0 0.0
    %1126 = vmatpush2.msra.mxu0 0.0
    %1127 = vmatprep.subr.mxu0 0.0
    %1128 = vmatpush2.msra.mxu0 0.0
    %1129 = vmatprep.subr.mxu0 0.0
    %1130 = vmatpush2.msra.mxu0 0.0
    %1131 = vmatprep.subr.mxu0 0.0
    %1132 = vmatpush2.msra.mxu0 0.0
    %1133 = vmatprep.subr.mxu0 0.0
    %1134 = vmatpush2.msra.mxu0 0.0
    %1135 = vmatprep.subr.mxu0 0.0
    %1136 = vmatpush2.msra.mxu0 0.0
    %1137 = vmatprep.subr.mxu0 0.0
    %1138 = vmatpush2.msra.mxu0 0.0
    %1139 = vmatprep.subr.mxu0 0.0
    %1140 = vmatpush2.msra.mxu0 0.0
    %1141 = vmatprep.subr.mxu0 0.0
    %1142 = vmatpush2.msra.mxu0 0.0
    %1143 = vmatprep.subr.mxu0 0.0
    %1144 = vmatpush2.msra.mxu0 0.0
    %1145 = vmatprep.subr.mxu0 0.0
    %1146 = vmatpush2.msra.mxu0 0.0
    %1147 = vmatprep.subr.mxu0 0.0
    %1148 = vmatpush2.msra.mxu0 0.0
    %1149 = vmatprep.subr.mxu0 0.0
    %1150 = vmatpush2.msra.mxu0 0.0
    %1151 = vmatprep.subr.mxu0 0.0
    %1152 = vmatpush2.msra.mxu0 0.0
    %1153 = vmatprep.subr.mxu0 0.0
    %1154 = vmatpush2.msra.mxu0 0.0
    %1155 = vmatprep.mubr.f32.mxu0 0.0
    %1156 = vmatmul.mubr.f32.gmra.mxu0 %v1089
    %v1157 = vpop.f32.mrf.mxu0
    %v1158 = vadd.f32 0.0, %v1157
    %v1159 = vpop.f32.mrf.mxu0
    %1160 = vdwg.mxu0
    %1161 = vrot.lane.b32.xlu0 %v227, 96
    %v1162 = vpop.permute.xlu0 %1161
    %v1165 = vsel %vm398, %v1084, 0
    %1167 = vmatprep.subr.mxu0 0.0
    %1168 = vmatpush1.msra.mxu0 0.0
    %1169 = vmatprep.subr.mxu0 0.0
    %1170 = vmatpush1.msra.mxu0 0.0
    %1171 = vmatprep.subr.mxu0 0.0
    %1172 = vmatpush1.msra.mxu0 0.0
    %1173 = vmatprep.subr.mxu0 0.0
    %1174 = vmatpush1.msra.mxu0 0.0
    %1175 = vmatprep.subr.mxu0 0.0
    %1176 = vmatpush1.msra.mxu0 0.0
    %1177 = vmatprep.subr.mxu0 0.0
    %1178 = vmatpush1.msra.mxu0 0.0
    %1179 = vmatprep.subr.mxu0 0.0
    %1180 = vmatpush1.msra.mxu0 0.0
    %1181 = vmatprep.subr.mxu0 0.0
    %1182 = vmatpush1.msra.mxu0 0.0
    %1183 = vmatprep.subr.mxu0 0.0
    %1184 = vmatpush1.msra.mxu0 0.0
    %1185 = vmatprep.subr.mxu0 0.0
    %1186 = vmatpush1.msra.mxu0 0.0
    %1187 = vmatprep.subr.mxu0 0.0
    %1188 = vmatpush1.msra.mxu0 0.0
    %1189 = vmatprep.subr.mxu0 0.0
    %1190 = vmatpush1.msra.mxu0 0.0
    %1191 = vmatprep.subr.mxu0 0.0
    %1192 = vmatpush1.msra.mxu0 0.0
    %1193 = vmatprep.subr.mxu0 0.0
    %1194 = vmatpush1.msra.mxu0 0.0
    %1195 = vmatprep.subr.mxu0 0.0
    %1196 = vmatpush1.msra.mxu0 0.0
    %1197 = vmatprep.subr.mxu0 0.0
    %1198 = vmatpush1.msra.mxu0 %v1162
    %1199 = vmatprep.subr.mxu0 0.0
    %1200 = vmatpush2.msra.mxu0 0.0
    %1201 = vmatprep.subr.mxu0 0.0
    %1202 = vmatpush2.msra.mxu0 0.0
    %1203 = vmatprep.subr.mxu0 0.0
    %1204 = vmatpush2.msra.mxu0 0.0
    %1205 = vmatprep.subr.mxu0 0.0
    %1206 = vmatpush2.msra.mxu0 0.0
    %1207 = vmatprep.subr.mxu0 0.0
    %1208 = vmatpush2.msra.mxu0 0.0
    %1209 = vmatprep.subr.mxu0 0.0
    %1210 = vmatpush2.msra.mxu0 0.0
    %1211 = vmatprep.subr.mxu0 0.0
    %1212 = vmatpush2.msra.mxu0 0.0
    %1213 = vmatprep.subr.mxu0 0.0
    %1214 = vmatpush2.msra.mxu0 0.0
    %1215 = vmatprep.subr.mxu0 0.0
    %1216 = vmatpush2.msra.mxu0 0.0
    %1217 = vmatprep.subr.mxu0 0.0
    %1218 = vmatpush2.msra.mxu0 0.0
    %1219 = vmatprep.subr.mxu0 0.0
    %1220 = vmatpush2.msra.mxu0 0.0
    %1221 = vmatprep.subr.mxu0 0.0
    %1222 = vmatpush2.msra.mxu0 0.0
    %1223 = vmatprep.subr.mxu0 0.0
    %1224 = vmatpush2.msra.mxu0 0.0
    %1225 = vmatprep.subr.mxu0 0.0
    %1226 = vmatpush2.msra.mxu0 0.0
    %1227 = vmatprep.subr.mxu0 0.0
    %1228 = vmatpush2.msra.mxu0 0.0
    %1229 = vmatprep.subr.mxu0 0.0
    %1230 = vmatpush2.msra.mxu0 0.0
    %1231 = vmatprep.mubr.f32.mxu0 0.0
    %1232 = vmatmul.mubr.f32.gmra.mxu0 %v1165
    %v1233 = vpop.f32.mrf.mxu0
    %v1234 = vadd.f32 0.0, %v1233
    %v1235 = vpop.f32.mrf.mxu0
    %1236 = vdwg.mxu0
    %1237 = vrot.lane.b32.xlu0 %v219, 80
    %v1238 = vpop.permute.xlu0 %1237
    %1239 = vrot.lane.b32.xlu0 %v219, 16
    %v1240 = vpop.permute.xlu0 %1239
    %v1241 = vsel %vm232, %v1238, 0
    %v1243 = vsel %vm232, %v1240, 0
    %1245 = vmatprep.subr.mxu0 0.0
    %1246 = vmatpush1.xpose.msra.mxu0 0.0
    %1247 = vmatprep.subr.mxu0 0.0
    %1248 = vmatpush1.xpose.msra.mxu0 0.0
    %1249 = vmatprep.subr.mxu0 0.0
    %1250 = vmatpush1.xpose.msra.mxu0 0.0
    %1251 = vmatprep.subr.mxu0 0.0
    %1252 = vmatpush1.xpose.msra.mxu0 0.0
    %1253 = vmatprep.subr.mxu0 0.0
    %1254 = vmatpush1.xpose.msra.mxu0 0.0
    %1255 = vmatprep.subr.mxu0 0.0
    %1256 = vmatpush1.xpose.msra.mxu0 0.0
    %1257 = vmatprep.subr.mxu0 0.0
    %1258 = vmatpush1.xpose.msra.mxu0 0.0
    %1259 = vmatprep.subr.mxu0 0.0
    %1260 = vmatpush1.xpose.msra.mxu0 0.0
    %1261 = vmatprep.subr.mxu0 0.0
    %1262 = vmatpush1.xpose.msra.mxu0 0.0
    %1263 = vmatprep.subr.mxu0 0.0
    %1264 = vmatpush1.xpose.msra.mxu0 0.0
    %1265 = vmatprep.subr.mxu0 0.0
    %1266 = vmatpush1.xpose.msra.mxu0 0.0
    %1267 = vmatprep.subr.mxu0 0.0
    %1268 = vmatpush1.xpose.msra.mxu0 0.0
    %1269 = vmatprep.subr.mxu0 0.0
    %1270 = vmatpush1.xpose.msra.mxu0 0.0
    %1271 = vmatprep.subr.mxu0 0.0
    %1272 = vmatpush1.xpose.msra.mxu0 0.0
    %1273 = vmatprep.subr.mxu0 0.0
    %1274 = vmatpush1.xpose.msra.mxu0 0.0
    %1275 = vmatprep.subr.mxu0 0.0
    %1276 = vmatpush1.xpose.msra.mxu0 %v1243
    %1277 = vmatprep.subr.mxu0 0.0
    %1278 = vmatpush2.xpose.msra.mxu0 0.0
    %1279 = vmatprep.subr.mxu0 0.0
    %1280 = vmatpush2.xpose.msra.mxu0 0.0
    %1281 = vmatprep.subr.mxu0 0.0
    %1282 = vmatpush2.xpose.msra.mxu0 0.0
    %1283 = vmatprep.subr.mxu0 0.0
    %1284 = vmatpush2.xpose.msra.mxu0 0.0
    %1285 = vmatprep.subr.mxu0 0.0
    %1286 = vmatpush2.xpose.msra.mxu0 0.0
    %1287 = vmatprep.subr.mxu0 0.0
    %1288 = vmatpush2.xpose.msra.mxu0 0.0
    %1289 = vmatprep.subr.mxu0 0.0
    %1290 = vmatpush2.xpose.msra.mxu0 0.0
    %1291 = vmatprep.subr.mxu0 0.0
    %1292 = vmatpush2.xpose.msra.mxu0 0.0
    %1293 = vmatprep.subr.mxu0 0.0
    %1294 = vmatpush2.xpose.msra.mxu0 0.0
    %1295 = vmatprep.subr.mxu0 0.0
    %1296 = vmatpush2.xpose.msra.mxu0 0.0
    %1297 = vmatprep.subr.mxu0 0.0
    %1298 = vmatpush2.xpose.msra.mxu0 0.0
    %1299 = vmatprep.subr.mxu0 0.0
    %1300 = vmatpush2.xpose.msra.mxu0 0.0
    %1301 = vmatprep.subr.mxu0 0.0
    %1302 = vmatpush2.xpose.msra.mxu0 0.0
    %1303 = vmatprep.subr.mxu0 0.0
    %1304 = vmatpush2.xpose.msra.mxu0 0.0
    %1305 = vmatprep.subr.mxu0 0.0
    %1306 = vmatpush2.xpose.msra.mxu0 0.0
    %1307 = vmatprep.subr.mxu0 0.0
    %1308 = vmatpush2.xpose.msra.mxu0 0.0
    %1309 = vmatprep.mubr.f32.mxu0 0.0
    %1310 = vmatmul.mubr.f32.gmra.mxu0 %v1241
    %v1311 = vpop.f32.mrf.mxu0
    %v1312 = vadd.f32 0.0, %v1311
    %v1313 = vpop.f32.mrf.mxu0
    %1314 = vdwg.mxu0
    %1315 = vrot.lane.b32.xlu0 %v225, 80
    %v1316 = vpop.permute.xlu0 %1315
    %1317 = vrot.lane.b32.xlu0 %v225, 16
    %v1318 = vpop.permute.xlu0 %1317
    %v1319 = vsel %vm232, %v1316, 0
    %v1321 = vsel %vm232, %v1318, 0
    %1323 = vmatprep.subr.mxu0 0.0
    %1324 = vmatpush1.xpose.msra.mxu0 0.0
    %1325 = vmatprep.subr.mxu0 0.0
    %1326 = vmatpush1.xpose.msra.mxu0 0.0
    %1327 = vmatprep.subr.mxu0 0.0
    %1328 = vmatpush1.xpose.msra.mxu0 0.0
    %1329 = vmatprep.subr.mxu0 0.0
    %1330 = vmatpush1.xpose.msra.mxu0 0.0
    %1331 = vmatprep.subr.mxu0 0.0
    %1332 = vmatpush1.xpose.msra.mxu0 0.0
    %1333 = vmatprep.subr.mxu0 0.0
    %1334 = vmatpush1.xpose.msra.mxu0 0.0
    %1335 = vmatprep.subr.mxu0 0.0
    %1336 = vmatpush1.xpose.msra.mxu0 0.0
    %1337 = vmatprep.subr.mxu0 0.0
    %1338 = vmatpush1.xpose.msra.mxu0 0.0
    %1339 = vmatprep.subr.mxu0 0.0
    %1340 = vmatpush1.xpose.msra.mxu0 0.0
    %1341 = vmatprep.subr.mxu0 0.0
    %1342 = vmatpush1.xpose.msra.mxu0 0.0
    %1343 = vmatprep.subr.mxu0 0.0
    %1344 = vmatpush1.xpose.msra.mxu0 0.0
    %1345 = vmatprep.subr.mxu0 0.0
    %1346 = vmatpush1.xpose.msra.mxu0 0.0
    %1347 = vmatprep.subr.mxu0 0.0
    %1348 = vmatpush1.xpose.msra.mxu0 0.0
    %1349 = vmatprep.subr.mxu0 0.0
    %1350 = vmatpush1.xpose.msra.mxu0 0.0
    %1351 = vmatprep.subr.mxu0 0.0
    %1352 = vmatpush1.xpose.msra.mxu0 0.0
    %1353 = vmatprep.subr.mxu0 0.0
    %1354 = vmatpush1.xpose.msra.mxu0 %v1321
    %1355 = vmatprep.subr.mxu0 0.0
    %1356 = vmatpush2.xpose.msra.mxu0 0.0
    %1357 = vmatprep.subr.mxu0 0.0
    %1358 = vmatpush2.xpose.msra.mxu0 0.0
    %1359 = vmatprep.subr.mxu0 0.0
    %1360 = vmatpush2.xpose.msra.mxu0 0.0
    %1361 = vmatprep.subr.mxu0 0.0
    %1362 = vmatpush2.xpose.msra.mxu0 0.0
    %1363 = vmatprep.subr.mxu0 0.0
    %1364 = vmatpush2.xpose.msra.mxu0 0.0
    %1365 = vmatprep.subr.mxu0 0.0
    %1366 = vmatpush2.xpose.msra.mxu0 0.0
    %1367 = vmatprep.subr.mxu0 0.0
    %1368 = vmatpush2.xpose.msra.mxu0 0.0
    %1369 = vmatprep.subr.mxu0 0.0
    %1370 = vmatpush2.xpose.msra.mxu0 0.0
    %1371 = vmatprep.subr.mxu0 0.0
    %1372 = vmatpush2.xpose.msra.mxu0 0.0
    %1373 = vmatprep.subr.mxu0 0.0
    %1374 = vmatpush2.xpose.msra.mxu0 0.0
    %1375 = vmatprep.subr.mxu0 0.0
    %1376 = vmatpush2.xpose.msra.mxu0 0.0
    %1377 = vmatprep.subr.mxu0 0.0
    %1378 = vmatpush2.xpose.msra.mxu0 0.0
    %1379 = vmatprep.subr.mxu0 0.0
    %1380 = vmatpush2.xpose.msra.mxu0 0.0
    %1381 = vmatprep.subr.mxu0 0.0
    %1382 = vmatpush2.xpose.msra.mxu0 0.0
    %1383 = vmatprep.subr.mxu0 0.0
    %1384 = vmatpush2.xpose.msra.mxu0 0.0
    %1385 = vmatprep.subr.mxu0 0.0
    %1386 = vmatpush2.xpose.msra.mxu0 0.0
    %1387 = vmatprep.mubr.f32.mxu0 0.0
    %1388 = vmatmul.mubr.f32.gmra.mxu0 %v1319
    %v1389 = vpop.f32.mrf.mxu0
    %v1390 = vadd.f32 0.0, %v1389
    %v1391 = vpop.f32.mrf.mxu0
    %1392 = vdwg.mxu0
    %v1393 = vmul.f32 %v1312, 0.25
    %v1394 = vmul.f32 %v1390, 0.25
    %v1395 = vadd.f32 %v1393, %v389
    %v1396 = vadd.f32 %v1394, %v393
    %v1397 = vsel %vm398, %v1395, -inf
    %1398 = vmax.xlane.f32.xlu0 %v1397
    %v1399 = vpop.xlane.xlu0 %1398
    %v1400 = vsel %vm398, %v1396, -inf
    %1401 = vmax.xlane.f32.xlu0 %v1400
    %v1402 = vpop.xlane.xlu0 %1401
    %v1403 = vsub.f32 %v1395, %v1399
    %v1404 = vsub.f32 %v1396, %v1402
    %v1405 = vmul.f32 %v1403, 1.442695
    %v1406 = vpow.pop %v1405
    %v1407 = vmul.f32 %v1404, 1.442695
    %v1408 = vpow.pop %v1407
    %v1409 = vsel %vm398, %v1406, 0.0
    %1410 = vadd.xlane.f32.xlu0 %v1409
    %v1411 = vpop.xlane.xlu0 %1410
    %v1412 = vsel %vm398, %v1408, 0.0
    %1413 = vadd.xlane.f32.xlu0 %v1412
    %v1414 = vpop.xlane.xlu0 %1413
    %v1415 = vrcp.pop %v1411
    %v1416 = vmul.f32 %v1406, %v1415
    %v1417 = vrcp.pop %v1414
    %v1418 = vmul.f32 %v1408, %v1417
    %1419 = vrot.lane.b32.xlu0 %v221, 80
    %v1420 = vpop.permute.xlu0 %1419
    %v1423 = vsel %vm398, %v1416, 0
    %1425 = vmatprep.subr.mxu0 0.0
    %1426 = vmatpush1.msra.mxu0 0.0
    %1427 = vmatprep.subr.mxu0 0.0
    %1428 = vmatpush1.msra.mxu0 0.0
    %1429 = vmatprep.subr.mxu0 0.0
    %1430 = vmatpush1.msra.mxu0 0.0
    %1431 = vmatprep.subr.mxu0 0.0
    %1432 = vmatpush1.msra.mxu0 0.0
    %1433 = vmatprep.subr.mxu0 0.0
    %1434 = vmatpush1.msra.mxu0 0.0
    %1435 = vmatprep.subr.mxu0 0.0
    %1436 = vmatpush1.msra.mxu0 0.0
    %1437 = vmatprep.subr.mxu0 0.0
    %1438 = vmatpush1.msra.mxu0 0.0
    %1439 = vmatprep.subr.mxu0 0.0
    %1440 = vmatpush1.msra.mxu0 0.0
    %1441 = vmatprep.subr.mxu0 0.0
    %1442 = vmatpush1.msra.mxu0 0.0
    %1443 = vmatprep.subr.mxu0 0.0
    %1444 = vmatpush1.msra.mxu0 0.0
    %1445 = vmatprep.subr.mxu0 0.0
    %1446 = vmatpush1.msra.mxu0 0.0
    %1447 = vmatprep.subr.mxu0 0.0
    %1448 = vmatpush1.msra.mxu0 0.0
    %1449 = vmatprep.subr.mxu0 0.0
    %1450 = vmatpush1.msra.mxu0 0.0
    %1451 = vmatprep.subr.mxu0 0.0
    %1452 = vmatpush1.msra.mxu0 0.0
    %1453 = vmatprep.subr.mxu0 0.0
    %1454 = vmatpush1.msra.mxu0 0.0
    %1455 = vmatprep.subr.mxu0 0.0
    %1456 = vmatpush1.msra.mxu0 %v1420
    %1457 = vmatprep.subr.mxu0 0.0
    %1458 = vmatpush2.msra.mxu0 0.0
    %1459 = vmatprep.subr.mxu0 0.0
    %1460 = vmatpush2.msra.mxu0 0.0
    %1461 = vmatprep.subr.mxu0 0.0
    %1462 = vmatpush2.msra.mxu0 0.0
    %1463 = vmatprep.subr.mxu0 0.0
    %1464 = vmatpush2.msra.mxu0 0.0
    %1465 = vmatprep.subr.mxu0 0.0
    %1466 = vmatpush2.msra.mxu0 0.0
    %1467 = vmatprep.subr.mxu0 0.0
    %1468 = vmatpush2.msra.mxu0 0.0
    %1469 = vmatprep.subr.mxu0 0.0
    %1470 = vmatpush2.msra.mxu0 0.0
    %1471 = vmatprep.subr.mxu0 0.0
    %1472 = vmatpush2.msra.mxu0 0.0
    %1473 = vmatprep.subr.mxu0 0.0
    %1474 = vmatpush2.msra.mxu0 0.0
    %1475 = vmatprep.subr.mxu0 0.0
    %1476 = vmatpush2.msra.mxu0 0.0
    %1477 = vmatprep.subr.mxu0 0.0
    %1478 = vmatpush2.msra.mxu0 0.0
    %1479 = vmatprep.subr.mxu0 0.0
    %1480 = vmatpush2.msra.mxu0 0.0
    %1481 = vmatprep.subr.mxu0 0.0
    %1482 = vmatpush2.msra.mxu0 0.0
    %1483 = vmatprep.subr.mxu0 0.0
    %1484 = vmatpush2.msra.mxu0 0.0
    %1485 = vmatprep.subr.mxu0 0.0
    %1486 = vmatpush2.msra.mxu0 0.0
    %1487 = vmatprep.subr.mxu0 0.0
    %1488 = vmatpush2.msra.mxu0 0.0
    %1489 = vmatprep.mubr.f32.mxu0 0.0
    %1490 = vmatmul.mubr.f32.gmra.mxu0 %v1423
    %v1491 = vpop.f32.mrf.mxu0
    %v1492 = vadd.f32 0.0, %v1491
    %v1493 = vpop.f32.mrf.mxu0
    %1494 = vdwg.mxu0
    %1495 = vrot.lane.b32.xlu0 %v227, 80
    %v1496 = vpop.permute.xlu0 %1495
    %v1499 = vsel %vm398, %v1418, 0
    %1501 = vmatprep.subr.mxu0 0.0
    %1502 = vmatpush1.msra.mxu0 0.0
    %1503 = vmatprep.subr.mxu0 0.0
    %1504 = vmatpush1.msra.mxu0 0.0
    %1505 = vmatprep.subr.mxu0 0.0
    %1506 = vmatpush1.msra.mxu0 0.0
    %1507 = vmatprep.subr.mxu0 0.0
    %1508 = vmatpush1.msra.mxu0 0.0
    %1509 = vmatprep.subr.mxu0 0.0
    %1510 = vmatpush1.msra.mxu0 0.0
    %1511 = vmatprep.subr.mxu0 0.0
    %1512 = vmatpush1.msra.mxu0 0.0
    %1513 = vmatprep.subr.mxu0 0.0
    %1514 = vmatpush1.msra.mxu0 0.0
    %1515 = vmatprep.subr.mxu0 0.0
    %1516 = vmatpush1.msra.mxu0 0.0
    %1517 = vmatprep.subr.mxu0 0.0
    %1518 = vmatpush1.msra.mxu0 0.0
    %1519 = vmatprep.subr.mxu0 0.0
    %1520 = vmatpush1.msra.mxu0 0.0
    %1521 = vmatprep.subr.mxu0 0.0
    %1522 = vmatpush1.msra.mxu0 0.0
    %1523 = vmatprep.subr.mxu0 0.0
    %1524 = vmatpush1.msra.mxu0 0.0
    %1525 = vmatprep.subr.mxu0 0.0
    %1526 = vmatpush1.msra.mxu0 0.0
    %1527 = vmatprep.subr.mxu0 0.0
    %1528 = vmatpush1.msra.mxu0 0.0
    %1529 = vmatprep.subr.mxu0 0.0
    %1530 = vmatpush1.msra.mxu0 0.0
    %1531 = vmatprep.subr.mxu0 0.0
    %1532 = vmatpush1.msra.mxu0 %v1496
    %1533 = vmatprep.subr.mxu0 0.0
    %1534 = vmatpush2.msra.mxu0 0.0
    %1535 = vmatprep.subr.mxu0 0.0
    %1536 = vmatpush2.msra.mxu0 0.0
    %1537 = vmatprep.subr.mxu0 0.0
    %1538 = vmatpush2.msra.mxu0 0.0
    %1539 = vmatprep.subr.mxu0 0.0
    %1540 = vmatpush2.msra.mxu0 0.0
    %1541 = vmatprep.subr.mxu0 0.0
    %1542 = vmatpush2.msra.mxu0 0.0
    %1543 = vmatprep.subr.mxu0 0.0
    %1544 = vmatpush2.msra.mxu0 0.0
    %1545 = vmatprep.subr.mxu0 0.0
    %1546 = vmatpush2.msra.mxu0 0.0
    %1547 = vmatprep.subr.mxu0 0.0
    %1548 = vmatpush2.msra.mxu0 0.0
    %1549 = vmatprep.subr.mxu0 0.0
    %1550 = vmatpush2.msra.mxu0 0.0
    %1551 = vmatprep.subr.mxu0 0.0
    %1552 = vmatpush2.msra.mxu0 0.0
    %1553 = vmatprep.subr.mxu0 0.0
    %1554 = vmatpush2.msra.mxu0 0.0
    %1555 = vmatprep.subr.mxu0 0.0
    %1556 = vmatpush2.msra.mxu0 0.0
    %1557 = vmatprep.subr.mxu0 0.0
    %1558 = vmatpush2.msra.mxu0 0.0
    %1559 = vmatprep.subr.mxu0 0.0
    %1560 = vmatpush2.msra.mxu0 0.0
    %1561 = vmatprep.subr.mxu0 0.0
    %1562 = vmatpush2.msra.mxu0 0.0
    %1563 = vmatprep.subr.mxu0 0.0
    %1564 = vmatpush2.msra.mxu0 0.0
    %1565 = vmatprep.mubr.f32.mxu0 0.0
    %1566 = vmatmul.mubr.f32.gmra.mxu0 %v1499
    %v1567 = vpop.f32.mrf.mxu0
    %v1568 = vadd.f32 0.0, %v1567
    %v1569 = vpop.f32.mrf.mxu0
    %1570 = vdwg.mxu0
    %1573 = vrot.lane.b32.xlu0 %v823, 16
    %v1574 = vpop.permute.xlu0 %1573
    %1575 = vrot.lane.b32.xlu0 %v900, 16
    %v1576 = vpop.permute.xlu0 %1575
    %1581 = vrot.lane.b32.xlu0 %v1158, 32
    %v1582 = vpop.permute.xlu0 %1581
    %1583 = vrot.lane.b32.xlu0 %v1234, 32
    %v1584 = vpop.permute.xlu0 %1583
    %1589 = vrot.lane.b32.xlu0 %v1492, 48
    %v1590 = vpop.permute.xlu0 %1589
    %1591 = vrot.lane.b32.xlu0 %v1568, 48
    %v1592 = vpop.permute.xlu0 %1591
    %v1595 = vsel %vm232, %v491, %v1574
    %v1596 = vsel %vm232, %v564, %v1576
    %v1597 = vsel %vm58, %v1595, %v1582
    %v1598 = vsel %vm58, %v1596, %v1584
    %vm1599 = vcmask 392192
    %v1600 = vsel %vm1599, %v1597, %v1590
    %v1601 = vsel %vm1599, %v1598, %v1592
    %v1602 = vld [vmem:[%s6] sm:$0xff]
    %v1603 = vld [vmem:[%s6 + $0x8] sm:$0xff]
    %v1604 = vld [vmem:[%s6 + $0x10] sm:$0xff]
    %v1605 = vld [vmem:[%s6 + $0x18] sm:$0xff]
    %v1606 = vld [vmem:[%s6 + $0x20] sm:$0xff]
    %v1607 = vld [vmem:[%s6 + $0x28] sm:$0xff]
    %v1608 = vld [vmem:[%s6 + $0x30] sm:$0xff]
    %v1609 = vld [vmem:[%s6 + $0x38] sm:$0xff]
    %v1610 = vld [vmem:[%s7] sm:$0x1]
    %v1612 = vlaneseq
    %v1613 = vshrl.u32 %v1612, 7
    %v1614 = vsub.s32 0, %v1613
    %v1615 = vrot.slane %v1610, %v1614
    %vm1617 = vcmask 523264
    %v1619 = vsel %vm1617, %v1600, 0
    %v1622 = vsel %vm1617, %v1601, 0
    %1624 = vmatprep.subr.mxu0 0.0
    %1625 = vmatpush1.msra.mxu0 0.0
    %1626 = vmatprep.subr.mxu0 0.0
    %1627 = vmatpush1.msra.mxu0 0.0
    %1628 = vmatprep.subr.mxu0 0.0
    %1629 = vmatpush1.msra.mxu0 0.0
    %1630 = vmatprep.subr.mxu0 0.0
    %1631 = vmatpush1.msra.mxu0 0.0
    %1632 = vmatprep.subr.mxu0 0.0
    %1633 = vmatpush1.msra.mxu0 0.0
    %1634 = vmatprep.subr.mxu0 0.0
    %1635 = vmatpush1.msra.mxu0 0.0
    %1636 = vmatprep.subr.mxu0 0.0
    %1637 = vmatpush1.msra.mxu0 0.0
    %1638 = vmatprep.subr.mxu0 0.0
    %1639 = vmatpush1.msra.mxu0 0.0
    %1640 = vmatprep.subr.mxu0 0.0
    %1641 = vmatpush1.msra.mxu0 %v1609
    %1642 = vmatprep.subr.mxu0 0.0
    %1643 = vmatpush1.msra.mxu0 %v1608
    %1644 = vmatprep.subr.mxu0 0.0
    %1645 = vmatpush1.msra.mxu0 %v1607
    %1646 = vmatprep.subr.mxu0 0.0
    %1647 = vmatpush1.msra.mxu0 %v1606
    %1648 = vmatprep.subr.mxu0 0.0
    %1649 = vmatpush1.msra.mxu0 %v1605
    %1650 = vmatprep.subr.mxu0 0.0
    %1651 = vmatpush1.msra.mxu0 %v1604
    %1652 = vmatprep.subr.mxu0 0.0
    %1653 = vmatpush1.msra.mxu0 %v1603
    %1654 = vmatprep.subr.mxu0 0.0
    %1655 = vmatpush1.msra.mxu0 %v1602
    %1656 = vmatprep.subr.mxu0 0.0
    %1657 = vmatpush2.msra.mxu0 0.0
    %1658 = vmatprep.subr.mxu0 0.0
    %1659 = vmatpush2.msra.mxu0 0.0
    %1660 = vmatprep.subr.mxu0 0.0
    %1661 = vmatpush2.msra.mxu0 0.0
    %1662 = vmatprep.subr.mxu0 0.0
    %1663 = vmatpush2.msra.mxu0 0.0
    %1664 = vmatprep.subr.mxu0 0.0
    %1665 = vmatpush2.msra.mxu0 0.0
    %1666 = vmatprep.subr.mxu0 0.0
    %1667 = vmatpush2.msra.mxu0 0.0
    %1668 = vmatprep.subr.mxu0 0.0
    %1669 = vmatpush2.msra.mxu0 0.0
    %1670 = vmatprep.subr.mxu0 0.0
    %1671 = vmatpush2.msra.mxu0 0.0
    %1672 = vmatprep.subr.mxu0 0.0
    %1673 = vmatpush2.msra.mxu0 0.0
    %1674 = vmatprep.subr.mxu0 0.0
    %1675 = vmatpush2.msra.mxu0 0.0
    %1676 = vmatprep.subr.mxu0 0.0
    %1677 = vmatpush2.msra.mxu0 0.0
    %1678 = vmatprep.subr.mxu0 0.0
    %1679 = vmatpush2.msra.mxu0 0.0
    %1680 = vmatprep.subr.mxu0 0.0
    %1681 = vmatpush2.msra.mxu0 0.0
    %1682 = vmatprep.subr.mxu0 0.0
    %1683 = vmatpush2.msra.mxu0 0.0
    %1684 = vmatprep.subr.mxu0 0.0
    %1685 = vmatpush2.msra.mxu0 0.0
    %1686 = vmatprep.subr.mxu0 0.0
    %1687 = vmatpush2.msra.mxu0 0.0
    %1688 = vmatprep.mubr.f32.mxu0 0.0
    %1689 = vmatmul.mubr.f32.gmra.mxu0 %v1619
    %v1690 = vpop.f32.mrf.mxu0
    %v1691 = vadd.f32 %v1615, %v1690
    %v1692 = vpop.f32.mrf.mxu0
    %1693 = vmatprep.mubr.f32.mxu0 0.0
    %1694 = vmatmul.mubr.f32.gmra.mxu0 %v1622
    %v1695 = vpop.f32.mrf.mxu0
    %v1696 = vadd.f32 %v1615, %v1695
    %v1697 = vpop.f32.mrf.mxu0
    %1698 = vdwg.mxu0
    %v1699 = vld [vmem:[%s8] sm:$0xff]
    %v1700 = vld [vmem:[%s8 + $0x8] sm:$0xff]
    %v1701 = vld [vmem:[%s8 + $0x10] sm:$0xff]
    %v1702 = vld [vmem:[%s8 + $0x18] sm:$0xff]
    %v1703 = vld [vmem:[%s9] sm:$0x1]
    %v1705 = vlaneseq
    %v1706 = vshrl.u32 %v1705, 7
    %v1707 = vsub.s32 0, %v1706
    %v1708 = vrot.slane %v1703, %v1707
    %v1711 = vsel %vm58, %v1691, 0
    %v1714 = vsel %vm58, %v1696, 0
    %1716 = vmatprep.subr.mxu0 0.0
    %1717 = vmatpush1.msra.mxu0 0.0
    %1718 = vmatprep.subr.mxu0 0.0
    %1719 = vmatpush1.msra.mxu0 0.0
    %1720 = vmatprep.subr.mxu0 0.0
    %1721 = vmatpush1.msra.mxu0 0.0
    %1722 = vmatprep.subr.mxu0 0.0
    %1723 = vmatpush1.msra.mxu0 0.0
    %1724 = vmatprep.subr.mxu0 0.0
    %1725 = vmatpush1.msra.mxu0 0.0
    %1726 = vmatprep.subr.mxu0 0.0
    %1727 = vmatpush1.msra.mxu0 0.0
    %1728 = vmatprep.subr.mxu0 0.0
    %1729 = vmatpush1.msra.mxu0 0.0
    %1730 = vmatprep.subr.mxu0 0.0
    %1731 = vmatpush1.msra.mxu0 0.0
    %1732 = vmatprep.subr.mxu0 0.0
    %1733 = vmatpush1.msra.mxu0 0.0
    %1734 = vmatprep.subr.mxu0 0.0
    %1735 = vmatpush1.msra.mxu0 0.0
    %1736 = vmatprep.subr.mxu0 0.0
    %1737 = vmatpush1.msra.mxu0 0.0
    %1738 = vmatprep.subr.mxu0 0.0
    %1739 = vmatpush1.msra.mxu0 0.0
    %1740 = vmatprep.subr.mxu0 0.0
    %1741 = vmatpush1.msra.mxu0 %v1702
    %1742 = vmatprep.subr.mxu0 0.0
    %1743 = vmatpush1.msra.mxu0 %v1701
    %1744 = vmatprep.subr.mxu0 0.0
    %1745 = vmatpush1.msra.mxu0 %v1700
    %1746 = vmatprep.subr.mxu0 0.0
    %1747 = vmatpush1.msra.mxu0 %v1699
    %1748 = vmatprep.subr.mxu0 0.0
    %1749 = vmatpush2.msra.mxu0 0.0
    %1750 = vmatprep.subr.mxu0 0.0
    %1751 = vmatpush2.msra.mxu0 0.0
    %1752 = vmatprep.subr.mxu0 0.0
    %1753 = vmatpush2.msra.mxu0 0.0
    %1754 = vmatprep.subr.mxu0 0.0
    %1755 = vmatpush2.msra.mxu0 0.0
    %1756 = vmatprep.subr.mxu0 0.0
    %1757 = vmatpush2.msra.mxu0 0.0
    %1758 = vmatprep.subr.mxu0 0.0
    %1759 = vmatpush2.msra.mxu0 0.0
    %1760 = vmatprep.subr.mxu0 0.0
    %1761 = vmatpush2.msra.mxu0 0.0
    %1762 = vmatprep.subr.mxu0 0.0
    %1763 = vmatpush2.msra.mxu0 0.0
    %1764 = vmatprep.subr.mxu0 0.0
    %1765 = vmatpush2.msra.mxu0 0.0
    %1766 = vmatprep.subr.mxu0 0.0
    %1767 = vmatpush2.msra.mxu0 0.0
    %1768 = vmatprep.subr.mxu0 0.0
    %1769 = vmatpush2.msra.mxu0 0.0
    %1770 = vmatprep.subr.mxu0 0.0
    %1771 = vmatpush2.msra.mxu0 0.0
    %1772 = vmatprep.subr.mxu0 0.0
    %1773 = vmatpush2.msra.mxu0 0.0
    %1774 = vmatprep.subr.mxu0 0.0
    %1775 = vmatpush2.msra.mxu0 0.0
    %1776 = vmatprep.subr.mxu0 0.0
    %1777 = vmatpush2.msra.mxu0 0.0
    %1778 = vmatprep.subr.mxu0 0.0
    %1779 = vmatpush2.msra.mxu0 0.0
    %1780 = vmatprep.mubr.f32.mxu0 0.0
    %1781 = vmatmul.mubr.f32.gmra.mxu0 %v1711
    %v1782 = vpop.f32.mrf.mxu0
    %v1783 = vadd.f32 %v1708, %v1782
    %v1784 = vpop.f32.mrf.mxu0
    %1785 = vmatprep.mubr.f32.mxu0 0.0
    %1786 = vmatmul.mubr.f32.gmra.mxu0 %v1714
    %v1787 = vpop.f32.mrf.mxu0
    %v1788 = vadd.f32 %v1708, %v1787
    %v1789 = vpop.f32.mrf.mxu0
    %1790 = vdwg.mxu0
    %vm1791 = vcmask 15360
    %v1792 = vsel %vm1791, %v1783, -inf
    %1793 = vmax.xlane.f32.xlu0 %v1792
    %v1794 = vpop.xlane.xlu0 %1793
    %v1795 = vsel %vm1791, %v1788, -inf
    %1796 = vmax.xlane.f32.xlu0 %v1795
    %v1797 = vpop.xlane.xlu0 %1796
    %v1798 = vsub.f32 %v1783, %v1794
    %v1799 = vsub.f32 %v1788, %v1797
    %v1800 = vmul.f32 %v1798, 1.442695
    %v1801 = vpow.pop %v1800
    %v1802 = vmul.f32 %v1799, 1.442695
    %v1803 = vpow.pop %v1802
    %v1804 = vsel %vm1791, %v1801, 0.0
    %1805 = vadd.xlane.f32.xlu0 %v1804
    %v1806 = vpop.xlane.xlu0 %1805
    %v1807 = vsel %vm1791, %v1803, 0.0
    %1808 = vadd.xlane.f32.xlu0 %v1807
    %v1809 = vpop.xlane.xlu0 %1808
    %v1810 = vrcp.pop %v1806
    %v1811 = vmul.f32 %v1801, %v1810
    %v1812 = vrcp.pop %v1809
    %v1813 = vmul.f32 %v1803, %v1812
    %v1814 = vsel %vm1791, %v1811, -inf
    %1815 = vmax.xlane.f32.xlu0 %v1814
    %v1816 = vpop.xlane.xlu0 %1815
    %v1817 = vsel %vm1791, %v1813, -inf
    %1818 = vmax.xlane.f32.xlu0 %v1817
    %v1819 = vpop.xlane.xlu0 %1818
    %1822 = vrot.lane.b32.xlu0 %v1811, 127
    %v1823 = vpop.permute.xlu0 %1822
    %1824 = vrot.lane.b32.xlu0 %v1813, 127
    %v1825 = vpop.permute.xlu0 %1824
    %vm1828 = vcmp.ge.f32.partialorder %v1811, %v1823
    %vm1829 = vcmp.ge.f32.partialorder %v1813, %v1825
    %v1830 = vld [vmem:[%s10] sm:$0xff]
    %v1831 = vld [vmem:[%s10 + $0x8] sm:$0xff]
    %v1832 = vld [vmem:[%s10 + $0x10] sm:$0xff]
    %v1833 = vld [vmem:[%s10 + $0x18] sm:$0xff]
    %v1834 = vld [vmem:[%s11] sm:$0x1]
    %v1836 = vlaneseq
    %v1837 = vshrl.u32 %v1836, 7
    %v1838 = vsub.s32 0, %v1837
    %v1839 = vrot.slane %v1834, %v1838
    %1841 = vmatprep.subr.mxu0 0.0
    %1842 = vmatpush1.msra.mxu0 0.0
    %1843 = vmatprep.subr.mxu0 0.0
    %1844 = vmatpush1.msra.mxu0 0.0
    %1845 = vmatprep.subr.mxu0 0.0
    %1846 = vmatpush1.msra.mxu0 0.0
    %1847 = vmatprep.subr.mxu0 0.0
    %1848 = vmatpush1.msra.mxu0 0.0
    %1849 = vmatprep.subr.mxu0 0.0
    %1850 = vmatpush1.msra.mxu0 0.0
    %1851 = vmatprep.subr.mxu0 0.0
    %1852 = vmatpush1.msra.mxu0 0.0
    %1853 = vmatprep.subr.mxu0 0.0
    %1854 = vmatpush1.msra.mxu0 0.0
    %1855 = vmatprep.subr.mxu0 0.0
    %1856 = vmatpush1.msra.mxu0 0.0
    %1857 = vmatprep.subr.mxu0 0.0
    %1858 = vmatpush1.msra.mxu0 0.0
    %1859 = vmatprep.subr.mxu0 0.0
    %1860 = vmatpush1.msra.mxu0 0.0
    %1861 = vmatprep.subr.mxu0 0.0
    %1862 = vmatpush1.msra.mxu0 0.0
    %1863 = vmatprep.subr.mxu0 0.0
    %1864 = vmatpush1.msra.mxu0 0.0
    %1865 = vmatprep.subr.mxu0 0.0
    %1866 = vmatpush1.msra.mxu0 %v1833
    %1867 = vmatprep.subr.mxu0 0.0
    %1868 = vmatpush1.msra.mxu0 %v1832
    %1869 = vmatprep.subr.mxu0 0.0
    %1870 = vmatpush1.msra.mxu0 %v1831
    %1871 = vmatprep.subr.mxu0 0.0
    %1872 = vmatpush1.msra.mxu0 %v1830
    %1873 = vmatprep.subr.mxu0 0.0
    %1874 = vmatpush2.msra.mxu0 0.0
    %1875 = vmatprep.subr.mxu0 0.0
    %1876 = vmatpush2.msra.mxu0 0.0
    %1877 = vmatprep.subr.mxu0 0.0
    %1878 = vmatpush2.msra.mxu0 0.0
    %1879 = vmatprep.subr.mxu0 0.0
    %1880 = vmatpush2.msra.mxu0 0.0
    %1881 = vmatprep.subr.mxu0 0.0
    %1882 = vmatpush2.msra.mxu0 0.0
    %1883 = vmatprep.subr.mxu0 0.0
    %1884 = vmatpush2.msra.mxu0 0.0
    %1885 = vmatprep.subr.mxu0 0.0
    %1886 = vmatpush2.msra.mxu0 0.0
    %1887 = vmatprep.subr.mxu0 0.0
    %1888 = vmatpush2.msra.mxu0 0.0
    %1889 = vmatprep.subr.mxu0 0.0
    %1890 = vmatpush2.msra.mxu0 0.0
    %1891 = vmatprep.subr.mxu0 0.0
    %1892 = vmatpush2.msra.mxu0 0.0
    %1893 = vmatprep.subr.mxu0 0.0
    %1894 = vmatpush2.msra.mxu0 0.0
    %1895 = vmatprep.subr.mxu0 0.0
    %1896 = vmatpush2.msra.mxu0 0.0
    %1897 = vmatprep.subr.mxu0 0.0
    %1898 = vmatpush2.msra.mxu0 0.0
    %1899 = vmatprep.subr.mxu0 0.0
    %1900 = vmatpush2.msra.mxu0 0.0
    %1901 = vmatprep.subr.mxu0 0.0
    %1902 = vmatpush2.msra.mxu0 0.0
    %1903 = vmatprep.subr.mxu0 0.0
    %1904 = vmatpush2.msra.mxu0 0.0
    %1905 = vmatprep.mubr.f32.mxu0 0.0
    %1906 = vmatmul.mubr.f32.gmra.mxu0 %v1711
    %v1907 = vpop.f32.mrf.mxu0
    %v1908 = vadd.f32 %v1839, %v1907
    %v1909 = vpop.f32.mrf.mxu0
    %1910 = vmatprep.mubr.f32.mxu0 0.0
    %1911 = vmatmul.mubr.f32.gmra.mxu0 %v1714
    %v1912 = vpop.f32.mrf.mxu0
    %v1913 = vadd.f32 %v1839, %v1912
    %v1914 = vpop.f32.mrf.mxu0
    %1915 = vdwg.mxu0
    %v1916 = vmul.f32 %v1908, %v1908
    %v1917 = vmul.f32 %v1913, %v1913
    %v1918 = vmul.f32 %v1908, %v1916
    %v1919 = vmul.f32 %v1913, %v1917
    %v1920 = vmul.f32 %v1918, 0.044715
    %v1921 = vmul.f32 %v1919, 0.044715
    %v1922 = vadd.f32 %v1908, %v1920
    %v1923 = vadd.f32 %v1913, %v1921
    %v1924 = vmul.f32 %v1922, 0.7978846
    %v1925 = vmul.f32 %v1923, 0.7978846
    %v1926 = vtanh.pop %v1924
    %v1927 = vtanh.pop %v1925
    %v1928 = vadd.f32 %v1926, 1.0
    %v1929 = vadd.f32 %v1927, 1.0
    %v1930 = vmul.f32 %v1928, 0.5
    %v1931 = vmul.f32 %v1929, 0.5
    %v1932 = vmul.f32 %v1908, %v1930
    %v1933 = vmul.f32 %v1913, %v1931
    %v1934 = vld [vmem:[%s12] sm:$0xff]
    %v1935 = vld [vmem:[%s12 + $0x8] sm:$0xff]
    %v1936 = vld [vmem:[%s12 + $0x10] sm:$0xff]
    %v1937 = vld [vmem:[%s12 + $0x18] sm:$0xff]
    %v1938 = vld [vmem:[%s12 + $0x20] sm:$0xff]
    %v1939 = vld [vmem:[%s12 + $0x28] sm:$0xff]
    %v1940 = vld [vmem:[%s12 + $0x30] sm:$0xff]
    %v1941 = vld [vmem:[%s12 + $0x38] sm:$0xff]
    %v1942 = vld [vmem:[%s12 + $0x40] sm:$0xff]
    %v1943 = vld [vmem:[%s12 + $0x48] sm:$0xff]
    %v1944 = vld [vmem:[%s12 + $0x50] sm:$0xff]
    %v1945 = vld [vmem:[%s12 + $0x58] sm:$0xff]
    %v1946 = vld [vmem:[%s12 + $0x60] sm:$0xff]
    %v1947 = vld [vmem:[%s12 + $0x68] sm:$0xff]
    %v1948 = vld [vmem:[%s12 + $0x70] sm:$0xff]
    %v1949 = vld [vmem:[%s12 + $0x78] sm:$0xff]
    %v1950 = vld [vmem:[%s13] sm:$0x1]
    %v1952 = vlaneseq
    %v1953 = vshrl.u32 %v1952, 7
    %v1954 = vsub.s32 0, %v1953
    %v1955 = vrot.slane %v1950, %v1954
    %1957 = vmatprep.subr.mxu0 0.0
    %1958 = vmatpush1.msra.mxu0 %v1949
    %1959 = vmatprep.subr.mxu0 0.0
    %1960 = vmatpush1.msra.mxu0 %v1948
    %1961 = vmatprep.subr.mxu0 0.0
    %1962 = vmatpush1.msra.mxu0 %v1947
    %1963 = vmatprep.subr.mxu0 0.0
    %1964 = vmatpush1.msra.mxu0 %v1946
    %1965 = vmatprep.subr.mxu0 0.0
    %1966 = vmatpush1.msra.mxu0 %v1945
    %1967 = vmatprep.subr.mxu0 0.0
    %1968 = vmatpush1.msra.mxu0 %v1944
    %1969 = vmatprep.subr.mxu0 0.0
    %1970 = vmatpush1.msra.mxu0 %v1943
    %1971 = vmatprep.subr.mxu0 0.0
    %1972 = vmatpush1.msra.mxu0 %v1942
    %1973 = vmatprep.subr.mxu0 0.0
    %1974 = vmatpush1.msra.mxu0 %v1941
    %1975 = vmatprep.subr.mxu0 0.0
    %1976 = vmatpush1.msra.mxu0 %v1940
    %1977 = vmatprep.subr.mxu0 0.0
    %1978 = vmatpush1.msra.mxu0 %v1939
    %1979 = vmatprep.subr.mxu0 0.0
    %1980 = vmatpush1.msra.mxu0 %v1938
    %1981 = vmatprep.subr.mxu0 0.0
    %1982 = vmatpush1.msra.mxu0 %v1937
    %1983 = vmatprep.subr.mxu0 0.0
    %1984 = vmatpush1.msra.mxu0 %v1936
    %1985 = vmatprep.subr.mxu0 0.0
    %1986 = vmatpush1.msra.mxu0 %v1935
    %1987 = vmatprep.subr.mxu0 0.0
    %1988 = vmatpush1.msra.mxu0 %v1934
    %1989 = vmatprep.subr.mxu0 0.0
    %1990 = vmatpush2.msra.mxu0 0.0
    %1991 = vmatprep.subr.mxu0 0.0
    %1992 = vmatpush2.msra.mxu0 0.0
    %1993 = vmatprep.subr.mxu0 0.0
    %1994 = vmatpush2.msra.mxu0 0.0
    %1995 = vmatprep.subr.mxu0 0.0
    %1996 = vmatpush2.msra.mxu0 0.0
    %1997 = vmatprep.subr.mxu0 0.0
    %1998 = vmatpush2.msra.mxu0 0.0
    %1999 = vmatprep.subr.mxu0 0.0
    %2000 = vmatpush2.msra.mxu0 0.0
    %2001 = vmatprep.subr.mxu0 0.0
    %2002 = vmatpush2.msra.mxu0 0.0
    %2003 = vmatprep.subr.mxu0 0.0
    %2004 = vmatpush2.msra.mxu0 0.0
    %2005 = vmatprep.subr.mxu0 0.0
    %2006 = vmatpush2.msra.mxu0 0.0
    %2007 = vmatprep.subr.mxu0 0.0
    %2008 = vmatpush2.msra.mxu0 0.0
    %2009 = vmatprep.subr.mxu0 0.0
    %2010 = vmatpush2.msra.mxu0 0.0
    %2011 = vmatprep.subr.mxu0 0.0
    %2012 = vmatpush2.msra.mxu0 0.0
    %2013 = vmatprep.subr.mxu0 0.0
    %2014 = vmatpush2.msra.mxu0 0.0
    %2015 = vmatprep.subr.mxu0 0.0
    %2016 = vmatpush2.msra.mxu0 0.0
    %2017 = vmatprep.subr.mxu0 0.0
    %2018 = vmatpush2.msra.mxu0 0.0
    %2019 = vmatprep.subr.mxu0 0.0
    %2020 = vmatpush2.msra.mxu0 0.0
    %2021 = vmatprep.mubr.f32.mxu0 0.0
    %2022 = vmatmul.mubr.f32.gmra.mxu0 %v1932
    %v2023 = vpop.f32.mrf.mxu0
    %v2024 = vadd.f32 %v1955, %v2023
    %v2025 = vpop.f32.mrf.mxu0
    %2026 = vmatprep.mubr.f32.mxu0 0.0
    %2027 = vmatmul.mubr.f32.gmra.mxu0 %v1933
    %v2028 = vpop.f32.mrf.mxu0
    %v2029 = vadd.f32 %v1955, %v2028
    %v2030 = vpop.f32.mrf.mxu0
    %2031 = vdwg.mxu0
    %v2032 = vsel %vm1828, 1, 0
    %v2033 = vsel %vm1829, 1, 0
    %2034 = vset.pattern.permute.xlu0 0
    %2035 = vperm.xlu0 %2034, %v2032
    %v2036 = vpop.permute.xlu0 %2035
    %2037 = vset.pattern.permute.xlu0 0
    %2038 = vperm.xlu0 %2037, %v2033
    %v2039 = vpop.permute.xlu0 %2038
    %vm2040 = vcmp.eq.s32.totalorder %v2036, 1
    %vm2041 = vcmp.eq.s32.totalorder %v2039, 1
    %2044 = vrot.lane.b32.xlu0 %v2024, 96
    %v2045 = vpop.permute.xlu0 %2044
    %2046 = vrot.lane.b32.xlu0 %v2029, 96
    %v2047 = vpop.permute.xlu0 %2046
    %v2050 = vsel %vm2040, %v2024, %v2045
    %v2051 = vsel %vm2041, %v2029, %v2047
    %v2052 = vmul.f32 %v2050, %v1816
    %v2053 = vmul.f32 %v2051, %v1819
    %v2054 = vadd.f32 %v1691, %v2052
    %v2055 = vadd.f32 %v1696, %v2053
    %v2056 = vld [vmem:[%s14] sm:$0x1]
    %v2057 = vld [vmem:[%s15] sm:$0x1]
    %v2058 = vsel %vm58, %v2054, 0.0
    %2059 = vadd.xlane.f32.xlu0 %v2058
    %v2060 = vpop.xlane.xlu0 %2059
    %v2061 = vsel %vm58, %v2055, 0.0
    %2062 = vadd.xlane.f32.xlu0 %v2061
    %v2063 = vpop.xlane.xlu0 %2062
    %v2064 = vmul.f32 %v2060, %v65
    %v2065 = vmul.f32 %v2063, %v65
    %v2066 = vsub.f32 %v2054, %v2064
    %v2067 = vsub.f32 %v2055, %v2065
    %v2068 = vmul.f32 %v2066, %v2066
    %v2069 = vmul.f32 %v2067, %v2067
    %v2070 = vsel %vm58, %v2068, 0.0
    %2071 = vadd.xlane.f32.xlu0 %v2070
    %v2072 = vpop.xlane.xlu0 %2071
    %v2073 = vsel %vm58, %v2069, 0.0
    %2074 = vadd.xlane.f32.xlu0 %v2073
    %v2075 = vpop.xlane.xlu0 %2074
    %v2076 = vmul.f32 %v2072, %v65
    %v2077 = vmul.f32 %v2075, %v65
    %v2078 = vadd.f32 %v2076, 1e-12
    %v2079 = vadd.f32 %v2077, 1e-12
    %v2080 = vrsqrt.pop %v2078
    %v2081 = vrsqrt.pop %v2079
    %v2082 = vmul.f32 %v2066, %v2080
    %v2083 = vmul.f32 %v2067, %v2081
    %v2085 = vlaneseq
    %v2086 = vshrl.u32 %v2085, 7
    %v2087 = vsub.s32 0, %v2086
    %v2088 = vrot.slane %v2056, %v2087
    %v2090 = vmul.f32 %v2082, %v2088
    %v2091 = vmul.f32 %v2083, %v2088
    %v2093 = vlaneseq
    %v2094 = vshrl.u32 %v2093, 7
    %v2095 = vsub.s32 0, %v2094
    %v2096 = vrot.slane %v2057, %v2095
    %v2098 = vadd.f32 %v2090, %v2096
    %v2099 = vadd.f32 %v2091, %v2096
    %s2100 = scalar_lea.vmem %s4, 64
    %v2101 = vld [vmem:[%s2100] sm:$0xff]
    %v2102 = vld [vmem:[%s2100 + $0x8] sm:$0xff]
    %v2103 = vld [vmem:[%s2100 + $0x10] sm:$0xff]
    %v2104 = vld [vmem:[%s2100 + $0x18] sm:$0xff]
    %v2105 = vld [vmem:[%s2100 + $0x20] sm:$0xff]
    %v2106 = vld [vmem:[%s2100 + $0x28] sm:$0xff]
    %v2107 = vld [vmem:[%s2100 + $0x30] sm:$0xff]
    %v2108 = vld [vmem:[%s2100 + $0x38] sm:$0xff]
    %s2109 = scalar_lea.vmem %s5, 2
    %v2110 = vld [vmem:[%s2109] sm:$0x3]
    %v2112 = vlaneseq
    %v2113 = vshrl.u32 %v2112, 7
    %v2114 = vsub.s32 0, %v2113
    %v2115 = vrot.slane %v2110, %v2114
    %v2116 = vlaneseq
    %v2117 = vshrl.u32 %v2116, 7
    %v2118 = vsub.s32 1, %v2117
    %v2119 = vrot.slane %v2110, %v2118
    %v2123 = vsel %vm58, %v2098, 0
    %v2126 = vsel %vm58, %v2099, 0
    %2128 = vmatprep.subr.mxu0 0.0
    %2129 = vmatpush1.msra.mxu0 0.0
    %2130 = vmatprep.subr.mxu0 0.0
    %2131 = vmatpush1.msra.mxu0 0.0
    %2132 = vmatprep.subr.mxu0 0.0
    %2133 = vmatpush1.msra.mxu0 0.0
    %2134 = vmatprep.subr.mxu0 0.0
    %2135 = vmatpush1.msra.mxu0 0.0
    %2136 = vmatprep.subr.mxu0 0.0
    %2137 = vmatpush1.msra.mxu0 0.0
    %2138 = vmatprep.subr.mxu0 0.0
    %2139 = vmatpush1.msra.mxu0 0.0
    %2140 = vmatprep.subr.mxu0 0.0
    %2141 = vmatpush1.msra.mxu0 0.0
    %2142 = vmatprep.subr.mxu0 0.0
    %2143 = vmatpush1.msra.mxu0 0.0
    %2144 = vmatprep.subr.mxu0 0.0
    %2145 = vmatpush1.msra.mxu0 0.0
    %2146 = vmatprep.subr.mxu0 0.0
    %2147 = vmatpush1.msra.mxu0 0.0
    %2148 = vmatprep.subr.mxu0 0.0
    %2149 = vmatpush1.msra.mxu0 0.0
    %2150 = vmatprep.subr.mxu0 0.0
    %2151 = vmatpush1.msra.mxu0 0.0
    %2152 = vmatprep.subr.mxu0 %v2108
    %2153 = vmatpush1.msra.mxu0 %v2107
    %2154 = vmatprep.subr.mxu0 %v2106
    %2155 = vmatpush1.msra.mxu0 %v2105
    %2156 = vmatprep.subr.mxu0 %v2104
    %2157 = vmatpush1.msra.mxu0 %v2103
    %2158 = vmatprep.subr.mxu0 %v2102
    %2159 = vmatpush1.msra.mxu0 %v2101
    %2160 = vmatprep.subr.mxu0 0.0
    %2161 = vmatpush2.msra.mxu0 0.0
    %2162 = vmatprep.subr.mxu0 0.0
    %2163 = vmatpush2.msra.mxu0 0.0
    %2164 = vmatprep.subr.mxu0 0.0
    %2165 = vmatpush2.msra.mxu0 0.0
    %2166 = vmatprep.subr.mxu0 0.0
    %2167 = vmatpush2.msra.mxu0 0.0
    %2168 = vmatprep.subr.mxu0 0.0
    %2169 = vmatpush2.msra.mxu0 0.0
    %2170 = vmatprep.subr.mxu0 0.0
    %2171 = vmatpush2.msra.mxu0 0.0
    %2172 = vmatprep.subr.mxu0 0.0
    %2173 = vmatpush2.msra.mxu0 0.0
    %2174 = vmatprep.subr.mxu0 0.0
    %2175 = vmatpush2.msra.mxu0 0.0
    %2176 = vmatprep.subr.mxu0 0.0
    %2177 = vmatpush2.msra.mxu0 0.0
    %2178 = vmatprep.subr.mxu0 0.0
    %2179 = vmatpush2.msra.mxu0 0.0
    %2180 = vmatprep.subr.mxu0 0.0
    %2181 = vmatpush2.msra.mxu0 0.0
    %2182 = vmatprep.subr.mxu0 0.0
    %2183 = vmatpush2.msra.mxu0 0.0
    %2184 = vmatprep.subr.mxu0 0.0
    %2185 = vmatpush2.msra.mxu0 0.0
    %2186 = vmatprep.subr.mxu0 0.0
    %2187 = vmatpush2.msra.mxu0 0.0
    %2188 = vmatprep.subr.mxu0 0.0
    %2189 = vmatpush2.msra.mxu0 0.0
    %2190 = vmatprep.subr.mxu0 0.0
    %2191 = vmatpush2.msra.mxu0 0.0
    %2192 = vmatprep.mubr.f32.mxu0 0.0
    %2193 = vmatmul.mubr.f32.gmra.mxu0 %v2123
    %v2194 = vpop.f32.mrf.mxu0
    %v2195 = vadd.f32 %v2115, %v2194
    %v2196 = vpop.f32.mrf.mxu0
    %v2197 = vadd.f32 %v2119, %v2196
    %2198 = vmatprep.mubr.f32.mxu0 0.0
    %2199 = vmatmul.mubr.f32.gmra.mxu0 %v2126
    %v2200 = vpop.f32.mrf.mxu0
    %v2201 = vadd.f32 %v2115, %v2200
    %v2202 = vpop.f32.mrf.mxu0
    %v2203 = vadd.f32 %v2119, %v2202
    %2204 = vdwg.mxu0
    %2206 = vrot.lane.b32.xlu0 %v2195, 64
    %v2207 = vpop.permute.xlu0 %2206
    %v2208 = vsel %vm232, %v2195, 0
    %v2210 = vsel %vm232, %v2207, 0
    %2212 = vmatprep.subr.mxu0 0.0
    %2213 = vmatpush1.xpose.msra.mxu0 0.0
    %2214 = vmatprep.subr.mxu0 0.0
    %2215 = vmatpush1.xpose.msra.mxu0 0.0
    %2216 = vmatprep.subr.mxu0 0.0
    %2217 = vmatpush1.xpose.msra.mxu0 0.0
    %2218 = vmatprep.subr.mxu0 0.0
    %2219 = vmatpush1.xpose.msra.mxu0 0.0
    %2220 = vmatprep.subr.mxu0 0.0
    %2221 = vmatpush1.xpose.msra.mxu0 0.0
    %2222 = vmatprep.subr.mxu0 0.0
    %2223 = vmatpush1.xpose.msra.mxu0 0.0
    %2224 = vmatprep.subr.mxu0 0.0
    %2225 = vmatpush1.xpose.msra.mxu0 0.0
    %2226 = vmatprep.subr.mxu0 0.0
    %2227 = vmatpush1.xpose.msra.mxu0 0.0
    %2228 = vmatprep.subr.mxu0 0.0
    %2229 = vmatpush1.xpose.msra.mxu0 0.0
    %2230 = vmatprep.subr.mxu0 0.0
    %2231 = vmatpush1.xpose.msra.mxu0 0.0
    %2232 = vmatprep.subr.mxu0 0.0
    %2233 = vmatpush1.xpose.msra.mxu0 0.0
    %2234 = vmatprep.subr.mxu0 0.0
    %2235 = vmatpush1.xpose.msra.mxu0 0.0
    %2236 = vmatprep.subr.mxu0 0.0
    %2237 = vmatpush1.xpose.msra.mxu0 0.0
    %2238 = vmatprep.subr.mxu0 0.0
    %2239 = vmatpush1.xpose.msra.mxu0 0.0
    %2240 = vmatprep.subr.mxu0 0.0
    %2241 = vmatpush1.xpose.msra.mxu0 0.0
    %2242 = vmatprep.subr.mxu0 0.0
    %2243 = vmatpush1.xpose.msra.mxu0 %v2210
    %2244 = vmatprep.subr.mxu0 0.0
    %2245 = vmatpush2.xpose.msra.mxu0 0.0
    %2246 = vmatprep.subr.mxu0 0.0
    %2247 = vmatpush2.xpose.msra.mxu0 0.0
    %2248 = vmatprep.subr.mxu0 0.0
    %2249 = vmatpush2.xpose.msra.mxu0 0.0
    %2250 = vmatprep.subr.mxu0 0.0
    %2251 = vmatpush2.xpose.msra.mxu0 0.0
    %2252 = vmatprep.subr.mxu0 0.0
    %2253 = vmatpush2.xpose.msra.mxu0 0.0
    %2254 = vmatprep.subr.mxu0 0.0
    %2255 = vmatpush2.xpose.msra.mxu0 0.0
    %2256 = vmatprep.subr.mxu0 0.0
    %2257 = vmatpush2.xpose.msra.mxu0 0.0
    %2258 = vmatprep.subr.mxu0 0.0
    %2259 = vmatpush2.xpose.msra.mxu0 0.0
    %2260 = vmatprep.subr.mxu0 0.0
    %2261 = vmatpush2.xpose.msra.mxu0 0.0
    %2262 = vmatprep.subr.mxu0 0.0
    %2263 = vmatpush2.xpose.msra.mxu0 0.0
    %2264 = vmatprep.subr.mxu0 0.0
    %2265 = vmatpush2.xpose.msra.mxu0 0.0
    %2266 = vmatprep.subr.mxu0 0.0
    %2267 = vmatpush2.xpose.msra.mxu0 0.0
    %2268 = vmatprep.subr.mxu0 0.0
    %2269 = vmatpush2.xpose.msra.mxu0 0.0
    %2270 = vmatprep.subr.mxu0 0.0
    %2271 = vmatpush2.xpose.msra.mxu0 0.0
    %2272 = vmatprep.subr.mxu0 0.0
    %2273 = vmatpush2.xpose.msra.mxu0 0.0
    %2274 = vmatprep.subr.mxu0 0.0
    %2275 = vmatpush2.xpose.msra.mxu0 0.0
    %2276 = vmatprep.mubr.f32.mxu0 0.0
    %2277 = vmatmul.mubr.f32.gmra.mxu0 %v2208
    %v2278 = vpop.f32.mrf.mxu0
    %v2279 = vadd.f32 0.0, %v2278
    %v2280 = vpop.f32.mrf.mxu0
    %2281 = vdwg.mxu0
    %2283 = vrot.lane.b32.xlu0 %v2201, 64
    %v2284 = vpop.permute.xlu0 %2283
    %v2285 = vsel %vm232, %v2201, 0
    %v2287 = vsel %vm232, %v2284, 0
    %2289 = vmatprep.subr.mxu0 0.0
    %2290 = vmatpush1.xpose.msra.mxu0 0.0
    %2291 = vmatprep.subr.mxu0 0.0
    %2292 = vmatpush1.xpose.msra.mxu0 0.0
    %2293 = vmatprep.subr.mxu0 0.0
    %2294 = vmatpush1.xpose.msra.mxu0 0.0
    %2295 = vmatprep.subr.mxu0 0.0
    %2296 = vmatpush1.xpose.msra.mxu0 0.0
    %2297 = vmatprep.subr.mxu0 0.0
    %2298 = vmatpush1.xpose.msra.mxu0 0.0
    %2299 = vmatprep.subr.mxu0 0.0
    %2300 = vmatpush1.xpose.msra.mxu0 0.0
    %2301 = vmatprep.subr.mxu0 0.0
    %2302 = vmatpush1.xpose.msra.mxu0 0.0
    %2303 = vmatprep.subr.mxu0 0.0
    %2304 = vmatpush1.xpose.msra.mxu0 0.0
    %2305 = vmatprep.subr.mxu0 0.0
    %2306 = vmatpush1.xpose.msra.mxu0 0.0
    %2307 = vmatprep.subr.mxu0 0.0
    %2308 = vmatpush1.xpose.msra.mxu0 0.0
    %2309 = vmatprep.subr.mxu0 0.0
    %2310 = vmatpush1.xpose.msra.mxu0 0.0
    %2311 = vmatprep.subr.mxu0 0.0
    %2312 = vmatpush1.xpose.msra.mxu0 0.0
    %2313 = vmatprep.subr.mxu0 0.0
    %2314 = vmatpush1.xpose.msra.mxu0 0.0
    %2315 = vmatprep.subr.mxu0 0.0
    %2316 = vmatpush1.xpose.msra.mxu0 0.0
    %2317 = vmatprep.subr.mxu0 0.0
    %2318 = vmatpush1.xpose.msra.mxu0 0.0
    %2319 = vmatprep.subr.mxu0 0.0
    %2320 = vmatpush1.xpose.msra.mxu0 %v2287
    %2321 = vmatprep.subr.mxu0 0.0
    %2322 = vmatpush2.xpose.msra.mxu0 0.0
    %2323 = vmatprep.subr.mxu0 0.0
    %2324 = vmatpush2.xpose.msra.mxu0 0.0
    %2325 = vmatprep.subr.mxu0 0.0
    %2326 = vmatpush2.xpose.msra.mxu0 0.0
    %2327 = vmatprep.subr.mxu0 0.0
    %2328 = vmatpush2.xpose.msra.mxu0 0.0
    %2329 = vmatprep.subr.mxu0 0.0
    %2330 = vmatpush2.xpose.msra.mxu0 0.0
    %2331 = vmatprep.subr.mxu0 0.0
    %2332 = vmatpush2.xpose.msra.mxu0 0.0
    %2333 = vmatprep.subr.mxu0 0.0
    %2334 = vmatpush2.xpose.msra.mxu0 0.0
    %2335 = vmatprep.subr.mxu0 0.0
    %2336 = vmatpush2.xpose.msra.mxu0 0.0
    %2337 = vmatprep.subr.mxu0 0.0
    %2338 = vmatpush2.xpose.msra.mxu0 0.0
    %2339 = vmatprep.subr.mxu0 0.0
    %2340 = vmatpush2.xpose.msra.mxu0 0.0
    %2341 = vmatprep.subr.mxu0 0.0
    %2342 = vmatpush2.xpose.msra.mxu0 0.0
    %2343 = vmatprep.subr.mxu0 0.0
    %2344 = vmatpush2.xpose.msra.mxu0 0.0
    %2345 = vmatprep.subr.mxu0 0.0
    %2346 = vmatpush2.xpose.msra.mxu0 0.0
    %2347 = vmatprep.subr.mxu0 0.0
    %2348 = vmatpush2.xpose.msra.mxu0 0.0
    %2349 = vmatprep.subr.mxu0 0.0
    %2350 = vmatpush2.xpose.msra.mxu0 0.0
    %2351 = vmatprep.subr.mxu0 0.0
    %2352 = vmatpush2.xpose.msra.mxu0 0.0
    %2353 = vmatprep.mubr.f32.mxu0 0.0
    %2354 = vmatmul.mubr.f32.gmra.mxu0 %v2285
    %v2355 = vpop.f32.mrf.mxu0
    %v2356 = vadd.f32 0.0, %v2355
    %v2357 = vpop.f32.mrf.mxu0
    %2358 = vdwg.mxu0
    %v2359 = vmul.f32 %v2279, 0.25
    %v2360 = vmul.f32 %v2356, 0.25
    %v2361 = vadd.f32 %v2359, %v389
    %v2362 = vadd.f32 %v2360, %v393
    %v2363 = vsel %vm398, %v2361, -inf
    %2364 = vmax.xlane.f32.xlu0 %v2363
    %v2365 = vpop.xlane.xlu0 %2364
    %v2366 = vsel %vm398, %v2362, -inf
    %2367 = vmax.xlane.f32.xlu0 %v2366
    %v2368 = vpop.xlane.xlu0 %2367
    %v2369 = vsub.f32 %v2361, %v2365
    %v2370 = vsub.f32 %v2362, %v2368
    %v2371 = vmul.f32 %v2369, 1.442695
    %v2372 = vpow.pop %v2371
    %v2373 = vmul.f32 %v2370, 1.442695
    %v2374 = vpow.pop %v2373
    %v2375 = vsel %vm398, %v2372, 0.0
    %2376 = vadd.xlane.f32.xlu0 %v2375
    %v2377 = vpop.xlane.xlu0 %2376
    %v2378 = vsel %vm398, %v2374, 0.0
    %2379 = vadd.xlane.f32.xlu0 %v2378
    %v2380 = vpop.xlane.xlu0 %2379
    %v2381 = vrcp.pop %v2377
    %v2382 = vmul.f32 %v2372, %v2381
    %v2383 = vrcp.pop %v2380
    %v2384 = vmul.f32 %v2374, %v2383
    %v2386 = vsel %vm398, %v2382, 0
    %2388 = vmatprep.subr.mxu0 0.0
    %2389 = vmatpush1.msra.mxu0 0.0
    %2390 = vmatprep.subr.mxu0 0.0
    %2391 = vmatpush1.msra.mxu0 0.0
    %2392 = vmatprep.subr.mxu0 0.0
    %2393 = vmatpush1.msra.mxu0 0.0
    %2394 = vmatprep.subr.mxu0 0.0
    %2395 = vmatpush1.msra.mxu0 0.0
    %2396 = vmatprep.subr.mxu0 0.0
    %2397 = vmatpush1.msra.mxu0 0.0
    %2398 = vmatprep.subr.mxu0 0.0
    %2399 = vmatpush1.msra.mxu0 0.0
    %2400 = vmatprep.subr.mxu0 0.0
    %2401 = vmatpush1.msra.mxu0 0.0
    %2402 = vmatprep.subr.mxu0 0.0
    %2403 = vmatpush1.msra.mxu0 0.0
    %2404 = vmatprep.subr.mxu0 0.0
    %2405 = vmatpush1.msra.mxu0 0.0
    %2406 = vmatprep.subr.mxu0 0.0
    %2407 = vmatpush1.msra.mxu0 0.0
    %2408 = vmatprep.subr.mxu0 0.0
    %2409 = vmatpush1.msra.mxu0 0.0
    %2410 = vmatprep.subr.mxu0 0.0
    %2411 = vmatpush1.msra.mxu0 0.0
    %2412 = vmatprep.subr.mxu0 0.0
    %2413 = vmatpush1.msra.mxu0 0.0
    %2414 = vmatprep.subr.mxu0 0.0
    %2415 = vmatpush1.msra.mxu0 0.0
    %2416 = vmatprep.subr.mxu0 0.0
    %2417 = vmatpush1.msra.mxu0 0.0
    %2418 = vmatprep.subr.mxu0 0.0
    %2419 = vmatpush1.msra.mxu0 %v2197
    %2420 = vmatprep.subr.mxu0 0.0
    %2421 = vmatpush2.msra.mxu0 0.0
    %2422 = vmatprep.subr.mxu0 0.0
    %2423 = vmatpush2.msra.mxu0 0.0
    %2424 = vmatprep.subr.mxu0 0.0
    %2425 = vmatpush2.msra.mxu0 0.0
    %2426 = vmatprep.subr.mxu0 0.0
    %2427 = vmatpush2.msra.mxu0 0.0
    %2428 = vmatprep.subr.mxu0 0.0
    %2429 = vmatpush2.msra.mxu0 0.0
    %2430 = vmatprep.subr.mxu0 0.0
    %2431 = vmatpush2.msra.mxu0 0.0
    %2432 = vmatprep.subr.mxu0 0.0
    %2433 = vmatpush2.msra.mxu0 0.0
    %2434 = vmatprep.subr.mxu0 0.0
    %2435 = vmatpush2.msra.mxu0 0.0
    %2436 = vmatprep.subr.mxu0 0.0
    %2437 = vmatpush2.msra.mxu0 0.0
    %2438 = vmatprep.subr.mxu0 0.0
    %2439 = vmatpush2.msra.mxu0 0.0
    %2440 = vmatprep.subr.mxu0 0.0
    %2441 = vmatpush2.msra.mxu0 0.0
    %2442 = vmatprep.subr.mxu0 0.0
    %2443 = vmatpush2.msra.mxu0 0.0
    %2444 = vmatprep.subr.mxu0 0.0
    %2445 = vmatpush2.msra.mxu0 0.0
    %2446 = vmatprep.subr.mxu0 0.0
    %2447 = vmatpush2.msra.mxu0 0.0
    %2448 = vmatprep.subr.mxu0 0.0
    %2449 = vmatpush2.msra.mxu0 0.0
    %2450 = vmatprep.subr.mxu0 0.0
    %2451 = vmatpush2.msra.mxu0 0.0
    %2452 = vmatprep.mubr.f32.mxu0 0.0
    %2453 = vmatmul.mubr.f32.gmra.mxu0 %v2386
    %v2454 = vpop.f32.mrf.mxu0
    %v2455 = vadd.f32 0.0, %v2454
    %v2456 = vpop.f32.mrf.mxu0
    %2457 = vdwg.mxu0
    %v2459 = vsel %vm398, %v2384, 0
    %2461 = vmatprep.subr.mxu0 0.0
    %2462 = vmatpush1.msra.mxu0 0.0
    %2463 = vmatprep.subr.mxu0 0.0
    %2464 = vmatpush1.msra.mxu0 0.0
    %2465 = vmatprep.subr.mxu0 0.0
    %2466 = vmatpush1.msra.mxu0 0.0
    %2467 = vmatprep.subr.mxu0 0.0
    %2468 = vmatpush1.msra.mxu0 0.0
    %2469 = vmatprep.subr.mxu0 0.0
    %2470 = vmatpush1.msra.mxu0 0.0
    %2471 = vmatprep.subr.mxu0 0.0
    %2472 = vmatpush1.msra.mxu0 0.0
    %2473 = vmatprep.subr.mxu0 0.0
    %2474 = vmatpush1.msra.mxu0 0.0
    %2475 = vmatprep.subr.mxu0 0.0
    %2476 = vmatpush1.msra.mxu0 0.0
    %2477 = vmatprep.subr.mxu0 0.0
    %2478 = vmatpush1.msra.mxu0 0.0
    %2479 = vmatprep.subr.mxu0 0.0
    %2480 = vmatpush1.msra.mxu0 0.0
    %2481 = vmatprep.subr.mxu0 0.0
    %2482 = vmatpush1.msra.mxu0 0.0
    %2483 = vmatprep.subr.mxu0 0.0
    %2484 = vmatpush1.msra.mxu0 0.0
    %2485 = vmatprep.subr.mxu0 0.0
    %2486 = vmatpush1.msra.mxu0 0.0
    %2487 = vmatprep.subr.mxu0 0.0
    %2488 = vmatpush1.msra.mxu0 0.0
    %2489 = vmatprep.subr.mxu0 0.0
    %2490 = vmatpush1.msra.mxu0 0.0
    %2491 = vmatprep.subr.mxu0 0.0
    %2492 = vmatpush1.msra.mxu0 %v2203
    %2493 = vmatprep.subr.mxu0 0.0
    %2494 = vmatpush2.msra.mxu0 0.0
    %2495 = vmatprep.subr.mxu0 0.0
    %2496 = vmatpush2.msra.mxu0 0.0
    %2497 = vmatprep.subr.mxu0 0.0
    %2498 = vmatpush2.msra.mxu0 0.0
    %2499 = vmatprep.subr.mxu0 0.0
    %2500 = vmatpush2.msra.mxu0 0.0
    %2501 = vmatprep.subr.mxu0 0.0
    %2502 = vmatpush2.msra.mxu0 0.0
    %2503 = vmatprep.subr.mxu0 0.0
    %2504 = vmatpush2.msra.mxu0 0.0
    %2505 = vmatprep.subr.mxu0 0.0
    %2506 = vmatpush2.msra.mxu0 0.0
    %2507 = vmatprep.subr.mxu0 0.0
    %2508 = vmatpush2.msra.mxu0 0.0
    %2509 = vmatprep.subr.mxu0 0.0
    %2510 = vmatpush2.msra.mxu0 0.0
    %2511 = vmatprep.subr.mxu0 0.0
    %2512 = vmatpush2.msra.mxu0 0.0
    %2513 = vmatprep.subr.mxu0 0.0
    %2514 = vmatpush2.msra.mxu0 0.0
    %2515 = vmatprep.subr.mxu0 0.0
    %2516 = vmatpush2.msra.mxu0 0.0
    %2517 = vmatprep.subr.mxu0 0.0
    %2518 = vmatpush2.msra.mxu0 0.0
    %2519 = vmatprep.subr.mxu0 0.0
    %2520 = vmatpush2.msra.mxu0 0.0
    %2521 = vmatprep.subr.mxu0 0.0
    %2522 = vmatpush2.msra.mxu0 0.0
    %2523 = vmatprep.subr.mxu0 0.0
    %2524 = vmatpush2.msra.mxu0 0.0
    %2525 = vmatprep.mubr.f32.mxu0 0.0
    %2526 = vmatmul.mubr.f32.gmra.mxu0 %v2459
    %v2527 = vpop.f32.mrf.mxu0
    %v2528 = vadd.f32 0.0, %v2527
    %v2529 = vpop.f32.mrf.mxu0
    %2530 = vdwg.mxu0
    %2531 = vrot.lane.b32.xlu0 %v2195, 112
    %v2532 = vpop.permute.xlu0 %2531
    %2533 = vrot.lane.b32.xlu0 %v2195, 48
    %v2534 = vpop.permute.xlu0 %2533
    %v2535 = vsel %vm232, %v2532, 0
    %v2537 = vsel %vm232, %v2534, 0
    %2539 = vmatprep.subr.mxu0 0.0
    %2540 = vmatpush1.xpose.msra.mxu0 0.0
    %2541 = vmatprep.subr.mxu0 0.0
    %2542 = vmatpush1.xpose.msra.mxu0 0.0
    %2543 = vmatprep.subr.mxu0 0.0
    %2544 = vmatpush1.xpose.msra.mxu0 0.0
    %2545 = vmatprep.subr.mxu0 0.0
    %2546 = vmatpush1.xpose.msra.mxu0 0.0
    %2547 = vmatprep.subr.mxu0 0.0
    %2548 = vmatpush1.xpose.msra.mxu0 0.0
    %2549 = vmatprep.subr.mxu0 0.0
    %2550 = vmatpush1.xpose.msra.mxu0 0.0
    %2551 = vmatprep.subr.mxu0 0.0
    %2552 = vmatpush1.xpose.msra.mxu0 0.0
    %2553 = vmatprep.subr.mxu0 0.0
    %2554 = vmatpush1.xpose.msra.mxu0 0.0
    %2555 = vmatprep.subr.mxu0 0.0
    %2556 = vmatpush1.xpose.msra.mxu0 0.0
    %2557 = vmatprep.subr.mxu0 0.0
    %2558 = vmatpush1.xpose.msra.mxu0 0.0
    %2559 = vmatprep.subr.mxu0 0.0
    %2560 = vmatpush1.xpose.msra.mxu0 0.0
    %2561 = vmatprep.subr.mxu0 0.0
    %2562 = vmatpush1.xpose.msra.mxu0 0.0
    %2563 = vmatprep.subr.mxu0 0.0
    %2564 = vmatpush1.xpose.msra.mxu0 0.0
    %2565 = vmatprep.subr.mxu0 0.0
    %2566 = vmatpush1.xpose.msra.mxu0 0.0
    %2567 = vmatprep.subr.mxu0 0.0
    %2568 = vmatpush1.xpose.msra.mxu0 0.0
    %2569 = vmatprep.subr.mxu0 0.0
    %2570 = vmatpush1.xpose.msra.mxu0 %v2537
    %2571 = vmatprep.subr.mxu0 0.0
    %2572 = vmatpush2.xpose.msra.mxu0 0.0
    %2573 = vmatprep.subr.mxu0 0.0
    %2574 = vmatpush2.xpose.msra.mxu0 0.0
    %2575 = vmatprep.subr.mxu0 0.0
    %2576 = vmatpush2.xpose.msra.mxu0 0.0
    %2577 = vmatprep.subr.mxu0 0.0
    %2578 = vmatpush2.xpose.msra.mxu0 0.0
    %2579 = vmatprep.subr.mxu0 0.0
    %2580 = vmatpush2.xpose.msra.mxu0 0.0
    %2581 = vmatprep.subr.mxu0 0.0
    %2582 = vmatpush2.xpose.msra.mxu0 0.0
    %2583 = vmatprep.subr.mxu0 0.0
    %2584 = vmatpush2.xpose.msra.mxu0 0.0
    %2585 = vmatprep.subr.mxu0 0.0
    %2586 = vmatpush2.xpose.msra.mxu0 0.0
    %2587 = vmatprep.subr.mxu0 0.0
    %2588 = vmatpush2.xpose.msra.mxu0 0.0
    %2589 = vmatprep.subr.mxu0 0.0
    %2590 = vmatpush2.xpose.msra.mxu0 0.0
    %2591 = vmatprep.subr.mxu0 0.0
    %2592 = vmatpush2.xpose.msra.mxu0 0.0
    %2593 = vmatprep.subr.mxu0 0.0
    %2594 = vmatpush2.xpose.msra.mxu0 0.0
    %2595 = vmatprep.subr.mxu0 0.0
    %2596 = vmatpush2.xpose.msra.mxu0 0.0
    %2597 = vmatprep.subr.mxu0 0.0
    %2598 = vmatpush2.xpose.msra.mxu0 0.0
    %2599 = vmatprep.subr.mxu0 0.0
    %2600 = vmatpush2.xpose.msra.mxu0 0.0
    %2601 = vmatprep.subr.mxu0 0.0
    %2602 = vmatpush2.xpose.msra.mxu0 0.0
    %2603 = vmatprep.mubr.f32.mxu0 0.0
    %2604 = vmatmul.mubr.f32.gmra.mxu0 %v2535
    %v2605 = vpop.f32.mrf.mxu0
    %v2606 = vadd.f32 0.0, %v2605
    %v2607 = vpop.f32.mrf.mxu0
    %2608 = vdwg.mxu0
    %2609 = vrot.lane.b32.xlu0 %v2201, 112
    %v2610 = vpop.permute.xlu0 %2609
    %2611 = vrot.lane.b32.xlu0 %v2201, 48
    %v2612 = vpop.permute.xlu0 %2611
    %v2613 = vsel %vm232, %v2610, 0
    %v2615 = vsel %vm232, %v2612, 0
    %2617 = vmatprep.subr.mxu0 0.0
    %2618 = vmatpush1.xpose.msra.mxu0 0.0
    %2619 = vmatprep.subr.mxu0 0.0
    %2620 = vmatpush1.xpose.msra.mxu0 0.0
    %2621 = vmatprep.subr.mxu0 0.0
    %2622 = vmatpush1.xpose.msra.mxu0 0.0
    %2623 = vmatprep.subr.mxu0 0.0
    %2624 = vmatpush1.xpose.msra.mxu0 0.0
    %2625 = vmatprep.subr.mxu0 0.0
    %2626 = vmatpush1.xpose.msra.mxu0 0.0
    %2627 = vmatprep.subr.mxu0 0.0
    %2628 = vmatpush1.xpose.msra.mxu0 0.0
    %2629 = vmatprep.subr.mxu0 0.0
    %2630 = vmatpush1.xpose.msra.mxu0 0.0
    %2631 = vmatprep.subr.mxu0 0.0
    %2632 = vmatpush1.xpose.msra.mxu0 0.0
    %2633 = vmatprep.subr.mxu0 0.0
    %2634 = vmatpush1.xpose.msra.mxu0 0.0
    %2635 = vmatprep.subr.mxu0 0.0
    %2636 = vmatpush1.xpose.msra.mxu0 0.0
    %2637 = vmatprep.subr.mxu0 0.0
    %2638 = vmatpush1.xpose.msra.mxu0 0.0
    %2639 = vmatprep.subr.mxu0 0.0
    %2640 = vmatpush1.xpose.msra.mxu0 0.0
    %2641 = vmatprep.subr.mxu0 0.0
    %2642 = vmatpush1.xpose.msra.mxu0 0.0
    %2643 = vmatprep.subr.mxu0 0.0
    %2644 = vmatpush1.xpose.msra.mxu0 0.0
    %2645 = vmatprep.subr.mxu0 0.0
    %2646 = vmatpush1.xpose.msra.mxu0 0.0
    %2647 = vmatprep.subr.mxu0 0.0
    %2648 = vmatpush1.xpose.msra.mxu0 %v2615
    %2649 = vmatprep.subr.mxu0 0.0
    %2650 = vmatpush2.xpose.msra.mxu0 0.0
    %2651 = vmatprep.subr.mxu0 0.0
    %2652 = vmatpush2.xpose.msra.mxu0 0.0
    %2653 = vmatprep.subr.mxu0 0.0
    %2654 = vmatpush2.xpose.msra.mxu0 0.0
    %2655 = vmatprep.subr.mxu0 0.0
    %2656 = vmatpush2.xpose.msra.mxu0 0.0
    %2657 = vmatprep.subr.mxu0 0.0
    %2658 = vmatpush2.xpose.msra.mxu0 0.0
    %2659 = vmatprep.subr.mxu0 0.0
    %2660 = vmatpush2.xpose.msra.mxu0 0.0
    %2661 = vmatprep.subr.mxu0 0.0
    %2662 = vmatpush2.xpose.msra.mxu0 0.0
    %2663 = vmatprep.subr.mxu0 0.0
    %2664 = vmatpush2.xpose.msra.mxu0 0.0
    %2665 = vmatprep.subr.mxu0 0.0
    %2666 = vmatpush2.xpose.msra.mxu0 0.0
    %2667 = vmatprep.subr.mxu0 0.0
    %2668 = vmatpush2.xpose.msra.mxu0 0.0
    %2669 = vmatprep.subr.mxu0 0.0
    %2670 = vmatpush2.xpose.msra.mxu0 0.0
    %2671 = vmatprep.subr.mxu0 0.0
    %2672 = vmatpush2.xpose.msra.mxu0 0.0
    %2673 = vmatprep.subr.mxu0 0.0
    %2674 = vmatpush2.xpose.msra.mxu0 0.0
    %2675 = vmatprep.subr.mxu0 0.0
    %2676 = vmatpush2.xpose.msra.mxu0 0.0
    %2677 = vmatprep.subr.mxu0 0.0
    %2678 = vmatpush2.xpose.msra.mxu0 0.0
    %2679 = vmatprep.subr.mxu0 0.0
    %2680 = vmatpush2.xpose.msra.mxu0 0.0
    %2681 = vmatprep.mubr.f32.mxu0 0.0
    %2682 = vmatmul.mubr.f32.gmra.mxu0 %v2613
    %v2683 = vpop.f32.mrf.mxu0
    %v2684 = vadd.f32 0.0, %v2683
    %v2685 = vpop.f32.mrf.mxu0
    %2686 = vdwg.mxu0
    %v2687 = vmul.f32 %v2606, 0.25
    %v2688 = vmul.f32 %v2684, 0.25
    %v2689 = vadd.f32 %v2687, %v389
    %v2690 = vadd.f32 %v2688, %v393
    %v2691 = vsel %vm398, %v2689, -inf
    %2692 = vmax.xlane.f32.xlu0 %v2691
    %v2693 = vpop.xlane.xlu0 %2692
    %v2694 = vsel %vm398, %v2690, -inf
    %2695 = vmax.xlane.f32.xlu0 %v2694
    %v2696 = vpop.xlane.xlu0 %2695
    %v2697 = vsub.f32 %v2689, %v2693
    %v2698 = vsub.f32 %v2690, %v2696
    %v2699 = vmul.f32 %v2697, 1.442695
    %v2700 = vpow.pop %v2699
    %v2701 = vmul.f32 %v2698, 1.442695
    %v2702 = vpow.pop %v2701
    %v2703 = vsel %vm398, %v2700, 0.0
    %2704 = vadd.xlane.f32.xlu0 %v2703
    %v2705 = vpop.xlane.xlu0 %2704
    %v2706 = vsel %vm398, %v2702, 0.0
    %2707 = vadd.xlane.f32.xlu0 %v2706
    %v2708 = vpop.xlane.xlu0 %2707
    %v2709 = vrcp.pop %v2705
    %v2710 = vmul.f32 %v2700, %v2709
    %v2711 = vrcp.pop %v2708
    %v2712 = vmul.f32 %v2702, %v2711
    %2714 = vrot.lane.b32.xlu0 %v2197, 112
    %v2715 = vpop.permute.xlu0 %2714
    %v2718 = vsel %vm398, %v2710, 0
    %2720 = vmatprep.subr.mxu0 0.0
    %2721 = vmatpush1.msra.mxu0 0.0
    %2722 = vmatprep.subr.mxu0 0.0
    %2723 = vmatpush1.msra.mxu0 0.0
    %2724 = vmatprep.subr.mxu0 0.0
    %2725 = vmatpush1.msra.mxu0 0.0
    %2726 = vmatprep.subr.mxu0 0.0
    %2727 = vmatpush1.msra.mxu0 0.0
    %2728 = vmatprep.subr.mxu0 0.0
    %2729 = vmatpush1.msra.mxu0 0.0
    %2730 = vmatprep.subr.mxu0 0.0
    %2731 = vmatpush1.msra.mxu0 0.0
    %2732 = vmatprep.subr.mxu0 0.0
    %2733 = vmatpush1.msra.mxu0 0.0
    %2734 = vmatprep.subr.mxu0 0.0
    %2735 = vmatpush1.msra.mxu0 0.0
    %2736 = vmatprep.subr.mxu0 0.0
    %2737 = vmatpush1.msra.mxu0 0.0
    %2738 = vmatprep.subr.mxu0 0.0
    %2739 = vmatpush1.msra.mxu0 0.0
    %2740 = vmatprep.subr.mxu0 0.0
    %2741 = vmatpush1.msra.mxu0 0.0
    %2742 = vmatprep.subr.mxu0 0.0
    %2743 = vmatpush1.msra.mxu0 0.0
    %2744 = vmatprep.subr.mxu0 0.0
    %2745 = vmatpush1.msra.mxu0 0.0
    %2746 = vmatprep.subr.mxu0 0.0
    %2747 = vmatpush1.msra.mxu0 0.0
    %2748 = vmatprep.subr.mxu0 0.0
    %2749 = vmatpush1.msra.mxu0 0.0
    %2750 = vmatprep.subr.mxu0 0.0
    %2751 = vmatpush1.msra.mxu0 %v2715
    %2752 = vmatprep.subr.mxu0 0.0
    %2753 = vmatpush2.msra.mxu0 0.0
    %2754 = vmatprep.subr.mxu0 0.0
    %2755 = vmatpush2.msra.mxu0 0.0
    %2756 = vmatprep.subr.mxu0 0.0
    %2757 = vmatpush2.msra.mxu0 0.0
    %2758 = vmatprep.subr.mxu0 0.0
    %2759 = vmatpush2.msra.mxu0 0.0
    %2760 = vmatprep.subr.mxu0 0.0
    %2761 = vmatpush2.msra.mxu0 0.0
    %2762 = vmatprep.subr.mxu0 0.0
    %2763 = vmatpush2.msra.mxu0 0.0
    %2764 = vmatprep.subr.mxu0 0.0
    %2765 = vmatpush2.msra.mxu0 0.0
    %2766 = vmatprep.subr.mxu0 0.0
    %2767 = vmatpush2.msra.mxu0 0.0
    %2768 = vmatprep.subr.mxu0 0.0
    %2769 = vmatpush2.msra.mxu0 0.0
    %2770 = vmatprep.subr.mxu0 0.0
    %2771 = vmatpush2.msra.mxu0 0.0
    %2772 = vmatprep.subr.mxu0 0.0
    %2773 = vmatpush2.msra.mxu0 0.0
    %2774 = vmatprep.subr.mxu0 0.0
    %2775 = vmatpush2.msra.mxu0 0.0
    %2776 = vmatprep.subr.mxu0 0.0
    %2777 = vmatpush2.msra.mxu0 0.0
    %2778 = vmatprep.subr.mxu0 0.0
    %2779 = vmatpush2.msra.mxu0 0.0
    %2780 = vmatprep.subr.mxu0 0.0
    %2781 = vmatpush2.msra.mxu0 0.0
    %2782 = vmatprep.subr.mxu0 0.0
    %2783 = vmatpush2.msra.mxu0 0.0
    %2784 = vmatprep.mubr.f32.mxu0 0.0
    %2785 = vmatmul.mubr.f32.gmra.mxu0 %v2718
    %v2786 = vpop.f32.mrf.mxu0
    %v2787 = vadd.f32 0.0, %v2786
    %v2788 = vpop.f32.mrf.mxu0
    %2789 = vdwg.mxu0
    %2791 = vrot.lane.b32.xlu0 %v2203, 112
    %v2792 = vpop.permute.xlu0 %2791
    %v2795 = vsel %vm398, %v2712, 0
    %2797 = vmatprep.subr.mxu0 0.0
    %2798 = vmatpush1.msra.mxu0 0.0
    %2799 = vmatprep.subr.mxu0 0.0
    %2800 = vmatpush1.msra.mxu0 0.0
    %2801 = vmatprep.subr.mxu0 0.0
    %2802 = vmatpush1.msra.mxu0 0.0
    %2803 = vmatprep.subr.mxu0 0.0
    %2804 = vmatpush1.msra.mxu0 0.0
    %2805 = vmatprep.subr.mxu0 0.0
    %2806 = vmatpush1.msra.mxu0 0.0
    %2807 = vmatprep.subr.mxu0 0.0
    %2808 = vmatpush1.msra.mxu0 0.0
    %2809 = vmatprep.subr.mxu0 0.0
    %2810 = vmatpush1.msra.mxu0 0.0
    %2811 = vmatprep.subr.mxu0 0.0
    %2812 = vmatpush1.msra.mxu0 0.0
    %2813 = vmatprep.subr.mxu0 0.0
    %2814 = vmatpush1.msra.mxu0 0.0
    %2815 = vmatprep.subr.mxu0 0.0
    %2816 = vmatpush1.msra.mxu0 0.0
    %2817 = vmatprep.subr.mxu0 0.0
    %2818 = vmatpush1.msra.mxu0 0.0
    %2819 = vmatprep.subr.mxu0 0.0
    %2820 = vmatpush1.msra.mxu0 0.0
    %2821 = vmatprep.subr.mxu0 0.0
    %2822 = vmatpush1.msra.mxu0 0.0
    %2823 = vmatprep.subr.mxu0 0.0
    %2824 = vmatpush1.msra.mxu0 0.0
    %2825 = vmatprep.subr.mxu0 0.0
    %2826 = vmatpush1.msra.mxu0 0.0
    %2827 = vmatprep.subr.mxu0 0.0
    %2828 = vmatpush1.msra.mxu0 %v2792
    %2829 = vmatprep.subr.mxu0 0.0
    %2830 = vmatpush2.msra.mxu0 0.0
    %2831 = vmatprep.subr.mxu0 0.0
    %2832 = vmatpush2.msra.mxu0 0.0
    %2833 = vmatprep.subr.mxu0 0.0
    %2834 = vmatpush2.msra.mxu0 0.0
    %2835 = vmatprep.subr.mxu0 0.0
    %2836 = vmatpush2.msra.mxu0 0.0
    %2837 = vmatprep.subr.mxu0 0.0
    %2838 = vmatpush2.msra.mxu0 0.0
    %2839 = vmatprep.subr.mxu0 0.0
    %2840 = vmatpush2.msra.mxu0 0.0
    %2841 = vmatprep.subr.mxu0 0.0
    %2842 = vmatpush2.msra.mxu0 0.0
    %2843 = vmatprep.subr.mxu0 0.0
    %2844 = vmatpush2.msra.mxu0 0.0
    %2845 = vmatprep.subr.mxu0 0.0
    %2846 = vmatpush2.msra.mxu0 0.0
    %2847 = vmatprep.subr.mxu0 0.0
    %2848 = vmatpush2.msra.mxu0 0.0
    %2849 = vmatprep.subr.mxu0 0.0
    %2850 = vmatpush2.msra.mxu0 0.0
    %2851 = vmatprep.subr.mxu0 0.0
    %2852 = vmatpush2.msra.mxu0 0.0
    %2853 = vmatprep.subr.mxu0 0.0
    %2854 = vmatpush2.msra.mxu0 0.0
    %2855 = vmatprep.subr.mxu0 0.0
    %2856 = vmatpush2.msra.mxu0 0.0
    %2857 = vmatprep.subr.mxu0 0.0
    %2858 = vmatpush2.msra.mxu0 0.0
    %2859 = vmatprep.subr.mxu0 0.0
    %2860 = vmatpush2.msra.mxu0 0.0
    %2861 = vmatprep.mubr.f32.mxu0 0.0
    %2862 = vmatmul.mubr.f32.gmra.mxu0 %v2795
    %v2863 = vpop.f32.mrf.mxu0
    %v2864 = vadd.f32 0.0, %v2863
    %v2865 = vpop.f32.mrf.mxu0
    %2866 = vdwg.mxu0
    %2867 = vrot.lane.b32.xlu0 %v2195, 96
    %v2868 = vpop.permute.xlu0 %2867
    %2869 = vrot.lane.b32.xlu0 %v2195, 32
    %v2870 = vpop.permute.xlu0 %2869
    %v2871 = vsel %vm232, %v2868, 0
    %v2873 = vsel %vm232, %v2870, 0
    %2875 = vmatprep.subr.mxu0 0.0
    %2876 = vmatpush1.xpose.msra.mxu0 0.0
    %2877 = vmatprep.subr.mxu0 0.0
    %2878 = vmatpush1.xpose.msra.mxu0 0.0
    %2879 = vmatprep.subr.mxu0 0.0
    %2880 = vmatpush1.xpose.msra.mxu0 0.0
    %2881 = vmatprep.subr.mxu0 0.0
    %2882 = vmatpush1.xpose.msra.mxu0 0.0
    %2883 = vmatprep.subr.mxu0 0.0
    %2884 = vmatpush1.xpose.msra.mxu0 0.0
    %2885 = vmatprep.subr.mxu0 0.0
    %2886 = vmatpush1.xpose.msra.mxu0 0.0
    %2887 = vmatprep.subr.mxu0 0.0
    %2888 = vmatpush1.xpose.msra.mxu0 0.0
    %2889 = vmatprep.subr.mxu0 0.0
    %2890 = vmatpush1.xpose.msra.mxu0 0.0
    %2891 = vmatprep.subr.mxu0 0.0
    %2892 = vmatpush1.xpose.msra.mxu0 0.0
    %2893 = vmatprep.subr.mxu0 0.0
    %2894 = vmatpush1.xpose.msra.mxu0 0.0
    %2895 = vmatprep.subr.mxu0 0.0
    %2896 = vmatpush1.xpose.msra.mxu0 0.0
    %2897 = vmatprep.subr.mxu0 0.0
    %2898 = vmatpush1.xpose.msra.mxu0 0.0
    %2899 = vmatprep.subr.mxu0 0.0
    %2900 = vmatpush1.xpose.msra.mxu0 0.0
    %2901 = vmatprep.subr.mxu0 0.0
    %2902 = vmatpush1.xpose.msra.mxu0 0.0
    %2903 = vmatprep.subr.mxu0 0.0
    %2904 = vmatpush1.xpose.msra.mxu0 0.0
    %2905 = vmatprep.subr.mxu0 0.0
    %2906 = vmatpush1.xpose.msra.mxu0 %v2873
    %2907 = vmatprep.subr.mxu0 0.0
    %2908 = vmatpush2.xpose.msra.mxu0 0.0
    %2909 = vmatprep.subr.mxu0 0.0
    %2910 = vmatpush2.xpose.msra.mxu0 0.0
    %2911 = vmatprep.subr.mxu0 0.0
    %2912 = vmatpush2.xpose.msra.mxu0 0.0
    %2913 = vmatprep.subr.mxu0 0.0
    %2914 = vmatpush2.xpose.msra.mxu0 0.0
    %2915 = vmatprep.subr.mxu0 0.0
    %2916 = vmatpush2.xpose.msra.mxu0 0.0
    %2917 = vmatprep.subr.mxu0 0.0
    %2918 = vmatpush2.xpose.msra.mxu0 0.0
    %2919 = vmatprep.subr.mxu0 0.0
    %2920 = vmatpush2.xpose.msra.mxu0 0.0
    %2921 = vmatprep.subr.mxu0 0.0
    %2922 = vmatpush2.xpose.msra.mxu0 0.0
    %2923 = vmatprep.subr.mxu0 0.0
    %2924 = vmatpush2.xpose.msra.mxu0 0.0
    %2925 = vmatprep.subr.mxu0 0.0
    %2926 = vmatpush2.xpose.msra.mxu0 0.0
    %2927 = vmatprep.subr.mxu0 0.0
    %2928 = vmatpush2.xpose.msra.mxu0 0.0
    %2929 = vmatprep.subr.mxu0 0.0
    %2930 = vmatpush2.xpose.msra.mxu0 0.0
    %2931 = vmatprep.subr.mxu0 0.0
    %2932 = vmatpush2.xpose.msra.mxu0 0.0
    %2933 = vmatprep.subr.mxu0 0.0
    %2934 = vmatpush2.xpose.msra.mxu0 0.0
    %2935 = vmatprep.subr.mxu0 0.0
    %2936 = vmatpush2.xpose.msra.mxu0 0.0
    %2937 = vmatprep.subr.mxu0 0.0
    %2938 = vmatpush2.xpose.msra.mxu0 0.0
    %2939 = vmatprep.mubr.f32.mxu0 0.0
    %2940 = vmatmul.mubr.f32.gmra.mxu0 %v2871
    %v2941 = vpop.f32.mrf.mxu0
    %v2942 = vadd.f32 0.0, %v2941
    %v2943 = vpop.f32.mrf.mxu0
    %2944 = vdwg.mxu0
    %2945 = vrot.lane.b32.xlu0 %v2201, 96
    %v2946 = vpop.permute.xlu0 %2945
    %2947 = vrot.lane.b32.xlu0 %v2201, 32
    %v2948 = vpop.permute.xlu0 %2947
    %v2949 = vsel %vm232, %v2946, 0
    %v2951 = vsel %vm232, %v2948, 0
    %2953 = vmatprep.subr.mxu0 0.0
    %2954 = vmatpush1.xpose.msra.mxu0 0.0
    %2955 = vmatprep.subr.mxu0 0.0
    %2956 = vmatpush1.xpose.msra.mxu0 0.0
    %2957 = vmatprep.subr.mxu0 0.0
    %2958 = vmatpush1.xpose.msra.mxu0 0.0
    %2959 = vmatprep.subr.mxu0 0.0
    %2960 = vmatpush1.xpose.msra.mxu0 0.0
    %2961 = vmatprep.subr.mxu0 0.0
    %2962 = vmatpush1.xpose.msra.mxu0 0.0
    %2963 = vmatprep.subr.mxu0 0.0
    %2964 = vmatpush1.xpose.msra.mxu0 0.0
    %2965 = vmatprep.subr.mxu0 0.0
    %2966 = vmatpush1.xpose.msra.mxu0 0.0
    %2967 = vmatprep.subr.mxu0 0.0
    %2968 = vmatpush1.xpose.msra.mxu0 0.0
    %2969 = vmatprep.subr.mxu0 0.0
    %2970 = vmatpush1.xpose.msra.mxu0 0.0
    %2971 = vmatprep.subr.mxu0 0.0
    %2972 = vmatpush1.xpose.msra.mxu0 0.0
    %2973 = vmatprep.subr.mxu0 0.0
    %2974 = vmatpush1.xpose.msra.mxu0 0.0
    %2975 = vmatprep.subr.mxu0 0.0
    %2976 = vmatpush1.xpose.msra.mxu0 0.0
    %2977 = vmatprep.subr.mxu0 0.0
    %2978 = vmatpush1.xpose.msra.mxu0 0.0
    %2979 = vmatprep.subr.mxu0 0.0
    %2980 = vmatpush1.xpose.msra.mxu0 0.0
    %2981 = vmatprep.subr.mxu0 0.0
    %2982 = vmatpush1.xpose.msra.mxu0 0.0
    %2983 = vmatprep.subr.mxu0 0.0
    %2984 = vmatpush1.xpose.msra.mxu0 %v2951
    %2985 = vmatprep.subr.mxu0 0.0
    %2986 = vmatpush2.xpose.msra.mxu0 0.0
    %2987 = vmatprep.subr.mxu0 0.0
    %2988 = vmatpush2.xpose.msra.mxu0 0.0
    %2989 = vmatprep.subr.mxu0 0.0
    %2990 = vmatpush2.xpose.msra.mxu0 0.0
    %2991 = vmatprep.subr.mxu0 0.0
    %2992 = vmatpush2.xpose.msra.mxu0 0.0
    %2993 = vmatprep.subr.mxu0 0.0
    %2994 = vmatpush2.xpose.msra.mxu0 0.0
    %2995 = vmatprep.subr.mxu0 0.0
    %2996 = vmatpush2.xpose.msra.mxu0 0.0
    %2997 = vmatprep.subr.mxu0 0.0
    %2998 = vmatpush2.xpose.msra.mxu0 0.0
    %2999 = vmatprep.subr.mxu0 0.0
    %3000 = vmatpush2.xpose.msra.mxu0 0.0
    %3001 = vmatprep.subr.mxu0 0.0
    %3002 = vmatpush2.xpose.msra.mxu0 0.0
    %3003 = vmatprep.subr.mxu0 0.0
    %3004 = vmatpush2.xpose.msra.mxu0 0.0
    %3005 = vmatprep.subr.mxu0 0.0
    %3006 = vmatpush2.xpose.msra.mxu0 0.0
    %3007 = vmatprep.subr.mxu0 0.0
    %3008 = vmatpush2.xpose.msra.mxu0 0.0
    %3009 = vmatprep.subr.mxu0 0.0
    %3010 = vmatpush2.xpose.msra.mxu0 0.0
    %3011 = vmatprep.subr.mxu0 0.0
    %3012 = vmatpush2.xpose.msra.mxu0 0.0
    %3013 = vmatprep.subr.mxu0 0.0
    %3014 = vmatpush2.xpose.msra.mxu0 0.0
    %3015 = vmatprep.subr.mxu0 0.0
    %3016 = vmatpush2.xpose.msra.mxu0 0.0
    %3017 = vmatprep.mubr.f32.mxu0 0.0
    %3018 = vmatmul.mubr.f32.gmra.mxu0 %v2949
    %v3019 = vpop.f32.mrf.mxu0
    %v3020 = vadd.f32 0.0, %v3019
    %v3021 = vpop.f32.mrf.mxu0
    %3022 = vdwg.mxu0
    %v3023 = vmul.f32 %v2942, 0.25
    %v3024 = vmul.f32 %v3020, 0.25
    %v3025 = vadd.f32 %v3023, %v389
    %v3026 = vadd.f32 %v3024, %v393
    %v3027 = vsel %vm398, %v3025, -inf
    %3028 = vmax.xlane.f32.xlu0 %v3027
    %v3029 = vpop.xlane.xlu0 %3028
    %v3030 = vsel %vm398, %v3026, -inf
    %3031 = vmax.xlane.f32.xlu0 %v3030
    %v3032 = vpop.xlane.xlu0 %3031
    %v3033 = vsub.f32 %v3025, %v3029
    %v3034 = vsub.f32 %v3026, %v3032
    %v3035 = vmul.f32 %v3033, 1.442695
    %v3036 = vpow.pop %v3035
    %v3037 = vmul.f32 %v3034, 1.442695
    %v3038 = vpow.pop %v3037
    %v3039 = vsel %vm398, %v3036, 0.0
    %3040 = vadd.xlane.f32.xlu0 %v3039
    %v3041 = vpop.xlane.xlu0 %3040
    %v3042 = vsel %vm398, %v3038, 0.0
    %3043 = vadd.xlane.f32.xlu0 %v3042
    %v3044 = vpop.xlane.xlu0 %3043
    %v3045 = vrcp.pop %v3041
    %v3046 = vmul.f32 %v3036, %v3045
    %v3047 = vrcp.pop %v3044
    %v3048 = vmul.f32 %v3038, %v3047
    %3049 = vrot.lane.b32.xlu0 %v2197, 96
    %v3050 = vpop.permute.xlu0 %3049
    %v3053 = vsel %vm398, %v3046, 0
    %3055 = vmatprep.subr.mxu0 0.0
    %3056 = vmatpush1.msra.mxu0 0.0
    %3057 = vmatprep.subr.mxu0 0.0
    %3058 = vmatpush1.msra.mxu0 0.0
    %3059 = vmatprep.subr.mxu0 0.0
    %3060 = vmatpush1.msra.mxu0 0.0
    %3061 = vmatprep.subr.mxu0 0.0
    %3062 = vmatpush1.msra.mxu0 0.0
    %3063 = vmatprep.subr.mxu0 0.0
    %3064 = vmatpush1.msra.mxu0 0.0
    %3065 = vmatprep.subr.mxu0 0.0
    %3066 = vmatpush1.msra.mxu0 0.0
    %3067 = vmatprep.subr.mxu0 0.0
    %3068 = vmatpush1.msra.mxu0 0.0
    %3069 = vmatprep.subr.mxu0 0.0
    %3070 = vmatpush1.msra.mxu0 0.0
    %3071 = vmatprep.subr.mxu0 0.0
    %3072 = vmatpush1.msra.mxu0 0.0
    %3073 = vmatprep.subr.mxu0 0.0
    %3074 = vmatpush1.msra.mxu0 0.0
    %3075 = vmatprep.subr.mxu0 0.0
    %3076 = vmatpush1.msra.mxu0 0.0
    %3077 = vmatprep.subr.mxu0 0.0
    %3078 = vmatpush1.msra.mxu0 0.0
    %3079 = vmatprep.subr.mxu0 0.0
    %3080 = vmatpush1.msra.mxu0 0.0
    %3081 = vmatprep.subr.mxu0 0.0
    %3082 = vmatpush1.msra.mxu0 0.0
    %3083 = vmatprep.subr.mxu0 0.0
    %3084 = vmatpush1.msra.mxu0 0.0
    %3085 = vmatprep.subr.mxu0 0.0
    %3086 = vmatpush1.msra.mxu0 %v3050
    %3087 = vmatprep.subr.mxu0 0.0
    %3088 = vmatpush2.msra.mxu0 0.0
    %3089 = vmatprep.subr.mxu0 0.0
    %3090 = vmatpush2.msra.mxu0 0.0
    %3091 = vmatprep.subr.mxu0 0.0
    %3092 = vmatpush2.msra.mxu0 0.0
    %3093 = vmatprep.subr.mxu0 0.0
    %3094 = vmatpush2.msra.mxu0 0.0
    %3095 = vmatprep.subr.mxu0 0.0
    %3096 = vmatpush2.msra.mxu0 0.0
    %3097 = vmatprep.subr.mxu0 0.0
    %3098 = vmatpush2.msra.mxu0 0.0
    %3099 = vmatprep.subr.mxu0 0.0
    %3100 = vmatpush2.msra.mxu0 0.0
    %3101 = vmatprep.subr.mxu0 0.0
    %3102 = vmatpush2.msra.mxu0 0.0
    %3103 = vmatprep.subr.mxu0 0.0
    %3104 = vmatpush2.msra.mxu0 0.0
    %3105 = vmatprep.subr.mxu0 0.0
    %3106 = vmatpush2.msra.mxu0 0.0
    %3107 = vmatprep.subr.mxu0 0.0
    %3108 = vmatpush2.msra.mxu0 0.0
    %3109 = vmatprep.subr.mxu0 0.0
    %3110 = vmatpush2.msra.mxu0 0.0
    %3111 = vmatprep.subr.mxu0 0.0
    %3112 = vmatpush2.msra.mxu0 0.0
    %3113 = vmatprep.subr.mxu0 0.0
    %3114 = vmatpush2.msra.mxu0 0.0
    %3115 = vmatprep.subr.mxu0 0.0
    %3116 = vmatpush2.msra.mxu0 0.0
    %3117 = vmatprep.subr.mxu0 0.0
    %3118 = vmatpush2.msra.mxu0 0.0
    %3119 = vmatprep.mubr.f32.mxu0 0.0
    %3120 = vmatmul.mubr.f32.gmra.mxu0 %v3053
    %v3121 = vpop.f32.mrf.mxu0
    %v3122 = vadd.f32 0.0, %v3121
    %v3123 = vpop.f32.mrf.mxu0
    %3124 = vdwg.mxu0
    %3125 = vrot.lane.b32.xlu0 %v2203, 96
    %v3126 = vpop.permute.xlu0 %3125
    %v3129 = vsel %vm398, %v3048, 0
    %3131 = vmatprep.subr.mxu0 0.0
    %3132 = vmatpush1.msra.mxu0 0.0
    %3133 = vmatprep.subr.mxu0 0.0
    %3134 = vmatpush1.msra.mxu0 0.0
    %3135 = vmatprep.subr.mxu0 0.0
    %3136 = vmatpush1.msra.mxu0 0.0
    %3137 = vmatprep.subr.mxu0 0.0
    %3138 = vmatpush1.msra.mxu0 0.0
    %3139 = vmatprep.subr.mxu0 0.0
    %3140 = vmatpush1.msra.mxu0 0.0
    %3141 = vmatprep.subr.mxu0 0.0
    %3142 = vmatpush1.msra.mxu0 0.0
    %3143 = vmatprep.subr.mxu0 0.0
    %3144 = vmatpush1.msra.mxu0 0.0
    %3145 = vmatprep.subr.mxu0 0.0
    %3146 = vmatpush1.msra.mxu0 0.0
    %3147 = vmatprep.subr.mxu0 0.0
    %3148 = vmatpush1.msra.mxu0 0.0
    %3149 = vmatprep.subr.mxu0 0.0
    %3150 = vmatpush1.msra.mxu0 0.0
    %3151 = vmatprep.subr.mxu0 0.0
    %3152 = vmatpush1.msra.mxu0 0.0
    %3153 = vmatprep.subr.mxu0 0.0
    %3154 = vmatpush1.msra.mxu0 0.0
    %3155 = vmatprep.subr.mxu0 0.0
    %3156 = vmatpush1.msra.mxu0 0.0
    %3157 = vmatprep.subr.mxu0 0.0
    %3158 = vmatpush1.msra.mxu0 0.0
    %3159 = vmatprep.subr.mxu0 0.0
    %3160 = vmatpush1.msra.mxu0 0.0
    %3161 = vmatprep.subr.mxu0 0.0
    %3162 = vmatpush1.msra.mxu0 %v3126
    %3163 = vmatprep.subr.mxu0 0.0
    %3164 = vmatpush2.msra.mxu0 0.0
    %3165 = vmatprep.subr.mxu0 0.0
    %3166 = vmatpush2.msra.mxu0 0.0
    %3167 = vmatprep.subr.mxu0 0.0
    %3168 = vmatpush2.msra.mxu0 0.0
    %3169 = vmatprep.subr.mxu0 0.0
    %3170 = vmatpush2.msra.mxu0 0.0
    %3171 = vmatprep.subr.mxu0 0.0
    %3172 = vmatpush2.msra.mxu0 0.0
    %3173 = vmatprep.subr.mxu0 0.0
    %3174 = vmatpush2.msra.mxu0 0.0
    %3175 = vmatprep.subr.mxu0 0.0
    %3176 = vmatpush2.msra.mxu0 0.0
    %3177 = vmatprep.subr.mxu0 0.0
    %3178 = vmatpush2.msra.mxu0 0.0
    %3179 = vmatprep.subr.mxu0 0.0
    %3180 = vmatpush2.msra.mxu0 0.0
    %3181 = vmatprep.subr.mxu0 0.0
    %3182 = vmatpush2.msra.mxu0 0.0
    %3183 = vmatprep.subr.mxu0 0.0
    %3184 = vmatpush2.msra.mxu0 0.0
    %3185 = vmatprep.subr.mxu0 0.0
    %3186 = vmatpush2.msra.mxu0 0.0
    %3187 = vmatprep.subr.mxu0 0.0
    %3188 = vmatpush2.msra.mxu0 0.0
    %3189 = vmatprep.subr.mxu0 0.0
    %3190 = vmatpush2.msra.mxu0 0.0
    %3191 = vmatprep.subr.mxu0 0.0
    %3192 = vmatpush2.msra.mxu0 0.0
    %3193 = vmatprep.subr.mxu0 0.0
    %3194 = vmatpush2.msra.mxu0 0.0
    %3195 = vmatprep.mubr.f32.mxu0 0.0
    %3196 = vmatmul.mubr.f32.gmra.mxu0 %v3129
    %v3197 = vpop.f32.mrf.mxu0
    %v3198 = vadd.f32 0.0, %v3197
    %v3199 = vpop.f32.mrf.mxu0
    %3200 = vdwg.mxu0
    %3201 = vrot.lane.b32.xlu0 %v2195, 80
    %v3202 = vpop.permute.xlu0 %3201
    %3203 = vrot.lane.b32.xlu0 %v2195, 16
    %v3204 = vpop.permute.xlu0 %3203
    %v3205 = vsel %vm232, %v3202, 0
    %v3207 = vsel %vm232, %v3204, 0
    %3209 = vmatprep.subr.mxu0 0.0
    %3210 = vmatpush1.xpose.msra.mxu0 0.0
    %3211 = vmatprep.subr.mxu0 0.0
    %3212 = vmatpush1.xpose.msra.mxu0 0.0
    %3213 = vmatprep.subr.mxu0 0.0
    %3214 = vmatpush1.xpose.msra.mxu0 0.0
    %3215 = vmatprep.subr.mxu0 0.0
    %3216 = vmatpush1.xpose.msra.mxu0 0.0
    %3217 = vmatprep.subr.mxu0 0.0
    %3218 = vmatpush1.xpose.msra.mxu0 0.0
    %3219 = vmatprep.subr.mxu0 0.0
    %3220 = vmatpush1.xpose.msra.mxu0 0.0
    %3221 = vmatprep.subr.mxu0 0.0
    %3222 = vmatpush1.xpose.msra.mxu0 0.0
    %3223 = vmatprep.subr.mxu0 0.0
    %3224 = vmatpush1.xpose.msra.mxu0 0.0
    %3225 = vmatprep.subr.mxu0 0.0
    %3226 = vmatpush1.xpose.msra.mxu0 0.0
    %3227 = vmatprep.subr.mxu0 0.0
    %3228 = vmatpush1.xpose.msra.mxu0 0.0
    %3229 = vmatprep.subr.mxu0 0.0
    %3230 = vmatpush1.xpose.msra.mxu0 0.0
    %3231 = vmatprep.subr.mxu0 0.0
    %3232 = vmatpush1.xpose.msra.mxu0 0.0
    %3233 = vmatprep.subr.mxu0 0.0
    %3234 = vmatpush1.xpose.msra.mxu0 0.0
    %3235 = vmatprep.subr.mxu0 0.0
    %3236 = vmatpush1.xpose.msra.mxu0 0.0
    %3237 = vmatprep.subr.mxu0 0.0
    %3238 = vmatpush1.xpose.msra.mxu0 0.0
    %3239 = vmatprep.subr.mxu0 0.0
    %3240 = vmatpush1.xpose.msra.mxu0 %v3207
    %3241 = vmatprep.subr.mxu0 0.0
    %3242 = vmatpush2.xpose.msra.mxu0 0.0
    %3243 = vmatprep.subr.mxu0 0.0
    %3244 = vmatpush2.xpose.msra.mxu0 0.0
    %3245 = vmatprep.subr.mxu0 0.0
    %3246 = vmatpush2.xpose.msra.mxu0 0.0
    %3247 = vmatprep.subr.mxu0 0.0
    %3248 = vmatpush2.xpose.msra.mxu0 0.0
    %3249 = vmatprep.subr.mxu0 0.0
    %3250 = vmatpush2.xpose.msra.mxu0 0.0
    %3251 = vmatprep.subr.mxu0 0.0
    %3252 = vmatpush2.xpose.msra.mxu0 0.0
    %3253 = vmatprep.subr.mxu0 0.0
    %3254 = vmatpush2.xpose.msra.mxu0 0.0
    %3255 = vmatprep.subr.mxu0 0.0
    %3256 = vmatpush2.xpose.msra.mxu0 0.0
    %3257 = vmatprep.subr.mxu0 0.0
    %3258 = vmatpush2.xpose.msra.mxu0 0.0
    %3259 = vmatprep.subr.mxu0 0.0
    %3260 = vmatpush2.xpose.msra.mxu0 0.0
    %3261 = vmatprep.subr.mxu0 0.0
    %3262 = vmatpush2.xpose.msra.mxu0 0.0
    %3263 = vmatprep.subr.mxu0 0.0
    %3264 = vmatpush2.xpose.msra.mxu0 0.0
    %3265 = vmatprep.subr.mxu0 0.0
    %3266 = vmatpush2.xpose.msra.mxu0 0.0
    %3267 = vmatprep.subr.mxu0 0.0
    %3268 = vmatpush2.xpose.msra.mxu0 0.0
    %3269 = vmatprep.subr.mxu0 0.0
    %3270 = vmatpush2.xpose.msra.mxu0 0.0
    %3271 = vmatprep.subr.mxu0 0.0
    %3272 = vmatpush2.xpose.msra.mxu0 0.0
    %3273 = vmatprep.mubr.f32.mxu0 0.0
    %3274 = vmatmul.mubr.f32.gmra.mxu0 %v3205
    %v3275 = vpop.f32.mrf.mxu0
    %v3276 = vadd.f32 0.0, %v3275
    %v3277 = vpop.f32.mrf.mxu0
    %3278 = vdwg.mxu0
    %3279 = vrot.lane.b32.xlu0 %v2201, 80
    %v3280 = vpop.permute.xlu0 %3279
    %3281 = vrot.lane.b32.xlu0 %v2201, 16
    %v3282 = vpop.permute.xlu0 %3281
    %v3283 = vsel %vm232, %v3280, 0
    %v3285 = vsel %vm232, %v3282, 0
    %3287 = vmatprep.subr.mxu0 0.0
    %3288 = vmatpush1.xpose.msra.mxu0 0.0
    %3289 = vmatprep.subr.mxu0 0.0
    %3290 = vmatpush1.xpose.msra.mxu0 0.0
    %3291 = vmatprep.subr.mxu0 0.0
    %3292 = vmatpush1.xpose.msra.mxu0 0.0
    %3293 = vmatprep.subr.mxu0 0.0
    %3294 = vmatpush1.xpose.msra.mxu0 0.0
    %3295 = vmatprep.subr.mxu0 0.0
    %3296 = vmatpush1.xpose.msra.mxu0 0.0
    %3297 = vmatprep.subr.mxu0 0.0
    %3298 = vmatpush1.xpose.msra.mxu0 0.0
    %3299 = vmatprep.subr.mxu0 0.0
    %3300 = vmatpush1.xpose.msra.mxu0 0.0
    %3301 = vmatprep.subr.mxu0 0.0
    %3302 = vmatpush1.xpose.msra.mxu0 0.0
    %3303 = vmatprep.subr.mxu0 0.0
    %3304 = vmatpush1.xpose.msra.mxu0 0.0
    %3305 = vmatprep.subr.mxu0 0.0
    %3306 = vmatpush1.xpose.msra.mxu0 0.0
    %3307 = vmatprep.subr.mxu0 0.0
    %3308 = vmatpush1.xpose.msra.mxu0 0.0
    %3309 = vmatprep.subr.mxu0 0.0
    %3310 = vmatpush1.xpose.msra.mxu0 0.0
    %3311 = vmatprep.subr.mxu0 0.0
    %3312 = vmatpush1.xpose.msra.mxu0 0.0
    %3313 = vmatprep.subr.mxu0 0.0
    %3314 = vmatpush1.xpose.msra.mxu0 0.0
    %3315 = vmatprep.subr.mxu0 0.0
    %3316 = vmatpush1.xpose.msra.mxu0 0.0
    %3317 = vmatprep.subr.mxu0 0.0
    %3318 = vmatpush1.xpose.msra.mxu0 %v3285
    %3319 = vmatprep.subr.mxu0 0.0
    %3320 = vmatpush2.xpose.msra.mxu0 0.0
    %3321 = vmatprep.subr.mxu0 0.0
    %3322 = vmatpush2.xpose.msra.mxu0 0.0
    %3323 = vmatprep.subr.mxu0 0.0
    %3324 = vmatpush2.xpose.msra.mxu0 0.0
    %3325 = vmatprep.subr.mxu0 0.0
    %3326 = vmatpush2.xpose.msra.mxu0 0.0
    %3327 = vmatprep.subr.mxu0 0.0
    %3328 = vmatpush2.xpose.msra.mxu0 0.0
    %3329 = vmatprep.subr.mxu0 0.0
    %3330 = vmatpush2.xpose.msra.mxu0 0.0
    %3331 = vmatprep.subr.mxu0 0.0
    %3332 = vmatpush2.xpose.msra.mxu0 0.0
    %3333 = vmatprep.subr.mxu0 0.0
    %3334 = vmatpush2.xpose.msra.mxu0 0.0
    %3335 = vmatprep.subr.mxu0 0.0
    %3336 = vmatpush2.xpose.msra.mxu0 0.0
    %3337 = vmatprep.subr.mxu0 0.0
    %3338 = vmatpush2.xpose.msra.mxu0 0.0
    %3339 = vmatprep.subr.mxu0 0.0
    %3340 = vmatpush2.xpose.msra.mxu0 0.0
    %3341 = vmatprep.subr.mxu0 0.0
    %3342 = vmatpush2.xpose.msra.mxu0 0.0
    %3343 = vmatprep.subr.mxu0 0.0
    %3344 = vmatpush2.xpose.msra.mxu0 0.0
    %3345 = vmatprep.subr.mxu0 0.0
    %3346 = vmatpush2.xpose.msra.mxu0 0.0
    %3347 = vmatprep.subr.mxu0 0.0
    %3348 = vmatpush2.xpose.msra.mxu0 0.0
    %3349 = vmatprep.subr.mxu0 0.0
    %3350 = vmatpush2.xpose.msra.mxu0 0.0
    %3351 = vmatprep.mubr.f32.mxu0 0.0
    %3352 = vmatmul.mubr.f32.gmra.mxu0 %v3283
    %v3353 = vpop.f32.mrf.mxu0
    %v3354 = vadd.f32 0.0, %v3353
    %v3355 = vpop.f32.mrf.mxu0
    %3356 = vdwg.mxu0
    %v3357 = vmul.f32 %v3276, 0.25
    %v3358 = vmul.f32 %v3354, 0.25
    %v3359 = vadd.f32 %v3357, %v389
    %v3360 = vadd.f32 %v3358, %v393
    %v3361 = vsel %vm398, %v3359, -inf
    %3362 = vmax.xlane.f32.xlu0 %v3361
    %v3363 = vpop.xlane.xlu0 %3362
    %v3364 = vsel %vm398, %v3360, -inf
    %3365 = vmax.xlane.f32.xlu0 %v3364
    %v3366 = vpop.xlane.xlu0 %3365
    %v3367 = vsub.f32 %v3359, %v3363
    %v3368 = vsub.f32 %v3360, %v3366
    %v3369 = vmul.f32 %v3367, 1.442695
    %v3370 = vpow.pop %v3369
    %v3371 = vmul.f32 %v3368, 1.442695
    %v3372 = vpow.pop %v3371
    %v3373 = vsel %vm398, %v3370, 0.0
    %3374 = vadd.xlane.f32.xlu0 %v3373
    %v3375 = vpop.xlane.xlu0 %3374
    %v3376 = vsel %vm398, %v3372, 0.0
    %3377 = vadd.xlane.f32.xlu0 %v3376
    %v3378 = vpop.xlane.xlu0 %3377
    %v3379 = vrcp.pop %v3375
    %v3380 = vmul.f32 %v3370, %v3379
    %v3381 = vrcp.pop %v3378
    %v3382 = vmul.f32 %v3372, %v3381
    %3383 = vrot.lane.b32.xlu0 %v2197, 80
    %v3384 = vpop.permute.xlu0 %3383
    %v3387 = vsel %vm398, %v3380, 0
    %3389 = vmatprep.subr.mxu0 0.0
    %3390 = vmatpush1.msra.mxu0 0.0
    %3391 = vmatprep.subr.mxu0 0.0
    %3392 = vmatpush1.msra.mxu0 0.0
    %3393 = vmatprep.subr.mxu0 0.0
    %3394 = vmatpush1.msra.mxu0 0.0
    %3395 = vmatprep.subr.mxu0 0.0
    %3396 = vmatpush1.msra.mxu0 0.0
    %3397 = vmatprep.subr.mxu0 0.0
    %3398 = vmatpush1.msra.mxu0 0.0
    %3399 = vmatprep.subr.mxu0 0.0
    %3400 = vmatpush1.msra.mxu0 0.0
    %3401 = vmatprep.subr.mxu0 0.0
    %3402 = vmatpush1.msra.mxu0 0.0
    %3403 = vmatprep.subr.mxu0 0.0
    %3404 = vmatpush1.msra.mxu0 0.0
    %3405 = vmatprep.subr.mxu0 0.0
    %3406 = vmatpush1.msra.mxu0 0.0
    %3407 = vmatprep.subr.mxu0 0.0
    %3408 = vmatpush1.msra.mxu0 0.0
    %3409 = vmatprep.subr.mxu0 0.0
    %3410 = vmatpush1.msra.mxu0 0.0
    %3411 = vmatprep.subr.mxu0 0.0
    %3412 = vmatpush1.msra.mxu0 0.0
    %3413 = vmatprep.subr.mxu0 0.0
    %3414 = vmatpush1.msra.mxu0 0.0
    %3415 = vmatprep.subr.mxu0 0.0
    %3416 = vmatpush1.msra.mxu0 0.0
    %3417 = vmatprep.subr.mxu0 0.0
    %3418 = vmatpush1.msra.mxu0 0.0
    %3419 = vmatprep.subr.mxu0 0.0
    %3420 = vmatpush1.msra.mxu0 %v3384
    %3421 = vmatprep.subr.mxu0 0.0
    %3422 = vmatpush2.msra.mxu0 0.0
    %3423 = vmatprep.subr.mxu0 0.0
    %3424 = vmatpush2.msra.mxu0 0.0
    %3425 = vmatprep.subr.mxu0 0.0
    %3426 = vmatpush2.msra.mxu0 0.0
    %3427 = vmatprep.subr.mxu0 0.0
    %3428 = vmatpush2.msra.mxu0 0.0
    %3429 = vmatprep.subr.mxu0 0.0
    %3430 = vmatpush2.msra.mxu0 0.0
    %3431 = vmatprep.subr.mxu0 0.0
    %3432 = vmatpush2.msra.mxu0 0.0
    %3433 = vmatprep.subr.mxu0 0.0
    %3434 = vmatpush2.msra.mxu0 0.0
    %3435 = vmatprep.subr.mxu0 0.0
    %3436 = vmatpush2.msra.mxu0 0.0
    %3437 = vmatprep.subr.mxu0 0.0
    %3438 = vmatpush2.msra.mxu0 0.0
    %3439 = vmatprep.subr.mxu0 0.0
    %3440 = vmatpush2.msra.mxu0 0.0
    %3441 = vmatprep.subr.mxu0 0.0
    %3442 = vmatpush2.msra.mxu0 0.0
    %3443 = vmatprep.subr.mxu0 0.0
    %3444 = vmatpush2.msra.mxu0 0.0
    %3445 = vmatprep.subr.mxu0 0.0
    %3446 = vmatpush2.msra.mxu0 0.0
    %3447 = vmatprep.subr.mxu0 0.0
    %3448 = vmatpush2.msra.mxu0 0.0
    %3449 = vmatprep.subr.mxu0 0.0
    %3450 = vmatpush2.msra.mxu0 0.0
    %3451 = vmatprep.subr.mxu0 0.0
    %3452 = vmatpush2.msra.mxu0 0.0
    %3453 = vmatprep.mubr.f32.mxu0 0.0
    %3454 = vmatmul.mubr.f32.gmra.mxu0 %v3387
    %v3455 = vpop.f32.mrf.mxu0
    %v3456 = vadd.f32 0.0, %v3455
    %v3457 = vpop.f32.mrf.mxu0
    %3458 = vdwg.mxu0
    %3459 = vrot.lane.b32.xlu0 %v2203, 80
    %v3460 = vpop.permute.xlu0 %3459
    %v3463 = vsel %vm398, %v3382, 0
    %3465 = vmatprep.subr.mxu0 0.0
    %3466 = vmatpush1.msra.mxu0 0.0
    %3467 = vmatprep.subr.mxu0 0.0
    %3468 = vmatpush1.msra.mxu0 0.0
    %3469 = vmatprep.subr.mxu0 0.0
    %3470 = vmatpush1.msra.mxu0 0.0
    %3471 = vmatprep.subr.mxu0 0.0
    %3472 = vmatpush1.msra.mxu0 0.0
    %3473 = vmatprep.subr.mxu0 0.0
    %3474 = vmatpush1.msra.mxu0 0.0
    %3475 = vmatprep.subr.mxu0 0.0
    %3476 = vmatpush1.msra.mxu0 0.0
    %3477 = vmatprep.subr.mxu0 0.0
    %3478 = vmatpush1.msra.mxu0 0.0
    %3479 = vmatprep.subr.mxu0 0.0
    %3480 = vmatpush1.msra.mxu0 0.0
    %3481 = vmatprep.subr.mxu0 0.0
    %3482 = vmatpush1.msra.mxu0 0.0
    %3483 = vmatprep.subr.mxu0 0.0
    %3484 = vmatpush1.msra.mxu0 0.0
    %3485 = vmatprep.subr.mxu0 0.0
    %3486 = vmatpush1.msra.mxu0 0.0
    %3487 = vmatprep.subr.mxu0 0.0
    %3488 = vmatpush1.msra.mxu0 0.0
    %3489 = vmatprep.subr.mxu0 0.0
    %3490 = vmatpush1.msra.mxu0 0.0
    %3491 = vmatprep.subr.mxu0 0.0
    %3492 = vmatpush1.msra.mxu0 0.0
    %3493 = vmatprep.subr.mxu0 0.0
    %3494 = vmatpush1.msra.mxu0 0.0
    %3495 = vmatprep.subr.mxu0 0.0
    %3496 = vmatpush1.msra.mxu0 %v3460
    %3497 = vmatprep.subr.mxu0 0.0
    %3498 = vmatpush2.msra.mxu0 0.0
    %3499 = vmatprep.subr.mxu0 0.0
    %3500 = vmatpush2.msra.mxu0 0.0
    %3501 = vmatprep.subr.mxu0 0.0
    %3502 = vmatpush2.msra.mxu0 0.0
    %3503 = vmatprep.subr.mxu0 0.0
    %3504 = vmatpush2.msra.mxu0 0.0
    %3505 = vmatprep.subr.mxu0 0.0
    %3506 = vmatpush2.msra.mxu0 0.0
    %3507 = vmatprep.subr.mxu0 0.0
    %3508 = vmatpush2.msra.mxu0 0.0
    %3509 = vmatprep.subr.mxu0 0.0
    %3510 = vmatpush2.msra.mxu0 0.0
    %3511 = vmatprep.subr.mxu0 0.0
    %3512 = vmatpush2.msra.mxu0 0.0
    %3513 = vmatprep.subr.mxu0 0.0
    %3514 = vmatpush2.msra.mxu0 0.0
    %3515 = vmatprep.subr.mxu0 0.0
    %3516 = vmatpush2.msra.mxu0 0.0
    %3517 = vmatprep.subr.mxu0 0.0
    %3518 = vmatpush2.msra.mxu0 0.0
    %3519 = vmatprep.subr.mxu0 0.0
    %3520 = vmatpush2.msra.mxu0 0.0
    %3521 = vmatprep.subr.mxu0 0.0
    %3522 = vmatpush2.msra.mxu0 0.0
    %3523 = vmatprep.subr.mxu0 0.0
    %3524 = vmatpush2.msra.mxu0 0.0
    %3525 = vmatprep.subr.mxu0 0.0
    %3526 = vmatpush2.msra.mxu0 0.0
    %3527 = vmatprep.subr.mxu0 0.0
    %3528 = vmatpush2.msra.mxu0 0.0
    %3529 = vmatprep.mubr.f32.mxu0 0.0
    %3530 = vmatmul.mubr.f32.gmra.mxu0 %v3463
    %v3531 = vpop.f32.mrf.mxu0
    %v3532 = vadd.f32 0.0, %v3531
    %v3533 = vpop.f32.mrf.mxu0
    %3534 = vdwg.mxu0
    %3537 = vrot.lane.b32.xlu0 %v2787, 16
    %v3538 = vpop.permute.xlu0 %3537
    %3539 = vrot.lane.b32.xlu0 %v2864, 16
    %v3540 = vpop.permute.xlu0 %3539
    %3545 = vrot.lane.b32.xlu0 %v3122, 32
    %v3546 = vpop.permute.xlu0 %3545
    %3547 = vrot.lane.b32.xlu0 %v3198, 32
    %v3548 = vpop.permute.xlu0 %3547
    %3553 = vrot.lane.b32.xlu0 %v3456, 48
    %v3554 = vpop.permute.xlu0 %3553
    %3555 = vrot.lane.b32.xlu0 %v3532, 48
    %v3556 = vpop.permute.xlu0 %3555
    %v3559 = vsel %vm232, %v2455, %v3538
    %v3560 = vsel %vm232, %v2528, %v3540
    %v3561 = vsel %vm58, %v3559, %v3546
    %v3562 = vsel %vm58, %v3560, %v3548
    %v3563 = vsel %vm1599, %v3561, %v3554
    %v3564 = vsel %vm1599, %v3562, %v3556
    %s3565 = scalar_lea.vmem %s6, 64
    %v3566 = vld [vmem:[%s3565] sm:$0xff]
    %v3567 = vld [vmem:[%s3565 + $0x8] sm:$0xff]
    %v3568 = vld [vmem:[%s3565 + $0x10] sm:$0xff]
    %v3569 = vld [vmem:[%s3565 + $0x18] sm:$0xff]
    %v3570 = vld [vmem:[%s3565 + $0x20] sm:$0xff]
    %v3571 = vld [vmem:[%s3565 + $0x28] sm:$0xff]
    %v3572 = vld [vmem:[%s3565 + $0x30] sm:$0xff]
    %v3573 = vld [vmem:[%s3565 + $0x38] sm:$0xff]
    %s3574 = scalar_lea.vmem %s7, 1
    %v3575 = vld [vmem:[%s3574] sm:$0x1]
    %v3577 = vlaneseq
    %v3578 = vshrl.u32 %v3577, 7
    %v3579 = vsub.s32 0, %v3578
    %v3580 = vrot.slane %v3575, %v3579
    %v3583 = vsel %vm1617, %v3563, 0
    %v3586 = vsel %vm1617, %v3564, 0
    %3588 = vmatprep.subr.mxu0 0.0
    %3589 = vmatpush1.msra.mxu0 0.0
    %3590 = vmatprep.subr.mxu0 0.0
    %3591 = vmatpush1.msra.mxu0 0.0
    %3592 = vmatprep.subr.mxu0 0.0
    %3593 = vmatpush1.msra.mxu0 0.0
    %3594 = vmatprep.subr.mxu0 0.0
    %3595 = vmatpush1.msra.mxu0 0.0
    %3596 = vmatprep.subr.mxu0 0.0
    %3597 = vmatpush1.msra.mxu0 0.0
    %3598 = vmatprep.subr.mxu0 0.0
    %3599 = vmatpush1.msra.mxu0 0.0
    %3600 = vmatprep.subr.mxu0 0.0
    %3601 = vmatpush1.msra.mxu0 0.0
    %3602 = vmatprep.subr.mxu0 0.0
    %3603 = vmatpush1.msra.mxu0 0.0
    %3604 = vmatprep.subr.mxu0 0.0
    %3605 = vmatpush1.msra.mxu0 %v3573
    %3606 = vmatprep.subr.mxu0 0.0
    %3607 = vmatpush1.msra.mxu0 %v3572
    %3608 = vmatprep.subr.mxu0 0.0
    %3609 = vmatpush1.msra.mxu0 %v3571
    %3610 = vmatprep.subr.mxu0 0.0
    %3611 = vmatpush1.msra.mxu0 %v3570
    %3612 = vmatprep.subr.mxu0 0.0
    %3613 = vmatpush1.msra.mxu0 %v3569
    %3614 = vmatprep.subr.mxu0 0.0
    %3615 = vmatpush1.msra.mxu0 %v3568
    %3616 = vmatprep.subr.mxu0 0.0
    %3617 = vmatpush1.msra.mxu0 %v3567
    %3618 = vmatprep.subr.mxu0 0.0
    %3619 = vmatpush1.msra.mxu0 %v3566
    %3620 = vmatprep.subr.mxu0 0.0
    %3621 = vmatpush2.msra.mxu0 0.0
    %3622 = vmatprep.subr.mxu0 0.0
    %3623 = vmatpush2.msra.mxu0 0.0
    %3624 = vmatprep.subr.mxu0 0.0
    %3625 = vmatpush2.msra.mxu0 0.0
    %3626 = vmatprep.subr.mxu0 0.0
    %3627 = vmatpush2.msra.mxu0 0.0
    %3628 = vmatprep.subr.mxu0 0.0
    %3629 = vmatpush2.msra.mxu0 0.0
    %3630 = vmatprep.subr.mxu0 0.0
    %3631 = vmatpush2.msra.mxu0 0.0
    %3632 = vmatprep.subr.mxu0 0.0
    %3633 = vmatpush2.msra.mxu0 0.0
    %3634 = vmatprep.subr.mxu0 0.0
    %3635 = vmatpush2.msra.mxu0 0.0
    %3636 = vmatprep.subr.mxu0 0.0
    %3637 = vmatpush2.msra.mxu0 0.0
    %3638 = vmatprep.subr.mxu0 0.0
    %3639 = vmatpush2.msra.mxu0 0.0
    %3640 = vmatprep.subr.mxu0 0.0
    %3641 = vmatpush2.msra.mxu0 0.0
    %3642 = vmatprep.subr.mxu0 0.0
    %3643 = vmatpush2.msra.mxu0 0.0
    %3644 = vmatprep.subr.mxu0 0.0
    %3645 = vmatpush2.msra.mxu0 0.0
    %3646 = vmatprep.subr.mxu0 0.0
    %3647 = vmatpush2.msra.mxu0 0.0
    %3648 = vmatprep.subr.mxu0 0.0
    %3649 = vmatpush2.msra.mxu0 0.0
    %3650 = vmatprep.subr.mxu0 0.0
    %3651 = vmatpush2.msra.mxu0 0.0
    %3652 = vmatprep.mubr.f32.mxu0 0.0
    %3653 = vmatmul.mubr.f32.gmra.mxu0 %v3583
    %v3654 = vpop.f32.mrf.mxu0
    %v3655 = vadd.f32 %v3580, %v3654
    %v3656 = vpop.f32.mrf.mxu0
    %3657 = vmatprep.mubr.f32.mxu0 0.0
    %3658 = vmatmul.mubr.f32.gmra.mxu0 %v3586
    %v3659 = vpop.f32.mrf.mxu0
    %v3660 = vadd.f32 %v3580, %v3659
    %v3661 = vpop.f32.mrf.mxu0
    %3662 = vdwg.mxu0
    %s3663 = scalar_lea.vmem %s8, 32
    %v3664 = vld [vmem:[%s3663] sm:$0xff]
    %v3665 = vld [vmem:[%s3663 + $0x8] sm:$0xff]
    %v3666 = vld [vmem:[%s3663 + $0x10] sm:$0xff]
    %v3667 = vld [vmem:[%s3663 + $0x18] sm:$0xff]
    %s3668 = scalar_lea.vmem %s9, 1
    %v3669 = vld [vmem:[%s3668] sm:$0x1]
    %v3671 = vlaneseq
    %v3672 = vshrl.u32 %v3671, 7
    %v3673 = vsub.s32 0, %v3672
    %v3674 = vrot.slane %v3669, %v3673
    %v3677 = vsel %vm58, %v3655, 0
    %v3680 = vsel %vm58, %v3660, 0
    %3682 = vmatprep.subr.mxu0 0.0
    %3683 = vmatpush1.msra.mxu0 0.0
    %3684 = vmatprep.subr.mxu0 0.0
    %3685 = vmatpush1.msra.mxu0 0.0
    %3686 = vmatprep.subr.mxu0 0.0
    %3687 = vmatpush1.msra.mxu0 0.0
    %3688 = vmatprep.subr.mxu0 0.0
    %3689 = vmatpush1.msra.mxu0 0.0
    %3690 = vmatprep.subr.mxu0 0.0
    %3691 = vmatpush1.msra.mxu0 0.0
    %3692 = vmatprep.subr.mxu0 0.0
    %3693 = vmatpush1.msra.mxu0 0.0
    %3694 = vmatprep.subr.mxu0 0.0
    %3695 = vmatpush1.msra.mxu0 0.0
    %3696 = vmatprep.subr.mxu0 0.0
    %3697 = vmatpush1.msra.mxu0 0.0
    %3698 = vmatprep.subr.mxu0 0.0
    %3699 = vmatpush1.msra.mxu0 0.0
    %3700 = vmatprep.subr.mxu0 0.0
    %3701 = vmatpush1.msra.mxu0 0.0
    %3702 = vmatprep.subr.mxu0 0.0
    %3703 = vmatpush1.msra.mxu0 0.0
    %3704 = vmatprep.subr.mxu0 0.0
    %3705 = vmatpush1.msra.mxu0 0.0
    %3706 = vmatprep.subr.mxu0 0.0
    %3707 = vmatpush1.msra.mxu0 %v3667
    %3708 = vmatprep.subr.mxu0 0.0
    %3709 = vmatpush1.msra.mxu0 %v3666
    %3710 = vmatprep.subr.mxu0 0.0
    %3711 = vmatpush1.msra.mxu0 %v3665
    %3712 = vmatprep.subr.mxu0 0.0
    %3713 = vmatpush1.msra.mxu0 %v3664
    %3714 = vmatprep.subr.mxu0 0.0
    %3715 = vmatpush2.msra.mxu0 0.0
    %3716 = vmatprep.subr.mxu0 0.0
    %3717 = vmatpush2.msra.mxu0 0.0
    %3718 = vmatprep.subr.mxu0 0.0
    %3719 = vmatpush2.msra.mxu0 0.0
    %3720 = vmatprep.subr.mxu0 0.0
    %3721 = vmatpush2.msra.mxu0 0.0
    %3722 = vmatprep.subr.mxu0 0.0
    %3723 = vmatpush2.msra.mxu0 0.0
    %3724 = vmatprep.subr.mxu0 0.0
    %3725 = vmatpush2.msra.mxu0 0.0
    %3726 = vmatprep.subr.mxu0 0.0
    %3727 = vmatpush2.msra.mxu0 0.0
    %3728 = vmatprep.subr.mxu0 0.0
    %3729 = vmatpush2.msra.mxu0 0.0
    %3730 = vmatprep.subr.mxu0 0.0
    %3731 = vmatpush2.msra.mxu0 0.0
    %3732 = vmatprep.subr.mxu0 0.0
    %3733 = vmatpush2.msra.mxu0 0.0
    %3734 = vmatprep.subr.mxu0 0.0
    %3735 = vmatpush2.msra.mxu0 0.0
    %3736 = vmatprep.subr.mxu0 0.0
    %3737 = vmatpush2.msra.mxu0 0.0
    %3738 = vmatprep.subr.mxu0 0.0
    %3739 = vmatpush2.msra.mxu0 0.0
    %3740 = vmatprep.subr.mxu0 0.0
    %3741 = vmatpush2.msra.mxu0 0.0
    %3742 = vmatprep.subr.mxu0 0.0
    %3743 = vmatpush2.msra.mxu0 0.0
    %3744 = vmatprep.subr.mxu0 0.0
    %3745 = vmatpush2.msra.mxu0 0.0
    %3746 = vmatprep.mubr.f32.mxu0 0.0
    %3747 = vmatmul.mubr.f32.gmra.mxu0 %v3677
    %v3748 = vpop.f32.mrf.mxu0
    %v3749 = vadd.f32 %v3674, %v3748
    %v3750 = vpop.f32.mrf.mxu0
    %3751 = vmatprep.mubr.f32.mxu0 0.0
    %3752 = vmatmul.mubr.f32.gmra.mxu0 %v3680
    %v3753 = vpop.f32.mrf.mxu0
    %v3754 = vadd.f32 %v3674, %v3753
    %v3755 = vpop.f32.mrf.mxu0
    %3756 = vdwg.mxu0
    %v3757 = vsel %vm1791, %v3749, -inf
    %3758 = vmax.xlane.f32.xlu0 %v3757
    %v3759 = vpop.xlane.xlu0 %3758
    %v3760 = vsel %vm1791, %v3754, -inf
    %3761 = vmax.xlane.f32.xlu0 %v3760
    %v3762 = vpop.xlane.xlu0 %3761
    %v3763 = vsub.f32 %v3749, %v3759
    %v3764 = vsub.f32 %v3754, %v3762
    %v3765 = vmul.f32 %v3763, 1.442695
    %v3766 = vpow.pop %v3765
    %v3767 = vmul.f32 %v3764, 1.442695
    %v3768 = vpow.pop %v3767
    %v3769 = vsel %vm1791, %v3766, 0.0
    %3770 = vadd.xlane.f32.xlu0 %v3769
    %v3771 = vpop.xlane.xlu0 %3770
    %v3772 = vsel %vm1791, %v3768, 0.0
    %3773 = vadd.xlane.f32.xlu0 %v3772
    %v3774 = vpop.xlane.xlu0 %3773
    %v3775 = vrcp.pop %v3771
    %v3776 = vmul.f32 %v3766, %v3775
    %v3777 = vrcp.pop %v3774
    %v3778 = vmul.f32 %v3768, %v3777
    %v3779 = vsel %vm1791, %v3776, -inf
    %3780 = vmax.xlane.f32.xlu0 %v3779
    %v3781 = vpop.xlane.xlu0 %3780
    %v3782 = vsel %vm1791, %v3778, -inf
    %3783 = vmax.xlane.f32.xlu0 %v3782
    %v3784 = vpop.xlane.xlu0 %3783
    %3787 = vrot.lane.b32.xlu0 %v3776, 127
    %v3788 = vpop.permute.xlu0 %3787
    %3789 = vrot.lane.b32.xlu0 %v3778, 127
    %v3790 = vpop.permute.xlu0 %3789
    %vm3793 = vcmp.ge.f32.partialorder %v3776, %v3788
    %vm3794 = vcmp.ge.f32.partialorder %v3778, %v3790
    %s3795 = scalar_lea.vmem %s10, 32
    %v3796 = vld [vmem:[%s3795] sm:$0xff]
    %v3797 = vld [vmem:[%s3795 + $0x8] sm:$0xff]
    %v3798 = vld [vmem:[%s3795 + $0x10] sm:$0xff]
    %v3799 = vld [vmem:[%s3795 + $0x18] sm:$0xff]
    %s3800 = scalar_lea.vmem %s11, 1
    %v3801 = vld [vmem:[%s3800] sm:$0x1]
    %v3803 = vlaneseq
    %v3804 = vshrl.u32 %v3803, 7
    %v3805 = vsub.s32 0, %v3804
    %v3806 = vrot.slane %v3801, %v3805
    %3808 = vmatprep.subr.mxu0 0.0
    %3809 = vmatpush1.msra.mxu0 0.0
    %3810 = vmatprep.subr.mxu0 0.0
    %3811 = vmatpush1.msra.mxu0 0.0
    %3812 = vmatprep.subr.mxu0 0.0
    %3813 = vmatpush1.msra.mxu0 0.0
    %3814 = vmatprep.subr.mxu0 0.0
    %3815 = vmatpush1.msra.mxu0 0.0
    %3816 = vmatprep.subr.mxu0 0.0
    %3817 = vmatpush1.msra.mxu0 0.0
    %3818 = vmatprep.subr.mxu0 0.0
    %3819 = vmatpush1.msra.mxu0 0.0
    %3820 = vmatprep.subr.mxu0 0.0
    %3821 = vmatpush1.msra.mxu0 0.0
    %3822 = vmatprep.subr.mxu0 0.0
    %3823 = vmatpush1.msra.mxu0 0.0
    %3824 = vmatprep.subr.mxu0 0.0
    %3825 = vmatpush1.msra.mxu0 0.0
    %3826 = vmatprep.subr.mxu0 0.0
    %3827 = vmatpush1.msra.mxu0 0.0
    %3828 = vmatprep.subr.mxu0 0.0
    %3829 = vmatpush1.msra.mxu0 0.0
    %3830 = vmatprep.subr.mxu0 0.0
    %3831 = vmatpush1.msra.mxu0 0.0
    %3832 = vmatprep.subr.mxu0 0.0
    %3833 = vmatpush1.msra.mxu0 %v3799
    %3834 = vmatprep.subr.mxu0 0.0
    %3835 = vmatpush1.msra.mxu0 %v3798
    %3836 = vmatprep.subr.mxu0 0.0
    %3837 = vmatpush1.msra.mxu0 %v3797
    %3838 = vmatprep.subr.mxu0 0.0
    %3839 = vmatpush1.msra.mxu0 %v3796
    %3840 = vmatprep.subr.mxu0 0.0
    %3841 = vmatpush2.msra.mxu0 0.0
    %3842 = vmatprep.subr.mxu0 0.0
    %3843 = vmatpush2.msra.mxu0 0.0
    %3844 = vmatprep.subr.mxu0 0.0
    %3845 = vmatpush2.msra.mxu0 0.0
    %3846 = vmatprep.subr.mxu0 0.0
    %3847 = vmatpush2.msra.mxu0 0.0
    %3848 = vmatprep.subr.mxu0 0.0
    %3849 = vmatpush2.msra.mxu0 0.0
    %3850 = vmatprep.subr.mxu0 0.0
    %3851 = vmatpush2.msra.mxu0 0.0
    %3852 = vmatprep.subr.mxu0 0.0
    %3853 = vmatpush2.msra.mxu0 0.0
    %3854 = vmatprep.subr.mxu0 0.0
    %3855 = vmatpush2.msra.mxu0 0.0
    %3856 = vmatprep.subr.mxu0 0.0
    %3857 = vmatpush2.msra.mxu0 0.0
    %3858 = vmatprep.subr.mxu0 0.0
    %3859 = vmatpush2.msra.mxu0 0.0
    %3860 = vmatprep.subr.mxu0 0.0
    %3861 = vmatpush2.msra.mxu0 0.0
    %3862 = vmatprep.subr.mxu0 0.0
    %3863 = vmatpush2.msra.mxu0 0.0
    %3864 = vmatprep.subr.mxu0 0.0
    %3865 = vmatpush2.msra.mxu0 0.0
    %3866 = vmatprep.subr.mxu0 0.0
    %3867 = vmatpush2.msra.mxu0 0.0
    %3868 = vmatprep.subr.mxu0 0.0
    %3869 = vmatpush2.msra.mxu0 0.0
    %3870 = vmatprep.subr.mxu0 0.0
    %3871 = vmatpush2.msra.mxu0 0.0
    %3872 = vmatprep.mubr.f32.mxu0 0.0
    %3873 = vmatmul.mubr.f32.gmra.mxu0 %v3677
    %v3874 = vpop.f32.mrf.mxu0
    %v3875 = vadd.f32 %v3806, %v3874
    %v3876 = vpop.f32.mrf.mxu0
    %3877 = vmatprep.mubr.f32.mxu0 0.0
    %3878 = vmatmul.mubr.f32.gmra.mxu0 %v3680
    %v3879 = vpop.f32.mrf.mxu0
    %v3880 = vadd.f32 %v3806, %v3879
    %v3881 = vpop.f32.mrf.mxu0
    %3882 = vdwg.mxu0
    %v3883 = vmul.f32 %v3875, %v3875
    %v3884 = vmul.f32 %v3880, %v3880
    %v3885 = vmul.f32 %v3875, %v3883
    %v3886 = vmul.f32 %v3880, %v3884
    %v3887 = vmul.f32 %v3885, 0.044715
    %v3888 = vmul.f32 %v3886, 0.044715
    %v3889 = vadd.f32 %v3875, %v3887
    %v3890 = vadd.f32 %v3880, %v3888
    %v3891 = vmul.f32 %v3889, 0.7978846
    %v3892 = vmul.f32 %v3890, 0.7978846
    %v3893 = vtanh.pop %v3891
    %v3894 = vtanh.pop %v3892
    %v3895 = vadd.f32 %v3893, 1.0
    %v3896 = vadd.f32 %v3894, 1.0
    %v3897 = vmul.f32 %v3895, 0.5
    %v3898 = vmul.f32 %v3896, 0.5
    %v3899 = vmul.f32 %v3875, %v3897
    %v3900 = vmul.f32 %v3880, %v3898
    %s3901 = scalar_lea.vmem %s12, 128
    %v3902 = vld [vmem:[%s3901] sm:$0xff]
    %v3903 = vld [vmem:[%s3901 + $0x8] sm:$0xff]
    %v3904 = vld [vmem:[%s3901 + $0x10] sm:$0xff]
    %v3905 = vld [vmem:[%s3901 + $0x18] sm:$0xff]
    %v3906 = vld [vmem:[%s3901 + $0x20] sm:$0xff]
    %v3907 = vld [vmem:[%s3901 + $0x28] sm:$0xff]
    %v3908 = vld [vmem:[%s3901 + $0x30] sm:$0xff]
    %v3909 = vld [vmem:[%s3901 + $0x38] sm:$0xff]
    %v3910 = vld [vmem:[%s3901 + $0x40] sm:$0xff]
    %v3911 = vld [vmem:[%s3901 + $0x48] sm:$0xff]
    %v3912 = vld [vmem:[%s3901 + $0x50] sm:$0xff]
    %v3913 = vld [vmem:[%s3901 + $0x58] sm:$0xff]
    %v3914 = vld [vmem:[%s3901 + $0x60] sm:$0xff]
    %v3915 = vld [vmem:[%s3901 + $0x68] sm:$0xff]
    %v3916 = vld [vmem:[%s3901 + $0x70] sm:$0xff]
    %v3917 = vld [vmem:[%s3901 + $0x78] sm:$0xff]
    %s3918 = scalar_lea.vmem %s13, 1
    %v3919 = vld [vmem:[%s3918] sm:$0x1]
    %v3921 = vlaneseq
    %v3922 = vshrl.u32 %v3921, 7
    %v3923 = vsub.s32 0, %v3922
    %v3924 = vrot.slane %v3919, %v3923
    %3926 = vmatprep.subr.mxu0 0.0
    %3927 = vmatpush1.msra.mxu0 %v3917
    %3928 = vmatprep.subr.mxu0 0.0
    %3929 = vmatpush1.msra.mxu0 %v3916
    %3930 = vmatprep.subr.mxu0 0.0
    %3931 = vmatpush1.msra.mxu0 %v3915
    %3932 = vmatprep.subr.mxu0 0.0
    %3933 = vmatpush1.msra.mxu0 %v3914
    %3934 = vmatprep.subr.mxu0 0.0
    %3935 = vmatpush1.msra.mxu0 %v3913
    %3936 = vmatprep.subr.mxu0 0.0
    %3937 = vmatpush1.msra.mxu0 %v3912
    %3938 = vmatprep.subr.mxu0 0.0
    %3939 = vmatpush1.msra.mxu0 %v3911
    %3940 = vmatprep.subr.mxu0 0.0
    %3941 = vmatpush1.msra.mxu0 %v3910
    %3942 = vmatprep.subr.mxu0 0.0
    %3943 = vmatpush1.msra.mxu0 %v3909
    %3944 = vmatprep.subr.mxu0 0.0
    %3945 = vmatpush1.msra.mxu0 %v3908
    %3946 = vmatprep.subr.mxu0 0.0
    %3947 = vmatpush1.msra.mxu0 %v3907
    %3948 = vmatprep.subr.mxu0 0.0
    %3949 = vmatpush1.msra.mxu0 %v3906
    %3950 = vmatprep.subr.mxu0 0.0
    %3951 = vmatpush1.msra.mxu0 %v3905
    %3952 = vmatprep.subr.mxu0 0.0
    %3953 = vmatpush1.msra.mxu0 %v3904
    %3954 = vmatprep.subr.mxu0 0.0
    %3955 = vmatpush1.msra.mxu0 %v3903
    %3956 = vmatprep.subr.mxu0 0.0
    %3957 = vmatpush1.msra.mxu0 %v3902
    %3958 = vmatprep.subr.mxu0 0.0
    %3959 = vmatpush2.msra.mxu0 0.0
    %3960 = vmatprep.subr.mxu0 0.0
    %3961 = vmatpush2.msra.mxu0 0.0
    %3962 = vmatprep.subr.mxu0 0.0
    %3963 = vmatpush2.msra.mxu0 0.0
    %3964 = vmatprep.subr.mxu0 0.0
    %3965 = vmatpush2.msra.mxu0 0.0
    %3966 = vmatprep.subr.mxu0 0.0
    %3967 = vmatpush2.msra.mxu0 0.0
    %3968 = vmatprep.subr.mxu0 0.0
    %3969 = vmatpush2.msra.mxu0 0.0
    %3970 = vmatprep.subr.mxu0 0.0
    %3971 = vmatpush2.msra.mxu0 0.0
    %3972 = vmatprep.subr.mxu0 0.0
    %3973 = vmatpush2.msra.mxu0 0.0
    %3974 = vmatprep.subr.mxu0 0.0
    %3975 = vmatpush2.msra.mxu0 0.0
    %3976 = vmatprep.subr.mxu0 0.0
    %3977 = vmatpush2.msra.mxu0 0.0
    %3978 = vmatprep.subr.mxu0 0.0
    %3979 = vmatpush2.msra.mxu0 0.0
    %3980 = vmatprep.subr.mxu0 0.0
    %3981 = vmatpush2.msra.mxu0 0.0
    %3982 = vmatprep.subr.mxu0 0.0
    %3983 = vmatpush2.msra.mxu0 0.0
    %3984 = vmatprep.subr.mxu0 0.0
    %3985 = vmatpush2.msra.mxu0 0.0
    %3986 = vmatprep.subr.mxu0 0.0
    %3987 = vmatpush2.msra.mxu0 0.0
    %3988 = vmatprep.subr.mxu0 0.0
    %3989 = vmatpush2.msra.mxu0 0.0
    %3990 = vmatprep.mubr.f32.mxu0 0.0
    %3991 = vmatmul.mubr.f32.gmra.mxu0 %v3899
    %v3992 = vpop.f32.mrf.mxu0
    %v3993 = vadd.f32 %v3924, %v3992
    %v3994 = vpop.f32.mrf.mxu0
    %3995 = vmatprep.mubr.f32.mxu0 0.0
    %3996 = vmatmul.mubr.f32.gmra.mxu0 %v3900
    %v3997 = vpop.f32.mrf.mxu0
    %v3998 = vadd.f32 %v3924, %v3997
    %v3999 = vpop.f32.mrf.mxu0
    %4000 = vdwg.mxu0
    %v4001 = vsel %vm3793, 1, 0
    %v4002 = vsel %vm3794, 1, 0
    %4003 = vset.pattern.permute.xlu0 0
    %4004 = vperm.xlu0 %4003, %v4001
    %v4005 = vpop.permute.xlu0 %4004
    %4006 = vset.pattern.permute.xlu0 0
    %4007 = vperm.xlu0 %4006, %v4002
    %v4008 = vpop.permute.xlu0 %4007
    %vm4009 = vcmp.eq.s32.totalorder %v4005, 1
    %vm4010 = vcmp.eq.s32.totalorder %v4008, 1
    %4013 = vrot.lane.b32.xlu0 %v3993, 96
    %v4014 = vpop.permute.xlu0 %4013
    %4015 = vrot.lane.b32.xlu0 %v3998, 96
    %v4016 = vpop.permute.xlu0 %4015
    %v4019 = vsel %vm4009, %v3993, %v4014
    %v4020 = vsel %vm4010, %v3998, %v4016
    %v4021 = vmul.f32 %v4019, %v3781
    %v4022 = vmul.f32 %v4020, %v3784
    %v4023 = vadd.f32 %v3655, %v4021
    %v4024 = vadd.f32 %v3660, %v4022
    %s4025 = scalar_lea.vmem %s14, 1
    %v4026 = vld [vmem:[%s4025] sm:$0x1]
    %s4027 = scalar_lea.vmem %s15, 1
    %v4028 = vld [vmem:[%s4027] sm:$0x1]
    %v4029 = vsel %vm58, %v4023, 0.0
    %4030 = vadd.xlane.f32.xlu0 %v4029
    %v4031 = vpop.xlane.xlu0 %4030
    %v4032 = vsel %vm58, %v4024, 0.0
    %4033 = vadd.xlane.f32.xlu0 %v4032
    %v4034 = vpop.xlane.xlu0 %4033
    %v4035 = vmul.f32 %v4031, %v65
    %v4036 = vmul.f32 %v4034, %v65
    %v4037 = vsub.f32 %v4023, %v4035
    %v4038 = vsub.f32 %v4024, %v4036
    %v4039 = vmul.f32 %v4037, %v4037
    %v4040 = vmul.f32 %v4038, %v4038
    %v4041 = vsel %vm58, %v4039, 0.0
    %4042 = vadd.xlane.f32.xlu0 %v4041
    %v4043 = vpop.xlane.xlu0 %4042
    %v4044 = vsel %vm58, %v4040, 0.0
    %4045 = vadd.xlane.f32.xlu0 %v4044
    %v4046 = vpop.xlane.xlu0 %4045
    %v4047 = vmul.f32 %v4043, %v65
    %v4048 = vmul.f32 %v4046, %v65
    %v4049 = vadd.f32 %v4047, 1e-12
    %v4050 = vadd.f32 %v4048, 1e-12
    %v4051 = vrsqrt.pop %v4049
    %v4052 = vrsqrt.pop %v4050
    %v4053 = vmul.f32 %v4037, %v4051
    %v4054 = vmul.f32 %v4038, %v4052
    %v4056 = vlaneseq
    %v4057 = vshrl.u32 %v4056, 7
    %v4058 = vsub.s32 0, %v4057
    %v4059 = vrot.slane %v4026, %v4058
    %v4061 = vmul.f32 %v4053, %v4059
    %v4062 = vmul.f32 %v4054, %v4059
    %v4064 = vlaneseq
    %v4065 = vshrl.u32 %v4064, 7
    %v4066 = vsub.s32 0, %v4065
    %v4067 = vrot.slane %v4028, %v4066
    %v4069 = vadd.f32 %v4061, %v4067
    %v4070 = vadd.f32 %v4062, %v4067
    %4071 = vst.msk [vmem:[#allocation2] sm:$0xff] %vm58, %v4069
    %4072 = vst.msk [vmem:[#allocation2 + $0x8] sm:$0xff] %vm58, %v4070
    // Predicated region
    $region66: #{model_forward.1} parent=1 // pred_check
      _
    $region67: #{model_forward.1} parent=1 // pred_check_branch
      %4074 = sbr.rel (0) target = $region69
    $region68: #{model_forward.1} parent=1 // pred_region
      %s4076 = ssub.s32 256, 256
      %4077 = vsyncadd [#allocation3], %s4076
      %s4078 = sshll.u32 [#allocation2], 4
      %s4079 = int_to_ptr.vmem [resolvable:$true] %s4078
      %4084 = dma.vmem_to_hbm [thread:$0]  %s4079, 256, %s16, [#allocation3], 128, 128, 8
    $region69: #{model_forward.1} parent=1 // pred_fallthru
      _
    // Predicated region
    $region70: #{model_forward.1} parent=1 // pred_check
      _
    $region71: #{model_forward.1} parent=1 // pred_check_branch
      %4086 = sbr.rel (0) target = $region73
    $region72: #{model_forward.1} parent=1 // pred_region
      %4087 = dma.done [#allocation3], 256
    $region73: #{model_forward.1} parent=1 // pred_fallthru
      _
    %4088 = vsyncpa [#allocation3], 1

</llo_original>
